<compile_context>
chip_gen: v7x
topology: tpu7x:2x2x1
jax: 0.10.0
libtpu: 0.0.40
codegen_flags: <defaults>
</compile_context>

<pallas_src>
import numpy as np
import jax
import jax.numpy as jnp
from jax.experimental import pallas as pl
from jax.experimental.pallas import tpu as pltpu  # noqa: F401  (imported per template)

# ---------------- model hyper-parameters (small, synthetic) ----------------
VOCAB = 100
SEQ = 8          # S
HID = 32         # H
FFN = 64         # F
LAYERS = 2       # L
NHEADS = 2
HEAD_DIM = HID // NHEADS
BATCH = 2        # number of query groups
SAMPLE_NUM = 4   # candidates per group
N = BATCH * SAMPLE_NUM
NS = N * SEQ     # flattened token count
LOGIT_PAD = 128  # lane-dense logits slab width
EPS = 1e-12


# ------------------------------ small helpers ------------------------------
def _gelu(x):
  c = 0.7978845608028654  # sqrt(2/pi)
  return 0.5 * x * (1.0 + jnp.tanh(c * (x + 0.044715 * x * x * x)))


def _layernorm(x, gamma, beta):
  mu = jnp.mean(x, axis=-1, keepdims=True)
  var = jnp.mean((x - mu) * (x - mu), axis=-1, keepdims=True)
  return (x - mu) * jax.lax.rsqrt(var + EPS) * gamma + beta


# ------------------------ packed weight slab layout -------------------------
# Every tensor is stored at lane offset 0 (padded to 128 lanes) and at an
# 8-aligned row offset, so in-kernel unpacking is a free static ref slice.
def _round8(n):
  return (n + 7) // 8 * 8


def _build_layout():
  layout = {}
  off = 0

  def add(name, rows, cols):
    nonlocal off
    layout[name] = (off, rows, cols)
    off += _round8(rows)

  for l in range(LAYERS):
    for h in range(NHEADS):
      add(f"wq{l}{h}", HID, HEAD_DIM)
      add(f"wk{l}{h}", HID, HEAD_DIM)
      add(f"wv{l}{h}", HID, HEAD_DIM)
      add(f"wo{l}{h}", HEAD_DIM, HID)
      add(f"bq{l}{h}", 1, HEAD_DIM)
      add(f"bk{l}{h}", 1, HEAD_DIM)
      add(f"bv{l}{h}", 1, HEAD_DIM)
    add(f"bo{l}", 1, HID)
    add(f"g1{l}", 1, HID)
    add(f"b1{l}", 1, HID)
    add(f"w1{l}", HID, FFN)
    add(f"bf1{l}", 1, FFN)
    add(f"w2{l}", FFN, HID)
    add(f"bf2{l}", 1, HID)
    add(f"g2{l}", 1, HID)
    add(f"b2{l}", 1, HID)
  add("wp", HID, HID)
  add("bp", 1, HID)
  add("wc", HID, LOGIT_PAD)
  add("bc", 1, LOGIT_PAD)
  add("selcls", N, NS)          # [CLS] one-hot selector (constant)
  return layout, off


LAYOUT, SLAB_ROWS = _build_layout()
SLAB_W = LOGIT_PAD  # 128


# -------------------- fused encoder + pooler/head kernel --------------------
# Single invocation (no grid); weights + activations stay resident in VMEM.
def fused_kernel(x_ref, mask_ref, w_ref, logits_ref):
  def rd(name):
    off, rows, cols = LAYOUT[name]
    return w_ref[off:off + rows, :cols]       # static, 8-aligned ref slice

  xf = x_ref[...]            # (NS, H)  all sequences flattened
  add_mask = mask_ref[...]   # (NS, NS) block-diag + key-padding additive mask

  for l in range(LAYERS):
    attn = None
    for h in range(NHEADS):
      # Per-head projections straight from xf (lane offset 0 everywhere).
      # 1/sqrt(head_dim) is folded into wq/bq host-side.
      q = jnp.dot(xf, rd(f"wq{l}{h}"),
                  preferred_element_type=jnp.float32) + rd(f"bq{l}{h}")
      k = jnp.dot(xf, rd(f"wk{l}{h}"),
                  preferred_element_type=jnp.float32) + rd(f"bk{l}{h}")
      v = jnp.dot(xf, rd(f"wv{l}{h}"),
                  preferred_element_type=jnp.float32) + rd(f"bv{l}{h}")
      # q @ k^T expressed as a contraction on dim 1 of both operands (the same
      # A.B^T form used by the flash-attention reference kernel).
      s = jax.lax.dot_general(q, k, (((1,), (1,)), ((), ())),
                              preferred_element_type=jnp.float32)  # (NS, NS)
      s = s + add_mask
      s = s - jnp.max(s, axis=-1, keepdims=True)
      p = jnp.exp(s)
      # exact reciprocal for parity with the reference (approx=True was
      # flagged as a numeric-parity concern; perf difference here is nil).
      p = p * pl.reciprocal(jnp.sum(p, axis=-1, keepdims=True), approx=False)
      ctx = jnp.dot(p, v, preferred_element_type=jnp.float32)       # (NS, HD)
      # Per-head output projection accumulation (== concat(heads) @ W_O).
      o_h = jnp.dot(ctx, rd(f"wo{l}{h}"), preferred_element_type=jnp.float32)
      attn = o_h if attn is None else attn + o_h
    attn = attn + rd(f"bo{l}")
    xf = _layernorm(xf + attn, rd(f"g1{l}"), rd(f"b1{l}"))

    h1 = _gelu(jnp.dot(xf, rd(f"w1{l}"),
                       preferred_element_type=jnp.float32) + rd(f"bf1{l}"))
    h2 = jnp.dot(h1, rd(f"w2{l}"),
                 preferred_element_type=jnp.float32) + rd(f"bf2{l}")
    xf = _layernorm(xf + h2, rd(f"g2{l}"), rd(f"b2{l}"))

  # [CLS] extraction via a precomputed one-hot selection matmul (keeps 2-D).
  cls = jnp.dot(rd("selcls"), xf, preferred_element_type=jnp.float32)  # (N, H)
  pooled = jnp.tanh(jnp.dot(cls, rd("wp"),
                            preferred_element_type=jnp.float32) + rd("bp"))
  # wc/bc pre-padded to 128 lanes -> single unmasked lane-dense (8,128) store.
  logits_ref[...] = jnp.dot(pooled, rd("wc"),
                            preferred_element_type=jnp.float32) + rd("bc")


def run_fused(x_flat, add_mask, slab):
  return pl.pallas_call(
      fused_kernel,
      out_shape=jax.ShapeDtypeStruct((N, LOGIT_PAD), jnp.float32),
  )(x_flat, add_mask, slab)


# --------------------------- host-side weight packing -----------------------
def pack_slab(p):
  """One-time packing of all encoder/head weights into a single VMEM slab."""
  slab = np.zeros((SLAB_ROWS, SLAB_W), np.float32)

  def put(name, arr):
    off, rows, cols = LAYOUT[name]
    slab[off:off + rows, :cols] = np.asarray(arr, np.float32).reshape(rows, cols)

  scale = 1.0 / float(np.sqrt(HEAD_DIM))
  for l in range(LAYERS):
    for h in range(NHEADS):
      sl = slice(h * HEAD_DIM, (h + 1) * HEAD_DIM)
      put(f"wq{l}{h}", np.asarray(p["wq"][l])[:, sl] * scale)
      put(f"bq{l}{h}", np.asarray(p["bq"][l])[:, sl] * scale)
      put(f"wk{l}{h}", np.asarray(p["wk"][l])[:, sl])
      put(f"bk{l}{h}", np.asarray(p["bk"][l])[:, sl])
      put(f"wv{l}{h}", np.asarray(p["wv"][l])[:, sl])
      put(f"bv{l}{h}", np.asarray(p["bv"][l])[:, sl])
      put(f"wo{l}{h}", np.asarray(p["wo"][l])[sl, :])
    put(f"bo{l}", p["bo"][l])
    put(f"g1{l}", p["ln1_g"][l])
    put(f"b1{l}", p["ln1_b"][l])
    put(f"w1{l}", p["w1"][l])
    put(f"bf1{l}", p["bf1"][l])
    put(f"w2{l}", p["w2"][l])
    put(f"bf2{l}", p["bf2"][l])
    put(f"g2{l}", p["ln2_g"][l])
    put(f"b2{l}", p["ln2_b"][l])
  put("wp", p["wp"])
  put("bp", p["bp"])
  wc_pad = np.zeros((HID, LOGIT_PAD), np.float32)
  wc_pad[:, :1] = np.asarray(p["wc"])
  bc_pad = np.zeros((1, LOGIT_PAD), np.float32)
  bc_pad[:, :1] = np.asarray(p["bc"])
  put("wc", wc_pad)
  put("bc", bc_pad)
  selcls = np.zeros((N, NS), np.float32)
  selcls[np.arange(N), np.arange(N) * SEQ] = 1.0
  put("selcls", selcls)
  return jnp.asarray(slab)


# --------------------------- jitted end-to-end forward ----------------------
@jax.jit
def forward(slab, emb, input_ids, attention_mask):
  # TODO(synk): embedding-table gather is data-dependent; it stays in XLA
  # (inside this same jit) rather than in the Pallas kernel.
  x = emb["word_emb"][input_ids] + emb["pos_emb"][None, :, :]
  x = _layernorm(x, emb["emb_g"], emb["emb_b"])
  x_flat = x.reshape(NS, HID)

  # Block-diagonal + key-padding additive mask, built outside the kernel.
  mflat = attention_mask.astype(jnp.float32).reshape(1, NS)
  seq_id = jnp.arange(NS, dtype=jnp.int32) // SEQ
  same = (seq_id[:, None] == seq_id[None, :]).astype(jnp.float32)
  add_mask = (same * mflat - 1.0) * 1e9                     # (NS, NS)

  logits_pad = run_fused(x_flat, add_mask, slab)            # (N, 128)
  logits = logits_pad[:, :1]                                # (N, 1)

  # Listwise CE with target label 0 (tiny epilogue, fused into the same jit).
  scores = logits.reshape(BATCH, SAMPLE_NUM)
  loss = jnp.mean(jax.nn.logsumexp(scores, axis=-1) - scores[:, 0])
  return logits, loss


def cross_encoder_forward(slab, emb, input_ids, attention_mask, training=True):
  logits, loss = forward(slab, emb, input_ids, attention_mask)
  return loss if training else logits


# ------------------------------ pure-JAX reference --------------------------
def reference_forward(params, input_ids, attention_mask, training=True):
  x = params["word_emb"][input_ids] + params["pos_emb"][None, :, :]
  x = _layernorm(x, params["emb_g"], params["emb_b"])
  add = (attention_mask.astype(jnp.float32) - 1.0)[:, None, :] * 1e9
  scale = 1.0 / float(np.sqrt(HEAD_DIM))
  for l in range(LAYERS):
    q = x @ params["wq"][l] + params["bq"][l]
    k = x @ params["wk"][l] + params["bk"][l]
    v = x @ params["wv"][l] + params["bv"][l]
    heads = []
    for h in range(NHEADS):
      sl = slice(h * HEAD_DIM, (h + 1) * HEAD_DIM)
      s = jnp.einsum("nsd,ntd->nst", q[..., sl], k[..., sl]) * scale + add
      s = s - jnp.max(s, axis=-1, keepdims=True)
      pr = jnp.exp(s)
      pr = pr / jnp.sum(pr, axis=-1, keepdims=True)
      heads.append(jnp.einsum("nst,ntd->nsd", pr, v[..., sl]))
    ctx = jnp.concatenate(heads, axis=-1)
    attn = ctx @ params["wo"][l] + params["bo"][l]
    x = _layernorm(x + attn, params["ln1_g"][l], params["ln1_b"][l])
    h1 = _gelu(x @ params["w1"][l] + params["bf1"][l])
    h2 = h1 @ params["w2"][l] + params["bf2"][l]
    x = _layernorm(x + h2, params["ln2_g"][l], params["ln2_b"][l])
  cls = x[:, 0, :]
  pooled = jnp.tanh(cls @ params["wp"] + params["bp"])
  logits = pooled @ params["wc"] + params["bc"]
  if training:
    scores = logits.reshape(-1, SAMPLE_NUM)
    lse = jax.nn.logsumexp(scores, axis=-1)
    return jnp.mean(lse - scores[:, 0])
  return logits


# ------------------------------ parameter init ------------------------------
def init_params(key):
  ks = iter(jax.random.split(key, 32))
  nrm = lambda shape: 0.02 * jax.random.normal(next(ks), shape, jnp.float32)
  return {
      "word_emb": nrm((VOCAB, HID)),
      "pos_emb": nrm((SEQ, HID)),
      "emb_g": jnp.ones((1, HID), jnp.float32),
      "emb_b": jnp.zeros((1, HID), jnp.float32),
      "wq": nrm((LAYERS, HID, HID)), "bq": jnp.zeros((LAYERS, 1, HID), jnp.float32),
      "wk": nrm((LAYERS, HID, HID)), "bk": jnp.zeros((LAYERS, 1, HID), jnp.float32),
      "wv": nrm((LAYERS, HID, HID)), "bv": jnp.zeros((LAYERS, 1, HID), jnp.float32),
      "wo": nrm((LAYERS, HID, HID)), "bo": jnp.zeros((LAYERS, 1, HID), jnp.float32),
      "ln1_g": jnp.ones((LAYERS, 1, HID), jnp.float32),
      "ln1_b": jnp.zeros((LAYERS, 1, HID), jnp.float32),
      "w1": nrm((LAYERS, HID, FFN)), "bf1": jnp.zeros((LAYERS, 1, FFN), jnp.float32),
      "w2": nrm((LAYERS, FFN, HID)), "bf2": jnp.zeros((LAYERS, 1, HID), jnp.float32),
      "ln2_g": jnp.ones((LAYERS, 1, HID), jnp.float32),
      "ln2_b": jnp.zeros((LAYERS, 1, HID), jnp.float32),
      "wp": nrm((HID, HID)), "bp": jnp.zeros((1, HID), jnp.float32),
      "wc": nrm((HID, 1)), "bc": jnp.zeros((1, 1), jnp.float32),
  }


# ----------------------------------- main -----------------------------------
if __name__ == "__main__":
  key = jax.random.PRNGKey(0)
  k_param, k_ids = jax.random.split(key)
  params = init_params(k_param)

  # One-time host-side packing: per-head QKV/O split, scale fold, lane padding,
  # [CLS] selector — all weights in a single ~0.5 MiB VMEM slab.
  slab = pack_slab(params)
  emb = {k: params[k] for k in ("word_emb", "pos_emb", "emb_g", "emb_b")}

  input_ids = jax.random.randint(k_ids, (N, SEQ), 0, VOCAB, dtype=jnp.int32)
  attention_mask = jnp.ones((N, SEQ), jnp.float32)
  # pad the tail of a few candidate sequences to exercise the attention mask
  attention_mask = attention_mask.at[1, SEQ - 2:].set(0.0)
  attention_mask = attention_mask.at[5, SEQ - 3:].set(0.0)

  # training mode -> scalar listwise cross-entropy loss
  loss = cross_encoder_forward(slab, emb, input_ids, attention_mask, training=True)
  loss = jax.block_until_ready(loss)

  # eval mode -> raw logits (N, 1)
  logits = cross_encoder_forward(slab, emb, input_ids, attention_mask, training=False)
  logits = jax.block_until_ready(logits)

  # correctness check vs. pure-JAX reference
  ref_loss = reference_forward(params, input_ids, attention_mask, training=True)
  ref_logits = reference_forward(params, input_ids, attention_mask, training=False)
  np.testing.assert_allclose(np.asarray(loss), np.asarray(ref_loss),
                             rtol=1e-4, atol=1e-4)
  np.testing.assert_allclose(np.asarray(logits), np.asarray(ref_logits),
                             rtol=1e-4, atol=1e-4)

  print("KERNEL_OK")
</pallas_src>

<mosaic_0001>
module attributes {stable_mosaic.version = 11 : i64} {
  func.func @fused_kernel(%arg0: memref<64x32xf32, #tpu.memory_space<vmem>>, %arg1: memref<64x64xf32, #tpu.memory_space<vmem>>, %arg2: memref<936x128xf32, #tpu.memory_space<vmem>>, %arg3: memref<8x128xf32, #tpu.memory_space<vmem>>) attributes {dimension_semantics = [], scalar_prefetch = 0 : i64, scratch_operands = 0 : i64, tpu.core_type = #tpu.core_type<tc>} {
    %c0 = arith.constant 0 : index
    %c0_0 = arith.constant 0 : index
    %0 = vector.load %arg0[%c0, %c0_0] : memref<64x32xf32, #tpu.memory_space<vmem>>, vector<64x32xf32>
    %c0_1 = arith.constant 0 : index
    %c0_2 = arith.constant 0 : index
    %1 = vector.load %arg1[%c0_1, %c0_2] : memref<64x64xf32, #tpu.memory_space<vmem>>, vector<64x64xf32>
    %c0_3 = arith.constant 0 : index
    %c0_4 = arith.constant 0 : index
    %2 = vector.load %arg2[%c0_3, %c0_4] : memref<936x128xf32, #tpu.memory_space<vmem>>, vector<32x16xf32>
    %cst = arith.constant dense<0.000000e+00> : vector<64x16xf32>
    %3 = tpu.matmul %0, %2, %cst {dimension_numbers = #tpu.dot_dimension_numbers<[1], [0], [0], [1], [0, 0, 1, 1], [], []>} : vector<64x32xf32>, vector<32x16xf32>, vector<64x16xf32> -> vector<64x16xf32>
    %c112 = arith.constant 112 : index
    %c0_5 = arith.constant 0 : index
    %4 = vector.load %arg2[%c112, %c0_5] : memref<936x128xf32, #tpu.memory_space<vmem>>, vector<1x16xf32>
    %5 = vector.broadcast %4 : vector<1x16xf32> to vector<64x16xf32>
    %6 = arith.addf %3, %5 : vector<64x16xf32>
    %c32 = arith.constant 32 : index
    %c0_6 = arith.constant 0 : index
    %7 = vector.load %arg2[%c32, %c0_6] : memref<936x128xf32, #tpu.memory_space<vmem>>, vector<32x16xf32>
    %cst_7 = arith.constant dense<0.000000e+00> : vector<64x16xf32>
    %8 = tpu.matmul %0, %7, %cst_7 {dimension_numbers = #tpu.dot_dimension_numbers<[1], [0], [0], [1], [0, 0, 1, 1], [], []>} : vector<64x32xf32>, vector<32x16xf32>, vector<64x16xf32> -> vector<64x16xf32>
    %c120 = arith.constant 120 : index
    %c0_8 = arith.constant 0 : index
    %9 = vector.load %arg2[%c120, %c0_8] : memref<936x128xf32, #tpu.memory_space<vmem>>, vector<1x16xf32>
    %10 = vector.broadcast %9 : vector<1x16xf32> to vector<64x16xf32>
    %11 = arith.addf %8, %10 : vector<64x16xf32>
    %c64 = arith.constant 64 : index
    %c0_9 = arith.constant 0 : index
    %12 = vector.load %arg2[%c64, %c0_9] : memref<936x128xf32, #tpu.memory_space<vmem>>, vector<32x16xf32>
    %cst_10 = arith.constant dense<0.000000e+00> : vector<64x16xf32>
    %13 = tpu.matmul %0, %12, %cst_10 {dimension_numbers = #tpu.dot_dimension_numbers<[1], [0], [0], [1], [0, 0, 1, 1], [], []>} : vector<64x32xf32>, vector<32x16xf32>, vector<64x16xf32> -> vector<64x16xf32>
    %c128 = arith.constant 128 : index
    %c0_11 = arith.constant 0 : index
    %14 = vector.load %arg2[%c128, %c0_11] : memref<936x128xf32, #tpu.memory_space<vmem>>, vector<1x16xf32>
    %15 = vector.broadcast %14 : vector<1x16xf32> to vector<64x16xf32>
    %16 = arith.addf %13, %15 : vector<64x16xf32>
    %cst_12 = arith.constant dense<0.000000e+00> : vector<64x64xf32>
    %17 = tpu.matmul %6, %11, %cst_12 {dimension_numbers = #tpu.dot_dimension_numbers<[1], [1], [0], [0], [0, 0, 1, 0], [], []>} : vector<64x16xf32>, vector<64x16xf32>, vector<64x64xf32> -> vector<64x64xf32>
    %18 = arith.addf %17, %1 : vector<64x64xf32>
    %cst_13 = arith.constant dense<0xFF800000> : vector<64xf32>
    %19 = vector.multi_reduction <maximumf>, %18, %cst_13 [1] : vector<64x64xf32> to vector<64xf32>
    %20 = vector.shape_cast %19 : vector<64xf32> to vector<64x1xf32>
    %21 = vector.broadcast %20 : vector<64x1xf32> to vector<64x64xf32>
    %22 = arith.subf %18, %21 : vector<64x64xf32>
    %23 = math.exp %22 : vector<64x64xf32>
    %cst_14 = arith.constant dense<0.000000e+00> : vector<64xf32>
    %24 = vector.multi_reduction <add>, %23, %cst_14 [1] : vector<64x64xf32> to vector<64xf32>
    %25 = vector.shape_cast %24 : vector<64xf32> to vector<64x1xf32>
    %26 = tpu.reciprocal %25 : vector<64x1xf32> -> vector<64x1xf32>
    %27 = vector.broadcast %26 : vector<64x1xf32> to vector<64x64xf32>
    %28 = arith.mulf %23, %27 : vector<64x64xf32>
    %cst_15 = arith.constant dense<0.000000e+00> : vector<64x16xf32>
    %29 = tpu.matmul %28, %16, %cst_15 {dimension_numbers = #tpu.dot_dimension_numbers<[1], [0], [0], [1], [0, 0, 1, 1], [], []>} : vector<64x64xf32>, vector<64x16xf32>, vector<64x16xf32> -> vector<64x16xf32>
    %c96 = arith.constant 96 : index
    %c0_16 = arith.constant 0 : index
    %30 = vector.load %arg2[%c96, %c0_16] : memref<936x128xf32, #tpu.memory_space<vmem>>, vector<16x32xf32>
    %cst_17 = arith.constant dense<0.000000e+00> : vector<64x32xf32>
    %31 = tpu.matmul %29, %30, %cst_17 {dimension_numbers = #tpu.dot_dimension_numbers<[1], [0], [0], [1], [0, 0, 1, 1], [], []>} : vector<64x16xf32>, vector<16x32xf32>, vector<64x32xf32> -> vector<64x32xf32>
    %c136 = arith.constant 136 : index
    %c0_18 = arith.constant 0 : index
    %32 = vector.load %arg2[%c136, %c0_18] : memref<936x128xf32, #tpu.memory_space<vmem>>, vector<32x16xf32>
    %cst_19 = arith.constant dense<0.000000e+00> : vector<64x16xf32>
    %33 = tpu.matmul %0, %32, %cst_19 {dimension_numbers = #tpu.dot_dimension_numbers<[1], [0], [0], [1], [0, 0, 1, 1], [], []>} : vector<64x32xf32>, vector<32x16xf32>, vector<64x16xf32> -> vector<64x16xf32>
    %c248 = arith.constant 248 : index
    %c0_20 = arith.constant 0 : index
    %34 = vector.load %arg2[%c248, %c0_20] : memref<936x128xf32, #tpu.memory_space<vmem>>, vector<1x16xf32>
    %35 = vector.broadcast %34 : vector<1x16xf32> to vector<64x16xf32>
    %36 = arith.addf %33, %35 : vector<64x16xf32>
    %c168 = arith.constant 168 : index
    %c0_21 = arith.constant 0 : index
    %37 = vector.load %arg2[%c168, %c0_21] : memref<936x128xf32, #tpu.memory_space<vmem>>, vector<32x16xf32>
    %cst_22 = arith.constant dense<0.000000e+00> : vector<64x16xf32>
    %38 = tpu.matmul %0, %37, %cst_22 {dimension_numbers = #tpu.dot_dimension_numbers<[1], [0], [0], [1], [0, 0, 1, 1], [], []>} : vector<64x32xf32>, vector<32x16xf32>, vector<64x16xf32> -> vector<64x16xf32>
    %c256 = arith.constant 256 : index
    %c0_23 = arith.constant 0 : index
    %39 = vector.load %arg2[%c256, %c0_23] : memref<936x128xf32, #tpu.memory_space<vmem>>, vector<1x16xf32>
    %40 = vector.broadcast %39 : vector<1x16xf32> to vector<64x16xf32>
    %41 = arith.addf %38, %40 : vector<64x16xf32>
    %c200 = arith.constant 200 : index
    %c0_24 = arith.constant 0 : index
    %42 = vector.load %arg2[%c200, %c0_24] : memref<936x128xf32, #tpu.memory_space<vmem>>, vector<32x16xf32>
    %cst_25 = arith.constant dense<0.000000e+00> : vector<64x16xf32>
    %43 = tpu.matmul %0, %42, %cst_25 {dimension_numbers = #tpu.dot_dimension_numbers<[1], [0], [0], [1], [0, 0, 1, 1], [], []>} : vector<64x32xf32>, vector<32x16xf32>, vector<64x16xf32> -> vector<64x16xf32>
    %c264 = arith.constant 264 : index
    %c0_26 = arith.constant 0 : index
    %44 = vector.load %arg2[%c264, %c0_26] : memref<936x128xf32, #tpu.memory_space<vmem>>, vector<1x16xf32>
    %45 = vector.broadcast %44 : vector<1x16xf32> to vector<64x16xf32>
    %46 = arith.addf %43, %45 : vector<64x16xf32>
    %cst_27 = arith.constant dense<0.000000e+00> : vector<64x64xf32>
    %47 = tpu.matmul %36, %41, %cst_27 {dimension_numbers = #tpu.dot_dimension_numbers<[1], [1], [0], [0], [0, 0, 1, 0], [], []>} : vector<64x16xf32>, vector<64x16xf32>, vector<64x64xf32> -> vector<64x64xf32>
    %48 = arith.addf %47, %1 : vector<64x64xf32>
    %cst_28 = arith.constant dense<0xFF800000> : vector<64xf32>
    %49 = vector.multi_reduction <maximumf>, %48, %cst_28 [1] : vector<64x64xf32> to vector<64xf32>
    %50 = vector.shape_cast %49 : vector<64xf32> to vector<64x1xf32>
    %51 = vector.broadcast %50 : vector<64x1xf32> to vector<64x64xf32>
    %52 = arith.subf %48, %51 : vector<64x64xf32>
    %53 = math.exp %52 : vector<64x64xf32>
    %cst_29 = arith.constant dense<0.000000e+00> : vector<64xf32>
    %54 = vector.multi_reduction <add>, %53, %cst_29 [1] : vector<64x64xf32> to vector<64xf32>
    %55 = vector.shape_cast %54 : vector<64xf32> to vector<64x1xf32>
    %56 = tpu.reciprocal %55 : vector<64x1xf32> -> vector<64x1xf32>
    %57 = vector.broadcast %56 : vector<64x1xf32> to vector<64x64xf32>
    %58 = arith.mulf %53, %57 : vector<64x64xf32>
    %cst_30 = arith.constant dense<0.000000e+00> : vector<64x16xf32>
    %59 = tpu.matmul %58, %46, %cst_30 {dimension_numbers = #tpu.dot_dimension_numbers<[1], [0], [0], [1], [0, 0, 1, 1], [], []>} : vector<64x64xf32>, vector<64x16xf32>, vector<64x16xf32> -> vector<64x16xf32>
    %c232 = arith.constant 232 : index
    %c0_31 = arith.constant 0 : index
    %60 = vector.load %arg2[%c232, %c0_31] : memref<936x128xf32, #tpu.memory_space<vmem>>, vector<16x32xf32>
    %cst_32 = arith.constant dense<0.000000e+00> : vector<64x32xf32>
    %61 = tpu.matmul %59, %60, %cst_32 {dimension_numbers = #tpu.dot_dimension_numbers<[1], [0], [0], [1], [0, 0, 1, 1], [], []>} : vector<64x16xf32>, vector<16x32xf32>, vector<64x32xf32> -> vector<64x32xf32>
    %62 = arith.addf %31, %61 : vector<64x32xf32>
    %c272 = arith.constant 272 : index
    %c0_33 = arith.constant 0 : index
    %63 = vector.load %arg2[%c272, %c0_33] : memref<936x128xf32, #tpu.memory_space<vmem>>, vector<1x32xf32>
    %64 = vector.broadcast %63 : vector<1x32xf32> to vector<64x32xf32>
    %65 = arith.addf %62, %64 : vector<64x32xf32>
    %66 = arith.addf %0, %65 : vector<64x32xf32>
    %c280 = arith.constant 280 : index
    %c0_34 = arith.constant 0 : index
    %67 = vector.load %arg2[%c280, %c0_34] : memref<936x128xf32, #tpu.memory_space<vmem>>, vector<1x32xf32>
    %c288 = arith.constant 288 : index
    %c0_35 = arith.constant 0 : index
    %68 = vector.load %arg2[%c288, %c0_35] : memref<936x128xf32, #tpu.memory_space<vmem>>, vector<1x32xf32>
    %cst_36 = arith.constant dense<0.000000e+00> : vector<64xf32>
    %69 = vector.multi_reduction <add>, %66, %cst_36 [1] : vector<64x32xf32> to vector<64xf32>
    %70 = vector.shape_cast %69 : vector<64xf32> to vector<64x1xf32>
    %cst_37 = arith.constant 3.200000e+01 : f32
    %71 = vector.broadcast %cst_37 : f32 to vector<64x1xf32>
    %72 = arith.divf %70, %71 : vector<64x1xf32>
    %73 = vector.broadcast %72 : vector<64x1xf32> to vector<64x32xf32>
    %74 = arith.subf %66, %73 : vector<64x32xf32>
    %75 = vector.broadcast %72 : vector<64x1xf32> to vector<64x32xf32>
    %76 = arith.subf %66, %75 : vector<64x32xf32>
    %77 = arith.mulf %74, %76 : vector<64x32xf32>
    %cst_38 = arith.constant dense<0.000000e+00> : vector<64xf32>
    %78 = vector.multi_reduction <add>, %77, %cst_38 [1] : vector<64x32xf32> to vector<64xf32>
    %79 = vector.shape_cast %78 : vector<64xf32> to vector<64x1xf32>
    %cst_39 = arith.constant 3.200000e+01 : f32
    %80 = vector.broadcast %cst_39 : f32 to vector<64x1xf32>
    %81 = arith.divf %79, %80 : vector<64x1xf32>
    %82 = vector.broadcast %72 : vector<64x1xf32> to vector<64x32xf32>
    %83 = arith.subf %66, %82 : vector<64x32xf32>
    %cst_40 = arith.constant 9.99999996E-13 : f32
    %84 = vector.broadcast %cst_40 : f32 to vector<64x1xf32>
    %85 = arith.addf %81, %84 : vector<64x1xf32>
    %86 = math.rsqrt %85 : vector<64x1xf32>
    %87 = vector.broadcast %86 : vector<64x1xf32> to vector<64x32xf32>
    %88 = arith.mulf %83, %87 : vector<64x32xf32>
    %89 = vector.broadcast %67 : vector<1x32xf32> to vector<64x32xf32>
    %90 = arith.mulf %88, %89 : vector<64x32xf32>
    %91 = vector.broadcast %68 : vector<1x32xf32> to vector<64x32xf32>
    %92 = arith.addf %90, %91 : vector<64x32xf32>
    %c296 = arith.constant 296 : index
    %c0_41 = arith.constant 0 : index
    %93 = vector.load %arg2[%c296, %c0_41] : memref<936x128xf32, #tpu.memory_space<vmem>>, vector<32x64xf32>
    %cst_42 = arith.constant dense<0.000000e+00> : vector<64x64xf32>
    %94 = tpu.matmul %92, %93, %cst_42 {dimension_numbers = #tpu.dot_dimension_numbers<[1], [0], [0], [1], [0, 0, 1, 1], [], []>} : vector<64x32xf32>, vector<32x64xf32>, vector<64x64xf32> -> vector<64x64xf32>
    %c328 = arith.constant 328 : index
    %c0_43 = arith.constant 0 : index
    %95 = vector.load %arg2[%c328, %c0_43] : memref<936x128xf32, #tpu.memory_space<vmem>>, vector<1x64xf32>
    %96 = vector.broadcast %95 : vector<1x64xf32> to vector<64x64xf32>
    %97 = arith.addf %94, %96 : vector<64x64xf32>
    %cst_44 = arith.constant 5.000000e-01 : f32
    %98 = vector.broadcast %cst_44 : f32 to vector<64x64xf32>
    %99 = arith.mulf %98, %97 : vector<64x64xf32>
    %cst_45 = arith.constant 4.471500e-02 : f32
    %100 = vector.broadcast %cst_45 : f32 to vector<64x64xf32>
    %101 = arith.mulf %100, %97 : vector<64x64xf32>
    %102 = arith.mulf %101, %97 : vector<64x64xf32>
    %103 = arith.mulf %102, %97 : vector<64x64xf32>
    %104 = arith.addf %97, %103 : vector<64x64xf32>
    %cst_46 = arith.constant 0.797884583 : f32
    %105 = vector.broadcast %cst_46 : f32 to vector<64x64xf32>
    %106 = arith.mulf %105, %104 : vector<64x64xf32>
    %107 = math.tanh %106 : vector<64x64xf32>
    %cst_47 = arith.constant 1.000000e+00 : f32
    %108 = vector.broadcast %cst_47 : f32 to vector<64x64xf32>
    %109 = arith.addf %108, %107 : vector<64x64xf32>
    %110 = arith.mulf %99, %109 : vector<64x64xf32>
    %c336 = arith.constant 336 : index
    %c0_48 = arith.constant 0 : index
    %111 = vector.load %arg2[%c336, %c0_48] : memref<936x128xf32, #tpu.memory_space<vmem>>, vector<64x32xf32>
    %cst_49 = arith.constant dense<0.000000e+00> : vector<64x32xf32>
    %112 = tpu.matmul %110, %111, %cst_49 {dimension_numbers = #tpu.dot_dimension_numbers<[1], [0], [0], [1], [0, 0, 1, 1], [], []>} : vector<64x64xf32>, vector<64x32xf32>, vector<64x32xf32> -> vector<64x32xf32>
    %c400 = arith.constant 400 : index
    %c0_50 = arith.constant 0 : index
    %113 = vector.load %arg2[%c400, %c0_50] : memref<936x128xf32, #tpu.memory_space<vmem>>, vector<1x32xf32>
    %114 = vector.broadcast %113 : vector<1x32xf32> to vector<64x32xf32>
    %115 = arith.addf %112, %114 : vector<64x32xf32>
    %116 = arith.addf %92, %115 : vector<64x32xf32>
    %c408 = arith.constant 408 : index
    %c0_51 = arith.constant 0 : index
    %117 = vector.load %arg2[%c408, %c0_51] : memref<936x128xf32, #tpu.memory_space<vmem>>, vector<1x32xf32>
    %c416 = arith.constant 416 : index
    %c0_52 = arith.constant 0 : index
    %118 = vector.load %arg2[%c416, %c0_52] : memref<936x128xf32, #tpu.memory_space<vmem>>, vector<1x32xf32>
    %cst_53 = arith.constant dense<0.000000e+00> : vector<64xf32>
    %119 = vector.multi_reduction <add>, %116, %cst_53 [1] : vector<64x32xf32> to vector<64xf32>
    %120 = vector.shape_cast %119 : vector<64xf32> to vector<64x1xf32>
    %cst_54 = arith.constant 3.200000e+01 : f32
    %121 = vector.broadcast %cst_54 : f32 to vector<64x1xf32>
    %122 = arith.divf %120, %121 : vector<64x1xf32>
    %123 = vector.broadcast %122 : vector<64x1xf32> to vector<64x32xf32>
    %124 = arith.subf %116, %123 : vector<64x32xf32>
    %125 = vector.broadcast %122 : vector<64x1xf32> to vector<64x32xf32>
    %126 = arith.subf %116, %125 : vector<64x32xf32>
    %127 = arith.mulf %124, %126 : vector<64x32xf32>
    %cst_55 = arith.constant dense<0.000000e+00> : vector<64xf32>
    %128 = vector.multi_reduction <add>, %127, %cst_55 [1] : vector<64x32xf32> to vector<64xf32>
    %129 = vector.shape_cast %128 : vector<64xf32> to vector<64x1xf32>
    %cst_56 = arith.constant 3.200000e+01 : f32
    %130 = vector.broadcast %cst_56 : f32 to vector<64x1xf32>
    %131 = arith.divf %129, %130 : vector<64x1xf32>
    %132 = vector.broadcast %122 : vector<64x1xf32> to vector<64x32xf32>
    %133 = arith.subf %116, %132 : vector<64x32xf32>
    %cst_57 = arith.constant 9.99999996E-13 : f32
    %134 = vector.broadcast %cst_57 : f32 to vector<64x1xf32>
    %135 = arith.addf %131, %134 : vector<64x1xf32>
    %136 = math.rsqrt %135 : vector<64x1xf32>
    %137 = vector.broadcast %136 : vector<64x1xf32> to vector<64x32xf32>
    %138 = arith.mulf %133, %137 : vector<64x32xf32>
    %139 = vector.broadcast %117 : vector<1x32xf32> to vector<64x32xf32>
    %140 = arith.mulf %138, %139 : vector<64x32xf32>
    %141 = vector.broadcast %118 : vector<1x32xf32> to vector<64x32xf32>
    %142 = arith.addf %140, %141 : vector<64x32xf32>
    %c424 = arith.constant 424 : index
    %c0_58 = arith.constant 0 : index
    %143 = vector.load %arg2[%c424, %c0_58] : memref<936x128xf32, #tpu.memory_space<vmem>>, vector<32x16xf32>
    %cst_59 = arith.constant dense<0.000000e+00> : vector<64x16xf32>
    %144 = tpu.matmul %142, %143, %cst_59 {dimension_numbers = #tpu.dot_dimension_numbers<[1], [0], [0], [1], [0, 0, 1, 1], [], []>} : vector<64x32xf32>, vector<32x16xf32>, vector<64x16xf32> -> vector<64x16xf32>
    %c536 = arith.constant 536 : index
    %c0_60 = arith.constant 0 : index
    %145 = vector.load %arg2[%c536, %c0_60] : memref<936x128xf32, #tpu.memory_space<vmem>>, vector<1x16xf32>
    %146 = vector.broadcast %145 : vector<1x16xf32> to vector<64x16xf32>
    %147 = arith.addf %144, %146 : vector<64x16xf32>
    %c456 = arith.constant 456 : index
    %c0_61 = arith.constant 0 : index
    %148 = vector.load %arg2[%c456, %c0_61] : memref<936x128xf32, #tpu.memory_space<vmem>>, vector<32x16xf32>
    %cst_62 = arith.constant dense<0.000000e+00> : vector<64x16xf32>
    %149 = tpu.matmul %142, %148, %cst_62 {dimension_numbers = #tpu.dot_dimension_numbers<[1], [0], [0], [1], [0, 0, 1, 1], [], []>} : vector<64x32xf32>, vector<32x16xf32>, vector<64x16xf32> -> vector<64x16xf32>
    %c544 = arith.constant 544 : index
    %c0_63 = arith.constant 0 : index
    %150 = vector.load %arg2[%c544, %c0_63] : memref<936x128xf32, #tpu.memory_space<vmem>>, vector<1x16xf32>
    %151 = vector.broadcast %150 : vector<1x16xf32> to vector<64x16xf32>
    %152 = arith.addf %149, %151 : vector<64x16xf32>
    %c488 = arith.constant 488 : index
    %c0_64 = arith.constant 0 : index
    %153 = vector.load %arg2[%c488, %c0_64] : memref<936x128xf32, #tpu.memory_space<vmem>>, vector<32x16xf32>
    %cst_65 = arith.constant dense<0.000000e+00> : vector<64x16xf32>
    %154 = tpu.matmul %142, %153, %cst_65 {dimension_numbers = #tpu.dot_dimension_numbers<[1], [0], [0], [1], [0, 0, 1, 1], [], []>} : vector<64x32xf32>, vector<32x16xf32>, vector<64x16xf32> -> vector<64x16xf32>
    %c552 = arith.constant 552 : index
    %c0_66 = arith.constant 0 : index
    %155 = vector.load %arg2[%c552, %c0_66] : memref<936x128xf32, #tpu.memory_space<vmem>>, vector<1x16xf32>
    %156 = vector.broadcast %155 : vector<1x16xf32> to vector<64x16xf32>
    %157 = arith.addf %154, %156 : vector<64x16xf32>
    %cst_67 = arith.constant dense<0.000000e+00> : vector<64x64xf32>
    %158 = tpu.matmul %147, %152, %cst_67 {dimension_numbers = #tpu.dot_dimension_numbers<[1], [1], [0], [0], [0, 0, 1, 0], [], []>} : vector<64x16xf32>, vector<64x16xf32>, vector<64x64xf32> -> vector<64x64xf32>
    %159 = arith.addf %158, %1 : vector<64x64xf32>
    %cst_68 = arith.constant dense<0xFF800000> : vector<64xf32>
    %160 = vector.multi_reduction <maximumf>, %159, %cst_68 [1] : vector<64x64xf32> to vector<64xf32>
    %161 = vector.shape_cast %160 : vector<64xf32> to vector<64x1xf32>
    %162 = vector.broadcast %161 : vector<64x1xf32> to vector<64x64xf32>
    %163 = arith.subf %159, %162 : vector<64x64xf32>
    %164 = math.exp %163 : vector<64x64xf32>
    %cst_69 = arith.constant dense<0.000000e+00> : vector<64xf32>
    %165 = vector.multi_reduction <add>, %164, %cst_69 [1] : vector<64x64xf32> to vector<64xf32>
    %166 = vector.shape_cast %165 : vector<64xf32> to vector<64x1xf32>
    %167 = tpu.reciprocal %166 : vector<64x1xf32> -> vector<64x1xf32>
    %168 = vector.broadcast %167 : vector<64x1xf32> to vector<64x64xf32>
    %169 = arith.mulf %164, %168 : vector<64x64xf32>
    %cst_70 = arith.constant dense<0.000000e+00> : vector<64x16xf32>
    %170 = tpu.matmul %169, %157, %cst_70 {dimension_numbers = #tpu.dot_dimension_numbers<[1], [0], [0], [1], [0, 0, 1, 1], [], []>} : vector<64x64xf32>, vector<64x16xf32>, vector<64x16xf32> -> vector<64x16xf32>
    %c520 = arith.constant 520 : index
    %c0_71 = arith.constant 0 : index
    %171 = vector.load %arg2[%c520, %c0_71] : memref<936x128xf32, #tpu.memory_space<vmem>>, vector<16x32xf32>
    %cst_72 = arith.constant dense<0.000000e+00> : vector<64x32xf32>
    %172 = tpu.matmul %170, %171, %cst_72 {dimension_numbers = #tpu.dot_dimension_numbers<[1], [0], [0], [1], [0, 0, 1, 1], [], []>} : vector<64x16xf32>, vector<16x32xf32>, vector<64x32xf32> -> vector<64x32xf32>
    %c560 = arith.constant 560 : index
    %c0_73 = arith.constant 0 : index
    %173 = vector.load %arg2[%c560, %c0_73] : memref<936x128xf32, #tpu.memory_space<vmem>>, vector<32x16xf32>
    %cst_74 = arith.constant dense<0.000000e+00> : vector<64x16xf32>
    %174 = tpu.matmul %142, %173, %cst_74 {dimension_numbers = #tpu.dot_dimension_numbers<[1], [0], [0], [1], [0, 0, 1, 1], [], []>} : vector<64x32xf32>, vector<32x16xf32>, vector<64x16xf32> -> vector<64x16xf32>
    %c672 = arith.constant 672 : index
    %c0_75 = arith.constant 0 : index
    %175 = vector.load %arg2[%c672, %c0_75] : memref<936x128xf32, #tpu.memory_space<vmem>>, vector<1x16xf32>
    %176 = vector.broadcast %175 : vector<1x16xf32> to vector<64x16xf32>
    %177 = arith.addf %174, %176 : vector<64x16xf32>
    %c592 = arith.constant 592 : index
    %c0_76 = arith.constant 0 : index
    %178 = vector.load %arg2[%c592, %c0_76] : memref<936x128xf32, #tpu.memory_space<vmem>>, vector<32x16xf32>
    %cst_77 = arith.constant dense<0.000000e+00> : vector<64x16xf32>
    %179 = tpu.matmul %142, %178, %cst_77 {dimension_numbers = #tpu.dot_dimension_numbers<[1], [0], [0], [1], [0, 0, 1, 1], [], []>} : vector<64x32xf32>, vector<32x16xf32>, vector<64x16xf32> -> vector<64x16xf32>
    %c680 = arith.constant 680 : index
    %c0_78 = arith.constant 0 : index
    %180 = vector.load %arg2[%c680, %c0_78] : memref<936x128xf32, #tpu.memory_space<vmem>>, vector<1x16xf32>
    %181 = vector.broadcast %180 : vector<1x16xf32> to vector<64x16xf32>
    %182 = arith.addf %179, %181 : vector<64x16xf32>
    %c624 = arith.constant 624 : index
    %c0_79 = arith.constant 0 : index
    %183 = vector.load %arg2[%c624, %c0_79] : memref<936x128xf32, #tpu.memory_space<vmem>>, vector<32x16xf32>
    %cst_80 = arith.constant dense<0.000000e+00> : vector<64x16xf32>
    %184 = tpu.matmul %142, %183, %cst_80 {dimension_numbers = #tpu.dot_dimension_numbers<[1], [0], [0], [1], [0, 0, 1, 1], [], []>} : vector<64x32xf32>, vector<32x16xf32>, vector<64x16xf32> -> vector<64x16xf32>
    %c688 = arith.constant 688 : index
    %c0_81 = arith.constant 0 : index
    %185 = vector.load %arg2[%c688, %c0_81] : memref<936x128xf32, #tpu.memory_space<vmem>>, vector<1x16xf32>
    %186 = vector.broadcast %185 : vector<1x16xf32> to vector<64x16xf32>
    %187 = arith.addf %184, %186 : vector<64x16xf32>
    %cst_82 = arith.constant dense<0.000000e+00> : vector<64x64xf32>
    %188 = tpu.matmul %177, %182, %cst_82 {dimension_numbers = #tpu.dot_dimension_numbers<[1], [1], [0], [0], [0, 0, 1, 0], [], []>} : vector<64x16xf32>, vector<64x16xf32>, vector<64x64xf32> -> vector<64x64xf32>
    %189 = arith.addf %188, %1 : vector<64x64xf32>
    %cst_83 = arith.constant dense<0xFF800000> : vector<64xf32>
    %190 = vector.multi_reduction <maximumf>, %189, %cst_83 [1] : vector<64x64xf32> to vector<64xf32>
    %191 = vector.shape_cast %190 : vector<64xf32> to vector<64x1xf32>
    %192 = vector.broadcast %191 : vector<64x1xf32> to vector<64x64xf32>
    %193 = arith.subf %189, %192 : vector<64x64xf32>
    %194 = math.exp %193 : vector<64x64xf32>
    %cst_84 = arith.constant dense<0.000000e+00> : vector<64xf32>
    %195 = vector.multi_reduction <add>, %194, %cst_84 [1] : vector<64x64xf32> to vector<64xf32>
    %196 = vector.shape_cast %195 : vector<64xf32> to vector<64x1xf32>
    %197 = tpu.reciprocal %196 : vector<64x1xf32> -> vector<64x1xf32>
    %198 = vector.broadcast %197 : vector<64x1xf32> to vector<64x64xf32>
    %199 = arith.mulf %194, %198 : vector<64x64xf32>
    %cst_85 = arith.constant dense<0.000000e+00> : vector<64x16xf32>
    %200 = tpu.matmul %199, %187, %cst_85 {dimension_numbers = #tpu.dot_dimension_numbers<[1], [0], [0], [1], [0, 0, 1, 1], [], []>} : vector<64x64xf32>, vector<64x16xf32>, vector<64x16xf32> -> vector<64x16xf32>
    %c656 = arith.constant 656 : index
    %c0_86 = arith.constant 0 : index
    %201 = vector.load %arg2[%c656, %c0_86] : memref<936x128xf32, #tpu.memory_space<vmem>>, vector<16x32xf32>
    %cst_87 = arith.constant dense<0.000000e+00> : vector<64x32xf32>
    %202 = tpu.matmul %200, %201, %cst_87 {dimension_numbers = #tpu.dot_dimension_numbers<[1], [0], [0], [1], [0, 0, 1, 1], [], []>} : vector<64x16xf32>, vector<16x32xf32>, vector<64x32xf32> -> vector<64x32xf32>
    %203 = arith.addf %172, %202 : vector<64x32xf32>
    %c696 = arith.constant 696 : index
    %c0_88 = arith.constant 0 : index
    %204 = vector.load %arg2[%c696, %c0_88] : memref<936x128xf32, #tpu.memory_space<vmem>>, vector<1x32xf32>
    %205 = vector.broadcast %204 : vector<1x32xf32> to vector<64x32xf32>
    %206 = arith.addf %203, %205 : vector<64x32xf32>
    %207 = arith.addf %142, %206 : vector<64x32xf32>
    %c704 = arith.constant 704 : index
    %c0_89 = arith.constant 0 : index
    %208 = vector.load %arg2[%c704, %c0_89] : memref<936x128xf32, #tpu.memory_space<vmem>>, vector<1x32xf32>
    %c712 = arith.constant 712 : index
    %c0_90 = arith.constant 0 : index
    %209 = vector.load %arg2[%c712, %c0_90] : memref<936x128xf32, #tpu.memory_space<vmem>>, vector<1x32xf32>
    %cst_91 = arith.constant dense<0.000000e+00> : vector<64xf32>
    %210 = vector.multi_reduction <add>, %207, %cst_91 [1] : vector<64x32xf32> to vector<64xf32>
    %211 = vector.shape_cast %210 : vector<64xf32> to vector<64x1xf32>
    %cst_92 = arith.constant 3.200000e+01 : f32
    %212 = vector.broadcast %cst_92 : f32 to vector<64x1xf32>
    %213 = arith.divf %211, %212 : vector<64x1xf32>
    %214 = vector.broadcast %213 : vector<64x1xf32> to vector<64x32xf32>
    %215 = arith.subf %207, %214 : vector<64x32xf32>
    %216 = vector.broadcast %213 : vector<64x1xf32> to vector<64x32xf32>
    %217 = arith.subf %207, %216 : vector<64x32xf32>
    %218 = arith.mulf %215, %217 : vector<64x32xf32>
    %cst_93 = arith.constant dense<0.000000e+00> : vector<64xf32>
    %219 = vector.multi_reduction <add>, %218, %cst_93 [1] : vector<64x32xf32> to vector<64xf32>
    %220 = vector.shape_cast %219 : vector<64xf32> to vector<64x1xf32>
    %cst_94 = arith.constant 3.200000e+01 : f32
    %221 = vector.broadcast %cst_94 : f32 to vector<64x1xf32>
    %222 = arith.divf %220, %221 : vector<64x1xf32>
    %223 = vector.broadcast %213 : vector<64x1xf32> to vector<64x32xf32>
    %224 = arith.subf %207, %223 : vector<64x32xf32>
    %cst_95 = arith.constant 9.99999996E-13 : f32
    %225 = vector.broadcast %cst_95 : f32 to vector<64x1xf32>
    %226 = arith.addf %222, %225 : vector<64x1xf32>
    %227 = math.rsqrt %226 : vector<64x1xf32>
    %228 = vector.broadcast %227 : vector<64x1xf32> to vector<64x32xf32>
    %229 = arith.mulf %224, %228 : vector<64x32xf32>
    %230 = vector.broadcast %208 : vector<1x32xf32> to vector<64x32xf32>
    %231 = arith.mulf %229, %230 : vector<64x32xf32>
    %232 = vector.broadcast %209 : vector<1x32xf32> to vector<64x32xf32>
    %233 = arith.addf %231, %232 : vector<64x32xf32>
    %c720 = arith.constant 720 : index
    %c0_96 = arith.constant 0 : index
    %234 = vector.load %arg2[%c720, %c0_96] : memref<936x128xf32, #tpu.memory_space<vmem>>, vector<32x64xf32>
    %cst_97 = arith.constant dense<0.000000e+00> : vector<64x64xf32>
    %235 = tpu.matmul %233, %234, %cst_97 {dimension_numbers = #tpu.dot_dimension_numbers<[1], [0], [0], [1], [0, 0, 1, 1], [], []>} : vector<64x32xf32>, vector<32x64xf32>, vector<64x64xf32> -> vector<64x64xf32>
    %c752 = arith.constant 752 : index
    %c0_98 = arith.constant 0 : index
    %236 = vector.load %arg2[%c752, %c0_98] : memref<936x128xf32, #tpu.memory_space<vmem>>, vector<1x64xf32>
    %237 = vector.broadcast %236 : vector<1x64xf32> to vector<64x64xf32>
    %238 = arith.addf %235, %237 : vector<64x64xf32>
    %cst_99 = arith.constant 5.000000e-01 : f32
    %239 = vector.broadcast %cst_99 : f32 to vector<64x64xf32>
    %240 = arith.mulf %239, %238 : vector<64x64xf32>
    %cst_100 = arith.constant 4.471500e-02 : f32
    %241 = vector.broadcast %cst_100 : f32 to vector<64x64xf32>
    %242 = arith.mulf %241, %238 : vector<64x64xf32>
    %243 = arith.mulf %242, %238 : vector<64x64xf32>
    %244 = arith.mulf %243, %238 : vector<64x64xf32>
    %245 = arith.addf %238, %244 : vector<64x64xf32>
    %cst_101 = arith.constant 0.797884583 : f32
    %246 = vector.broadcast %cst_101 : f32 to vector<64x64xf32>
    %247 = arith.mulf %246, %245 : vector<64x64xf32>
    %248 = math.tanh %247 : vector<64x64xf32>
    %cst_102 = arith.constant 1.000000e+00 : f32
    %249 = vector.broadcast %cst_102 : f32 to vector<64x64xf32>
    %250 = arith.addf %249, %248 : vector<64x64xf32>
    %251 = arith.mulf %240, %250 : vector<64x64xf32>
    %c760 = arith.constant 760 : index
    %c0_103 = arith.constant 0 : index
    %252 = vector.load %arg2[%c760, %c0_103] : memref<936x128xf32, #tpu.memory_space<vmem>>, vector<64x32xf32>
    %cst_104 = arith.constant dense<0.000000e+00> : vector<64x32xf32>
    %253 = tpu.matmul %251, %252, %cst_104 {dimension_numbers = #tpu.dot_dimension_numbers<[1], [0], [0], [1], [0, 0, 1, 1], [], []>} : vector<64x64xf32>, vector<64x32xf32>, vector<64x32xf32> -> vector<64x32xf32>
    %c824 = arith.constant 824 : index
    %c0_105 = arith.constant 0 : index
    %254 = vector.load %arg2[%c824, %c0_105] : memref<936x128xf32, #tpu.memory_space<vmem>>, vector<1x32xf32>
    %255 = vector.broadcast %254 : vector<1x32xf32> to vector<64x32xf32>
    %256 = arith.addf %253, %255 : vector<64x32xf32>
    %257 = arith.addf %233, %256 : vector<64x32xf32>
    %c832 = arith.constant 832 : index
    %c0_106 = arith.constant 0 : index
    %258 = vector.load %arg2[%c832, %c0_106] : memref<936x128xf32, #tpu.memory_space<vmem>>, vector<1x32xf32>
    %c840 = arith.constant 840 : index
    %c0_107 = arith.constant 0 : index
    %259 = vector.load %arg2[%c840, %c0_107] : memref<936x128xf32, #tpu.memory_space<vmem>>, vector<1x32xf32>
    %cst_108 = arith.constant dense<0.000000e+00> : vector<64xf32>
    %260 = vector.multi_reduction <add>, %257, %cst_108 [1] : vector<64x32xf32> to vector<64xf32>
    %261 = vector.shape_cast %260 : vector<64xf32> to vector<64x1xf32>
    %cst_109 = arith.constant 3.200000e+01 : f32
    %262 = vector.broadcast %cst_109 : f32 to vector<64x1xf32>
    %263 = arith.divf %261, %262 : vector<64x1xf32>
    %264 = vector.broadcast %263 : vector<64x1xf32> to vector<64x32xf32>
    %265 = arith.subf %257, %264 : vector<64x32xf32>
    %266 = vector.broadcast %263 : vector<64x1xf32> to vector<64x32xf32>
    %267 = arith.subf %257, %266 : vector<64x32xf32>
    %268 = arith.mulf %265, %267 : vector<64x32xf32>
    %cst_110 = arith.constant dense<0.000000e+00> : vector<64xf32>
    %269 = vector.multi_reduction <add>, %268, %cst_110 [1] : vector<64x32xf32> to vector<64xf32>
    %270 = vector.shape_cast %269 : vector<64xf32> to vector<64x1xf32>
    %cst_111 = arith.constant 3.200000e+01 : f32
    %271 = vector.broadcast %cst_111 : f32 to vector<64x1xf32>
    %272 = arith.divf %270, %271 : vector<64x1xf32>
    %273 = vector.broadcast %263 : vector<64x1xf32> to vector<64x32xf32>
    %274 = arith.subf %257, %273 : vector<64x32xf32>
    %cst_112 = arith.constant 9.99999996E-13 : f32
    %275 = vector.broadcast %cst_112 : f32 to vector<64x1xf32>
    %276 = arith.addf %272, %275 : vector<64x1xf32>
    %277 = math.rsqrt %276 : vector<64x1xf32>
    %278 = vector.broadcast %277 : vector<64x1xf32> to vector<64x32xf32>
    %279 = arith.mulf %274, %278 : vector<64x32xf32>
    %280 = vector.broadcast %258 : vector<1x32xf32> to vector<64x32xf32>
    %281 = arith.mulf %279, %280 : vector<64x32xf32>
    %282 = vector.broadcast %259 : vector<1x32xf32> to vector<64x32xf32>
    %283 = arith.addf %281, %282 : vector<64x32xf32>
    %c928 = arith.constant 928 : index
    %c0_113 = arith.constant 0 : index
    %284 = vector.load %arg2[%c928, %c0_113] : memref<936x128xf32, #tpu.memory_space<vmem>>, vector<8x64xf32>
    %cst_114 = arith.constant dense<0.000000e+00> : vector<8x32xf32>
    %285 = tpu.matmul %284, %283, %cst_114 {dimension_numbers = #tpu.dot_dimension_numbers<[1], [0], [0], [1], [0, 0, 1, 1], [], []>} : vector<8x64xf32>, vector<64x32xf32>, vector<8x32xf32> -> vector<8x32xf32>
    %c848 = arith.constant 848 : index
    %c0_115 = arith.constant 0 : index
    %286 = vector.load %arg2[%c848, %c0_115] : memref<936x128xf32, #tpu.memory_space<vmem>>, vector<32x32xf32>
    %cst_116 = arith.constant dense<0.000000e+00> : vector<8x32xf32>
    %287 = tpu.matmul %285, %286, %cst_116 {dimension_numbers = #tpu.dot_dimension_numbers<[1], [0], [0], [1], [0, 0, 1, 1], [], []>} : vector<8x32xf32>, vector<32x32xf32>, vector<8x32xf32> -> vector<8x32xf32>
    %c880 = arith.constant 880 : index
    %c0_117 = arith.constant 0 : index
    %288 = vector.load %arg2[%c880, %c0_117] : memref<936x128xf32, #tpu.memory_space<vmem>>, vector<1x32xf32>
    %289 = vector.broadcast %288 : vector<1x32xf32> to vector<8x32xf32>
    %290 = arith.addf %287, %289 : vector<8x32xf32>
    %291 = math.tanh %290 : vector<8x32xf32>
    %c888 = arith.constant 888 : index
    %c0_118 = arith.constant 0 : index
    %292 = vector.load %arg2[%c888, %c0_118] : memref<936x128xf32, #tpu.memory_space<vmem>>, vector<32x128xf32>
    %cst_119 = arith.constant dense<0.000000e+00> : vector<8x128xf32>
    %293 = tpu.matmul %291, %292, %cst_119 {dimension_numbers = #tpu.dot_dimension_numbers<[1], [0], [0], [1], [0, 0, 1, 1], [], []>} : vector<8x32xf32>, vector<32x128xf32>, vector<8x128xf32> -> vector<8x128xf32>
    %c920 = arith.constant 920 : index
    %c0_120 = arith.constant 0 : index
    %294 = vector.load %arg2[%c920, %c0_120] : memref<936x128xf32, #tpu.memory_space<vmem>>, vector<1x128xf32>
    %295 = vector.broadcast %294 : vector<1x128xf32> to vector<8x128xf32>
    %296 = arith.addf %293, %295 : vector<8x128xf32>
    %c0_121 = arith.constant 0 : index
    %c0_122 = arith.constant 0 : index
    %297 = vector.load %arg3[%c0_121, %c0_122] : memref<8x128xf32, #tpu.memory_space<vmem>>, vector<8x128xf32>
    tpu.vector_store %arg3[%c0_121, %c0_122], %296 {strides = array<i32>} : memref<8x128xf32, #tpu.memory_space<vmem>>, vector<8x128xf32>,
    return
  }
}

</mosaic_0001>

<llo_original>
// kernel: forward.1
$region0: #{forward.1}
  #allocation0 [shape = 'u32[]', space=smem, size = 0x4, offset = 0x4, fixed_abs, tag = 'smem constant byte address 0x4 - core index']
  #allocation1 [shape = 'u32[144,128]{1,0:T(1,128)}', space=vmem, size = 0x12000, scoped, tag = 'internal scratch']
  %s0 = inlined_call_operand.vmem [shape: f32[64,32], index: 0, kind: input, shape index: {}]
  %s1 = inlined_call_operand.vmem [shape: f32[64,64], index: 1, kind: input, shape index: {}]
  %s2 = inlined_call_operand.vmem [shape: f32[936,128], index: 2, kind: input, shape index: {}]
  %s3 = inlined_call_operand.vmem [shape: f32[8,128], index: 3, kind: output, shape index: {}]
  %s4 = sld [smem:[#allocation0]]
  $region22: #{forward.1} parent=0
    _
  %s6 = ssub.s32 1, %s4
  %s7 = scalar_select 0, %s6, %s4
  // Predicated region
  $region2: #{forward.1} parent=0 // pred_check
    _
  $region3: #{forward.1} parent=0 // pred_check_branch
    %9 = sbr.rel (0) target = $region5
  $region4: #{forward.1} parent=0 // pred_region
    _
  $region5: #{forward.1} parent=0 // pred_fallthru
    _
  // Predicated region
  $region6: #{forward.1} parent=0 // pred_check
    _
  $region7: #{forward.1} parent=0 // pred_check_branch
    %11 = sbr.rel (0) target = $region9
  $region8: #{forward.1} parent=0 // pred_region
    _
  $region9: #{forward.1} parent=0 // pred_fallthru
    _
  // Predicated region
  $region10: #{forward.1} parent=0 // pred_check
    _
  $region11: #{forward.1} parent=0 // pred_check_branch
    %13 = sbr.rel (0) target = $region13
  $region12: #{forward.1} parent=0 // pred_region
    _
  $region13: #{forward.1} parent=0 // pred_fallthru
    _
  %v14 = vld [vmem:[%s0] sm:$0xff]
  %v15 = vld [vmem:[%s0 + $0x8] sm:$0xff]
  %v16 = vld [vmem:[%s0 + $0x10] sm:$0xff]
  %v17 = vld [vmem:[%s0 + $0x18] sm:$0xff]
  %v18 = vld [vmem:[%s0 + $0x20] sm:$0xff]
  %v19 = vld [vmem:[%s0 + $0x28] sm:$0xff]
  %v20 = vld [vmem:[%s0 + $0x30] sm:$0xff]
  %v21 = vld [vmem:[%s0 + $0x38] sm:$0xff]
  %v22 = vld [vmem:[%s1] sm:$0xff]
  %v23 = vld [vmem:[%s1 + $0x8] sm:$0xff]
  %v24 = vld [vmem:[%s1 + $0x10] sm:$0xff]
  %v25 = vld [vmem:[%s1 + $0x18] sm:$0xff]
  %v26 = vld [vmem:[%s1 + $0x20] sm:$0xff]
  %v27 = vld [vmem:[%s1 + $0x28] sm:$0xff]
  %v28 = vld [vmem:[%s1 + $0x30] sm:$0xff]
  %v29 = vld [vmem:[%s1 + $0x38] sm:$0xff]
  %v30 = vld [vmem:[%s2] sm:$0xff]
  %v31 = vld [vmem:[%s2 + $0x8] sm:$0xff]
  %v32 = vld [vmem:[%s2 + $0x10] sm:$0xff]
  %v33 = vld [vmem:[%s2 + $0x18] sm:$0xff]
  %v34 = vld [vmem:[%s2 + $0x70] sm:$0x1]
  %v35 = vlaneseq
  %v36 = vshrl.u32 %v35, 7
  %v37 = vsub.s32 0, %v36
  %v38 = vrot.slane %v34, %v37
  %vm39 = vcmask 261120
  %v41 = vsel %vm39, %v14, 0
  %v44 = vsel %vm39, %v15, 0
  %v47 = vsel %vm39, %v16, 0
  %v50 = vsel %vm39, %v17, 0
  %v53 = vsel %vm39, %v18, 0
  %v56 = vsel %vm39, %v19, 0
  %v59 = vsel %vm39, %v20, 0
  %v62 = vsel %vm39, %v21, 0
  %64 = vmatprep.subr.mxu0 0.0
  %65 = vmatpush1.msra.mxu0 %v30
  %66 = vmatprep.subr.mxu0 0.0
  %67 = vmatpush1.msra.mxu0 %v31
  %68 = vmatprep.subr.mxu0 0.0
  %69 = vmatpush1.msra.mxu0 %v32
  %70 = vmatprep.subr.mxu0 0.0
  %71 = vmatpush1.msra.mxu0 %v33
  %72 = vmatprep.subr.mxu0 0.0
  %73 = vmatpush1.msra.mxu0 0.0
  %74 = vmatprep.subr.mxu0 0.0
  %75 = vmatpush1.msra.mxu0 0.0
  %76 = vmatprep.subr.mxu0 0.0
  %77 = vmatpush1.msra.mxu0 0.0
  %78 = vmatprep.subr.mxu0 0.0
  %79 = vmatpush1.msra.mxu0 0.0
  %80 = vmatprep.subr.mxu0 0.0
  %81 = vmatpush1.msra.mxu0 0.0
  %82 = vmatprep.subr.mxu0 0.0
  %83 = vmatpush1.msra.mxu0 0.0
  %84 = vmatprep.subr.mxu0 0.0
  %85 = vmatpush1.msra.mxu0 0.0
  %86 = vmatprep.subr.mxu0 0.0
  %87 = vmatpush1.msra.mxu0 0.0
  %88 = vmatprep.subr.mxu0 0.0
  %89 = vmatpush1.msra.mxu0 0.0
  %90 = vmatprep.subr.mxu0 0.0
  %91 = vmatpush1.msra.mxu0 0.0
  %92 = vmatprep.subr.mxu0 0.0
  %93 = vmatpush1.msra.mxu0 0.0
  %94 = vmatprep.subr.mxu0 0.0
  %95 = vmatpush1.msra.mxu0 0.0
  %96 = vmatprep.subr.mxu0 0.0
  %97 = vmatpush1.msra.mxu0 0.0
  %98 = vmatprep.subr.mxu0 0.0
  %99 = vmatpush1.msra.mxu0 0.0
  %100 = vmatprep.subr.mxu0 0.0
  %101 = vmatpush1.msra.mxu0 0.0
  %102 = vmatprep.subr.mxu0 0.0
  %103 = vmatpush1.msra.mxu0 0.0
  %104 = vmatprep.subr.mxu0 0.0
  %105 = vmatpush1.msra.mxu0 0.0
  %106 = vmatprep.subr.mxu0 0.0
  %107 = vmatpush1.msra.mxu0 0.0
  %108 = vmatprep.subr.mxu0 0.0
  %109 = vmatpush1.msra.mxu0 0.0
  %110 = vmatprep.subr.mxu0 0.0
  %111 = vmatpush1.msra.mxu0 0.0
  %112 = vmatprep.subr.mxu0 0.0
  %113 = vmatpush1.msra.mxu0 0.0
  %114 = vmatprep.subr.mxu0 0.0
  %115 = vmatpush1.msra.mxu0 0.0
  %116 = vmatprep.subr.mxu0 0.0
  %117 = vmatpush1.msra.mxu0 0.0
  %118 = vmatprep.subr.mxu0 0.0
  %119 = vmatpush1.msra.mxu0 0.0
  %120 = vmatprep.subr.mxu0 0.0
  %121 = vmatpush1.msra.mxu0 0.0
  %122 = vmatprep.subr.mxu0 0.0
  %123 = vmatpush1.msra.mxu0 0.0
  %124 = vmatprep.subr.mxu0 0.0
  %125 = vmatpush1.msra.mxu0 0.0
  %126 = vmatprep.subr.mxu0 0.0
  %127 = vmatpush1.msra.mxu0 0.0
  %128 = vmatprep.mubr.f32.mxu0 0.0
  %129 = vmatmul.mubr.f32.gmra.mrb[0].mxu0 %v41
  %v130 = vpop.f32.mrb[0].mxu0
  %v131 = vadd.f32 %v38, %v130
  %v132 = vpop.f32.mrb[0].mxu0
  %133 = vmatprep.mubr.f32.mxu0 0.0
  %134 = vmatmul.mubr.f32.gmra.mrb[0].mxu0 %v44
  %v135 = vpop.f32.mrb[0].mxu0
  %v136 = vadd.f32 %v38, %v135
  %v137 = vpop.f32.mrb[0].mxu0
  %138 = vmatprep.mubr.f32.mxu0 0.0
  %139 = vmatmul.mubr.f32.gmra.mrb[0].mxu0 %v47
  %v140 = vpop.f32.mrb[0].mxu0
  %v141 = vadd.f32 %v38, %v140
  %v142 = vpop.f32.mrb[0].mxu0
  %143 = vmatprep.mubr.f32.mxu0 0.0
  %144 = vmatmul.mubr.f32.gmra.mrb[0].mxu0 %v50
  %v145 = vpop.f32.mrb[0].mxu0
  %v146 = vadd.f32 %v38, %v145
  %v147 = vpop.f32.mrb[0].mxu0
  %148 = vmatprep.mubr.f32.mxu0 0.0
  %149 = vmatmul.mubr.f32.gmra.mrb[0].mxu0 %v53
  %v150 = vpop.f32.mrb[0].mxu0
  %v151 = vadd.f32 %v38, %v150
  %v152 = vpop.f32.mrb[0].mxu0
  %153 = vmatprep.mubr.f32.mxu0 0.0
  %154 = vmatmul.mubr.f32.gmra.mrb[0].mxu0 %v56
  %v155 = vpop.f32.mrb[0].mxu0
  %v156 = vadd.f32 %v38, %v155
  %v157 = vpop.f32.mrb[0].mxu0
  %158 = vmatprep.mubr.f32.mxu0 0.0
  %159 = vmatmul.mubr.f32.gmra.mrb[0].mxu0 %v59
  %v160 = vpop.f32.mrb[0].mxu0
  %v161 = vadd.f32 %v38, %v160
  %v162 = vpop.f32.mrb[0].mxu0
  %163 = vmatprep.mubr.f32.mxu0 0.0
  %164 = vmatmul.mubr.f32.gmra.mrb[0].mxu0 %v62
  %v165 = vpop.f32.mrb[0].mxu0
  %v166 = vadd.f32 %v38, %v165
  %v167 = vpop.f32.mrb[0].mxu0
  %168 = vdwg.mxu0
  %v169 = vld [vmem:[%s2 + $0x20] sm:$0xff]
  %v170 = vld [vmem:[%s2 + $0x28] sm:$0xff]
  %v171 = vld [vmem:[%s2 + $0x30] sm:$0xff]
  %v172 = vld [vmem:[%s2 + $0x38] sm:$0xff]
  %v173 = vld [vmem:[%s2 + $0x78] sm:$0x1]
  %v174 = vlaneseq
  %v175 = vshrl.u32 %v174, 7
  %v176 = vsub.s32 0, %v175
  %v177 = vrot.slane %v173, %v176
  %178 = vmatprep.subr.mxu0 0.0
  %179 = vmatpush1.msra.mxu0 %v169
  %180 = vmatprep.subr.mxu0 0.0
  %181 = vmatpush1.msra.mxu0 %v170
  %182 = vmatprep.subr.mxu0 0.0
  %183 = vmatpush1.msra.mxu0 %v171
  %184 = vmatprep.subr.mxu0 0.0
  %185 = vmatpush1.msra.mxu0 %v172
  %186 = vmatprep.subr.mxu0 0.0
  %187 = vmatpush1.msra.mxu0 0.0
  %188 = vmatprep.subr.mxu0 0.0
  %189 = vmatpush1.msra.mxu0 0.0
  %190 = vmatprep.subr.mxu0 0.0
  %191 = vmatpush1.msra.mxu0 0.0
  %192 = vmatprep.subr.mxu0 0.0
  %193 = vmatpush1.msra.mxu0 0.0
  %194 = vmatprep.subr.mxu0 0.0
  %195 = vmatpush1.msra.mxu0 0.0
  %196 = vmatprep.subr.mxu0 0.0
  %197 = vmatpush1.msra.mxu0 0.0
  %198 = vmatprep.subr.mxu0 0.0
  %199 = vmatpush1.msra.mxu0 0.0
  %200 = vmatprep.subr.mxu0 0.0
  %201 = vmatpush1.msra.mxu0 0.0
  %202 = vmatprep.subr.mxu0 0.0
  %203 = vmatpush1.msra.mxu0 0.0
  %204 = vmatprep.subr.mxu0 0.0
  %205 = vmatpush1.msra.mxu0 0.0
  %206 = vmatprep.subr.mxu0 0.0
  %207 = vmatpush1.msra.mxu0 0.0
  %208 = vmatprep.subr.mxu0 0.0
  %209 = vmatpush1.msra.mxu0 0.0
  %210 = vmatprep.subr.mxu0 0.0
  %211 = vmatpush1.msra.mxu0 0.0
  %212 = vmatprep.subr.mxu0 0.0
  %213 = vmatpush1.msra.mxu0 0.0
  %214 = vmatprep.subr.mxu0 0.0
  %215 = vmatpush1.msra.mxu0 0.0
  %216 = vmatprep.subr.mxu0 0.0
  %217 = vmatpush1.msra.mxu0 0.0
  %218 = vmatprep.subr.mxu0 0.0
  %219 = vmatpush1.msra.mxu0 0.0
  %220 = vmatprep.subr.mxu0 0.0
  %221 = vmatpush1.msra.mxu0 0.0
  %222 = vmatprep.subr.mxu0 0.0
  %223 = vmatpush1.msra.mxu0 0.0
  %224 = vmatprep.subr.mxu0 0.0
  %225 = vmatpush1.msra.mxu0 0.0
  %226 = vmatprep.subr.mxu0 0.0
  %227 = vmatpush1.msra.mxu0 0.0
  %228 = vmatprep.subr.mxu0 0.0
  %229 = vmatpush1.msra.mxu0 0.0
  %230 = vmatprep.subr.mxu0 0.0
  %231 = vmatpush1.msra.mxu0 0.0
  %232 = vmatprep.subr.mxu0 0.0
  %233 = vmatpush1.msra.mxu0 0.0
  %234 = vmatprep.subr.mxu0 0.0
  %235 = vmatpush1.msra.mxu0 0.0
  %236 = vmatprep.subr.mxu0 0.0
  %237 = vmatpush1.msra.mxu0 0.0
  %238 = vmatprep.subr.mxu0 0.0
  %239 = vmatpush1.msra.mxu0 0.0
  %240 = vmatprep.subr.mxu0 0.0
  %241 = vmatpush1.msra.mxu0 0.0
  %242 = vmatprep.mubr.f32.mxu0 0.0
  %243 = vmatmul.mubr.f32.gmra.mrb[0].mxu0 %v41
  %v244 = vpop.f32.mrb[0].mxu0
  %v245 = vadd.f32 %v177, %v244
  %v246 = vpop.f32.mrb[0].mxu0
  %247 = vmatprep.mubr.f32.mxu0 0.0
  %248 = vmatmul.mubr.f32.gmra.mrb[0].mxu0 %v44
  %v249 = vpop.f32.mrb[0].mxu0
  %v250 = vadd.f32 %v177, %v249
  %v251 = vpop.f32.mrb[0].mxu0
  %252 = vmatprep.mubr.f32.mxu0 0.0
  %253 = vmatmul.mubr.f32.gmra.mrb[0].mxu0 %v47
  %v254 = vpop.f32.mrb[0].mxu0
  %v255 = vadd.f32 %v177, %v254
  %v256 = vpop.f32.mrb[0].mxu0
  %257 = vmatprep.mubr.f32.mxu0 0.0
  %258 = vmatmul.mubr.f32.gmra.mrb[0].mxu0 %v50
  %v259 = vpop.f32.mrb[0].mxu0
  %v260 = vadd.f32 %v177, %v259
  %v261 = vpop.f32.mrb[0].mxu0
  %262 = vmatprep.mubr.f32.mxu0 0.0
  %263 = vmatmul.mubr.f32.gmra.mrb[0].mxu0 %v53
  %v264 = vpop.f32.mrb[0].mxu0
  %v265 = vadd.f32 %v177, %v264
  %v266 = vpop.f32.mrb[0].mxu0
  %267 = vmatprep.mubr.f32.mxu0 0.0
  %268 = vmatmul.mubr.f32.gmra.mrb[0].mxu0 %v56
  %v269 = vpop.f32.mrb[0].mxu0
  %v270 = vadd.f32 %v177, %v269
  %v271 = vpop.f32.mrb[0].mxu0
  %272 = vmatprep.mubr.f32.mxu0 0.0
  %273 = vmatmul.mubr.f32.gmra.mrb[0].mxu0 %v59
  %v274 = vpop.f32.mrb[0].mxu0
  %v275 = vadd.f32 %v177, %v274
  %v276 = vpop.f32.mrb[0].mxu0
  %277 = vmatprep.mubr.f32.mxu0 0.0
  %278 = vmatmul.mubr.f32.gmra.mrb[0].mxu0 %v62
  %v279 = vpop.f32.mrb[0].mxu0
  %v280 = vadd.f32 %v177, %v279
  %v281 = vpop.f32.mrb[0].mxu0
  %282 = vdwg.mxu0
  %v283 = vld [vmem:[%s2 + $0x40] sm:$0xff]
  %v284 = vld [vmem:[%s2 + $0x48] sm:$0xff]
  %v285 = vld [vmem:[%s2 + $0x50] sm:$0xff]
  %v286 = vld [vmem:[%s2 + $0x58] sm:$0xff]
  %v287 = vld [vmem:[%s2 + $0x80] sm:$0x1]
  %v288 = vlaneseq
  %v289 = vshrl.u32 %v288, 7
  %v290 = vsub.s32 0, %v289
  %v291 = vrot.slane %v287, %v290
  %292 = vmatprep.subr.mxu0 0.0
  %293 = vmatpush1.msra.mxu0 %v283
  %294 = vmatprep.subr.mxu0 0.0
  %295 = vmatpush1.msra.mxu0 %v284
  %296 = vmatprep.subr.mxu0 0.0
  %297 = vmatpush1.msra.mxu0 %v285
  %298 = vmatprep.subr.mxu0 0.0
  %299 = vmatpush1.msra.mxu0 %v286
  %300 = vmatprep.subr.mxu0 0.0
  %301 = vmatpush1.msra.mxu0 0.0
  %302 = vmatprep.subr.mxu0 0.0
  %303 = vmatpush1.msra.mxu0 0.0
  %304 = vmatprep.subr.mxu0 0.0
  %305 = vmatpush1.msra.mxu0 0.0
  %306 = vmatprep.subr.mxu0 0.0
  %307 = vmatpush1.msra.mxu0 0.0
  %308 = vmatprep.subr.mxu0 0.0
  %309 = vmatpush1.msra.mxu0 0.0
  %310 = vmatprep.subr.mxu0 0.0
  %311 = vmatpush1.msra.mxu0 0.0
  %312 = vmatprep.subr.mxu0 0.0
  %313 = vmatpush1.msra.mxu0 0.0
  %314 = vmatprep.subr.mxu0 0.0
  %315 = vmatpush1.msra.mxu0 0.0
  %316 = vmatprep.subr.mxu0 0.0
  %317 = vmatpush1.msra.mxu0 0.0
  %318 = vmatprep.subr.mxu0 0.0
  %319 = vmatpush1.msra.mxu0 0.0
  %320 = vmatprep.subr.mxu0 0.0
  %321 = vmatpush1.msra.mxu0 0.0
  %322 = vmatprep.subr.mxu0 0.0
  %323 = vmatpush1.msra.mxu0 0.0
  %324 = vmatprep.subr.mxu0 0.0
  %325 = vmatpush1.msra.mxu0 0.0
  %326 = vmatprep.subr.mxu0 0.0
  %327 = vmatpush1.msra.mxu0 0.0
  %328 = vmatprep.subr.mxu0 0.0
  %329 = vmatpush1.msra.mxu0 0.0
  %330 = vmatprep.subr.mxu0 0.0
  %331 = vmatpush1.msra.mxu0 0.0
  %332 = vmatprep.subr.mxu0 0.0
  %333 = vmatpush1.msra.mxu0 0.0
  %334 = vmatprep.subr.mxu0 0.0
  %335 = vmatpush1.msra.mxu0 0.0
  %336 = vmatprep.subr.mxu0 0.0
  %337 = vmatpush1.msra.mxu0 0.0
  %338 = vmatprep.subr.mxu0 0.0
  %339 = vmatpush1.msra.mxu0 0.0
  %340 = vmatprep.subr.mxu0 0.0
  %341 = vmatpush1.msra.mxu0 0.0
  %342 = vmatprep.subr.mxu0 0.0
  %343 = vmatpush1.msra.mxu0 0.0
  %344 = vmatprep.subr.mxu0 0.0
  %345 = vmatpush1.msra.mxu0 0.0
  %346 = vmatprep.subr.mxu0 0.0
  %347 = vmatpush1.msra.mxu0 0.0
  %348 = vmatprep.subr.mxu0 0.0
  %349 = vmatpush1.msra.mxu0 0.0
  %350 = vmatprep.subr.mxu0 0.0
  %351 = vmatpush1.msra.mxu0 0.0
  %352 = vmatprep.subr.mxu0 0.0
  %353 = vmatpush1.msra.mxu0 0.0
  %354 = vmatprep.subr.mxu0 0.0
  %355 = vmatpush1.msra.mxu0 0.0
  %356 = vmatprep.mubr.f32.mxu0 0.0
  %357 = vmatmul.mubr.f32.gmra.mrb[0].mxu0 %v41
  %v358 = vpop.f32.mrb[0].mxu0
  %v359 = vadd.f32 %v291, %v358
  %v360 = vpop.f32.mrb[0].mxu0
  %361 = vmatprep.mubr.f32.mxu0 0.0
  %362 = vmatmul.mubr.f32.gmra.mrb[0].mxu0 %v44
  %v363 = vpop.f32.mrb[0].mxu0
  %v364 = vadd.f32 %v291, %v363
  %v365 = vpop.f32.mrb[0].mxu0
  %366 = vmatprep.mubr.f32.mxu0 0.0
  %367 = vmatmul.mubr.f32.gmra.mrb[0].mxu0 %v47
  %v368 = vpop.f32.mrb[0].mxu0
  %v369 = vadd.f32 %v291, %v368
  %v370 = vpop.f32.mrb[0].mxu0
  %371 = vmatprep.mubr.f32.mxu0 0.0
  %372 = vmatmul.mubr.f32.gmra.mrb[0].mxu0 %v50
  %v373 = vpop.f32.mrb[0].mxu0
  %v374 = vadd.f32 %v291, %v373
  %v375 = vpop.f32.mrb[0].mxu0
  %376 = vmatprep.mubr.f32.mxu0 0.0
  %377 = vmatmul.mubr.f32.gmra.mrb[0].mxu0 %v53
  %v378 = vpop.f32.mrb[0].mxu0
  %v379 = vadd.f32 %v291, %v378
  %v380 = vpop.f32.mrb[0].mxu0
  %381 = vmatprep.mubr.f32.mxu0 0.0
  %382 = vmatmul.mubr.f32.gmra.mrb[0].mxu0 %v56
  %v383 = vpop.f32.mrb[0].mxu0
  %v384 = vadd.f32 %v291, %v383
  %v385 = vpop.f32.mrb[0].mxu0
  %386 = vmatprep.mubr.f32.mxu0 0.0
  %387 = vmatmul.mubr.f32.gmra.mrb[0].mxu0 %v59
  %v388 = vpop.f32.mrb[0].mxu0
  %v389 = vadd.f32 %v291, %v388
  %v390 = vpop.f32.mrb[0].mxu0
  %391 = vmatprep.mubr.f32.mxu0 0.0
  %392 = vmatmul.mubr.f32.gmra.mrb[0].mxu0 %v62
  %v393 = vpop.f32.mrb[0].mxu0
  %v394 = vadd.f32 %v291, %v393
  %v395 = vpop.f32.mrb[0].mxu0
  %396 = vdwg.mxu0
  %vm397 = vcmask 130048
  %v399 = vsel %vm397, %v131, 0
  %v402 = vsel %vm397, %v136, 0
  %v405 = vsel %vm397, %v141, 0
  %v408 = vsel %vm397, %v146, 0
  %v411 = vsel %vm397, %v151, 0
  %v414 = vsel %vm397, %v156, 0
  %v417 = vsel %vm397, %v161, 0
  %v420 = vsel %vm397, %v166, 0
  %v423 = vsel %vm397, %v245, 0
  %v426 = vsel %vm397, %v250, 0
  %v429 = vsel %vm397, %v255, 0
  %v432 = vsel %vm397, %v260, 0
  %v435 = vsel %vm397, %v265, 0
  %v438 = vsel %vm397, %v270, 0
  %v441 = vsel %vm397, %v275, 0
  %v444 = vsel %vm397, %v280, 0
  %446 = vmatprep.subr.mxu0 0.0
  %447 = vmatpush1.xpose.msra.mxu0 %v423
  %448 = vmatprep.subr.mxu0 0.0
  %449 = vmatpush1.xpose.msra.mxu0 %v426
  %450 = vmatprep.subr.mxu0 0.0
  %451 = vmatpush1.xpose.msra.mxu0 %v429
  %452 = vmatprep.subr.mxu0 0.0
  %453 = vmatpush1.xpose.msra.mxu0 %v432
  %454 = vmatprep.subr.mxu0 0.0
  %455 = vmatpush1.xpose.msra.mxu0 %v435
  %456 = vmatprep.subr.mxu0 0.0
  %457 = vmatpush1.xpose.msra.mxu0 %v438
  %458 = vmatprep.subr.mxu0 0.0
  %459 = vmatpush1.xpose.msra.mxu0 %v441
  %460 = vmatprep.subr.mxu0 0.0
  %461 = vmatpush1.xpose.msra.mxu0 %v444
  %462 = vmatprep.subr.mxu0 0.0
  %463 = vmatpush1.xpose.msra.mxu0 0.0
  %464 = vmatprep.subr.mxu0 0.0
  %465 = vmatpush1.xpose.msra.mxu0 0.0
  %466 = vmatprep.subr.mxu0 0.0
  %467 = vmatpush1.xpose.msra.mxu0 0.0
  %468 = vmatprep.subr.mxu0 0.0
  %469 = vmatpush1.xpose.msra.mxu0 0.0
  %470 = vmatprep.subr.mxu0 0.0
  %471 = vmatpush1.xpose.msra.mxu0 0.0
  %472 = vmatprep.subr.mxu0 0.0
  %473 = vmatpush1.xpose.msra.mxu0 0.0
  %474 = vmatprep.subr.mxu0 0.0
  %475 = vmatpush1.xpose.msra.mxu0 0.0
  %476 = vmatprep.subr.mxu0 0.0
  %477 = vmatpush1.xpose.msra.mxu0 0.0
  %478 = vmatprep.subr.mxu0 0.0
  %479 = vmatpush1.xpose.msra.mxu0 0.0
  %480 = vmatprep.subr.mxu0 0.0
  %481 = vmatpush1.xpose.msra.mxu0 0.0
  %482 = vmatprep.subr.mxu0 0.0
  %483 = vmatpush1.xpose.msra.mxu0 0.0
  %484 = vmatprep.subr.mxu0 0.0
  %485 = vmatpush1.xpose.msra.mxu0 0.0
  %486 = vmatprep.subr.mxu0 0.0
  %487 = vmatpush1.xpose.msra.mxu0 0.0
  %488 = vmatprep.subr.mxu0 0.0
  %489 = vmatpush1.xpose.msra.mxu0 0.0
  %490 = vmatprep.subr.mxu0 0.0
  %491 = vmatpush1.xpose.msra.mxu0 0.0
  %492 = vmatprep.subr.mxu0 0.0
  %493 = vmatpush1.xpose.msra.mxu0 0.0
  %494 = vmatprep.subr.mxu0 0.0
  %495 = vmatpush1.xpose.msra.mxu0 0.0
  %496 = vmatprep.subr.mxu0 0.0
  %497 = vmatpush1.xpose.msra.mxu0 0.0
  %498 = vmatprep.subr.mxu0 0.0
  %499 = vmatpush1.xpose.msra.mxu0 0.0
  %500 = vmatprep.subr.mxu0 0.0
  %501 = vmatpush1.xpose.msra.mxu0 0.0
  %502 = vmatprep.subr.mxu0 0.0
  %503 = vmatpush1.xpose.msra.mxu0 0.0
  %504 = vmatprep.subr.mxu0 0.0
  %505 = vmatpush1.xpose.msra.mxu0 0.0
  %506 = vmatprep.subr.mxu0 0.0
  %507 = vmatpush1.xpose.msra.mxu0 0.0
  %508 = vmatprep.subr.mxu0 0.0
  %509 = vmatpush1.xpose.msra.mxu0 0.0
  %510 = vmatprep.mubr.f32.mxu0 0.0
  %511 = vmatmul.mubr.f32.gmra.mrb[0].mxu0 %v399
  %v512 = vpop.f32.mrb[0].mxu0
  %v513 = vadd.f32 %v22, %v512
  %v514 = vpop.f32.mrb[0].mxu0
  %515 = vmatprep.mubr.f32.mxu0 0.0
  %516 = vmatmul.mubr.f32.gmra.mrb[0].mxu0 %v402
  %v517 = vpop.f32.mrb[0].mxu0
  %v518 = vadd.f32 %v23, %v517
  %v519 = vpop.f32.mrb[0].mxu0
  %520 = vmatprep.mubr.f32.mxu0 0.0
  %521 = vmatmul.mubr.f32.gmra.mrb[0].mxu0 %v405
  %v522 = vpop.f32.mrb[0].mxu0
  %v523 = vadd.f32 %v24, %v522
  %v524 = vpop.f32.mrb[0].mxu0
  %525 = vmatprep.mubr.f32.mxu0 0.0
  %526 = vmatmul.mubr.f32.gmra.mrb[0].mxu0 %v408
  %v527 = vpop.f32.mrb[0].mxu0
  %v528 = vadd.f32 %v25, %v527
  %v529 = vpop.f32.mrb[0].mxu0
  %530 = vmatprep.mubr.f32.mxu0 0.0
  %531 = vmatmul.mubr.f32.gmra.mrb[0].mxu0 %v411
  %v532 = vpop.f32.mrb[0].mxu0
  %v533 = vadd.f32 %v26, %v532
  %v534 = vpop.f32.mrb[0].mxu0
  %535 = vmatprep.mubr.f32.mxu0 0.0
  %536 = vmatmul.mubr.f32.gmra.mrb[0].mxu0 %v414
  %v537 = vpop.f32.mrb[0].mxu0
  %v538 = vadd.f32 %v27, %v537
  %v539 = vpop.f32.mrb[0].mxu0
  %540 = vmatprep.mubr.f32.mxu0 0.0
  %541 = vmatmul.mubr.f32.gmra.mrb[0].mxu0 %v417
  %v542 = vpop.f32.mrb[0].mxu0
  %v543 = vadd.f32 %v28, %v542
  %v544 = vpop.f32.mrb[0].mxu0
  %545 = vmatprep.mubr.f32.mxu0 0.0
  %546 = vmatmul.mubr.f32.gmra.mrb[0].mxu0 %v420
  %v547 = vpop.f32.mrb[0].mxu0
  %v548 = vadd.f32 %v29, %v547
  %v549 = vpop.f32.mrb[0].mxu0
  %550 = vdwg.mxu0
  %vm551 = vcmask 523264
  %v552 = vsel %vm551, %v513, -inf
  %553 = vmax.xlane.f32.xlu0 %v552
  %v554 = vpop.xlane.xlu0 %553
  %v555 = vsel %vm551, %v518, -inf
  %556 = vmax.xlane.f32.xlu0 %v555
  %v557 = vpop.xlane.xlu0 %556
  %v558 = vsel %vm551, %v523, -inf
  %559 = vmax.xlane.f32.xlu0 %v558
  %v560 = vpop.xlane.xlu0 %559
  %v561 = vsel %vm551, %v528, -inf
  %562 = vmax.xlane.f32.xlu0 %v561
  %v563 = vpop.xlane.xlu0 %562
  %v564 = vsel %vm551, %v533, -inf
  %565 = vmax.xlane.f32.xlu0 %v564
  %v566 = vpop.xlane.xlu0 %565
  %v567 = vsel %vm551, %v538, -inf
  %568 = vmax.xlane.f32.xlu0 %v567
  %v569 = vpop.xlane.xlu0 %568
  %v570 = vsel %vm551, %v543, -inf
  %571 = vmax.xlane.f32.xlu0 %v570
  %v572 = vpop.xlane.xlu0 %571
  %v573 = vsel %vm551, %v548, -inf
  %574 = vmax.xlane.f32.xlu0 %v573
  %v575 = vpop.xlane.xlu0 %574
  %v576 = vsub.f32 %v513, %v554
  %v577 = vsub.f32 %v518, %v557
  %v578 = vsub.f32 %v523, %v560
  %v579 = vsub.f32 %v528, %v563
  %v580 = vsub.f32 %v533, %v566
  %v581 = vsub.f32 %v538, %v569
  %v582 = vsub.f32 %v543, %v572
  %v583 = vsub.f32 %v548, %v575
  %v584 = vmul.f32 %v576, 1.442695
  %v585 = vpow.pop %v584
  %v586 = vmul.f32 %v577, 1.442695
  %v587 = vpow.pop %v586
  %v588 = vmul.f32 %v578, 1.442695
  %v589 = vpow.pop %v588
  %v590 = vmul.f32 %v579, 1.442695
  %v591 = vpow.pop %v590
  %v592 = vmul.f32 %v580, 1.442695
  %v593 = vpow.pop %v592
  %v594 = vmul.f32 %v581, 1.442695
  %v595 = vpow.pop %v594
  %v596 = vmul.f32 %v582, 1.442695
  %v597 = vpow.pop %v596
  %v598 = vmul.f32 %v583, 1.442695
  %v599 = vpow.pop %v598
  %v600 = vsel %vm551, %v585, 0.0
  %601 = vadd.xlane.f32.xlu0 %v600
  %v602 = vpop.xlane.xlu0 %601
  %v603 = vsel %vm551, %v587, 0.0
  %604 = vadd.xlane.f32.xlu0 %v603
  %v605 = vpop.xlane.xlu0 %604
  %v606 = vsel %vm551, %v589, 0.0
  %607 = vadd.xlane.f32.xlu0 %v606
  %v608 = vpop.xlane.xlu0 %607
  %v609 = vsel %vm551, %v591, 0.0
  %610 = vadd.xlane.f32.xlu0 %v609
  %v611 = vpop.xlane.xlu0 %610
  %v612 = vsel %vm551, %v593, 0.0
  %613 = vadd.xlane.f32.xlu0 %v612
  %v614 = vpop.xlane.xlu0 %613
  %v615 = vsel %vm551, %v595, 0.0
  %616 = vadd.xlane.f32.xlu0 %v615
  %v617 = vpop.xlane.xlu0 %616
  %v618 = vsel %vm551, %v597, 0.0
  %619 = vadd.xlane.f32.xlu0 %v618
  %v620 = vpop.xlane.xlu0 %619
  %v621 = vsel %vm551, %v599, 0.0
  %622 = vadd.xlane.f32.xlu0 %v621
  %v623 = vpop.xlane.xlu0 %622
  %v624 = vrcp.pop %v602
  %v625 = vrcp.pop %v605
  %v626 = vrcp.pop %v608
  %v627 = vrcp.pop %v611
  %v628 = vrcp.pop %v614
  %v629 = vrcp.pop %v617
  %v630 = vrcp.pop %v620
  %v631 = vrcp.pop %v623
  %v632 = vmul.f32 %v585, %v624
  %v633 = vmul.f32 %v587, %v625
  %v634 = vmul.f32 %v589, %v626
  %v635 = vmul.f32 %v591, %v627
  %v636 = vmul.f32 %v593, %v628
  %v637 = vmul.f32 %v595, %v629
  %v638 = vmul.f32 %v597, %v630
  %v639 = vmul.f32 %v599, %v631
  %v641 = vsel %vm551, %v632, 0
  %v644 = vsel %vm551, %v633, 0
  %v647 = vsel %vm551, %v634, 0
  %v650 = vsel %vm551, %v635, 0
  %v653 = vsel %vm551, %v636, 0
  %v656 = vsel %vm551, %v637, 0
  %v659 = vsel %vm551, %v638, 0
  %v662 = vsel %vm551, %v639, 0
  %664 = vmatprep.subr.mxu0 0.0
  %665 = vmatpush1.msra.mxu0 %v359
  %666 = vmatprep.subr.mxu0 0.0
  %667 = vmatpush1.msra.mxu0 %v364
  %668 = vmatprep.subr.mxu0 0.0
  %669 = vmatpush1.msra.mxu0 %v369
  %670 = vmatprep.subr.mxu0 0.0
  %671 = vmatpush1.msra.mxu0 %v374
  %672 = vmatprep.subr.mxu0 0.0
  %673 = vmatpush1.msra.mxu0 %v379
  %674 = vmatprep.subr.mxu0 0.0
  %675 = vmatpush1.msra.mxu0 %v384
  %676 = vmatprep.subr.mxu0 0.0
  %677 = vmatpush1.msra.mxu0 %v389
  %678 = vmatprep.subr.mxu0 0.0
  %679 = vmatpush1.msra.mxu0 %v394
  %680 = vmatprep.subr.mxu0 0.0
  %681 = vmatpush1.msra.mxu0 0.0
  %682 = vmatprep.subr.mxu0 0.0
  %683 = vmatpush1.msra.mxu0 0.0
  %684 = vmatprep.subr.mxu0 0.0
  %685 = vmatpush1.msra.mxu0 0.0
  %686 = vmatprep.subr.mxu0 0.0
  %687 = vmatpush1.msra.mxu0 0.0
  %688 = vmatprep.subr.mxu0 0.0
  %689 = vmatpush1.msra.mxu0 0.0
  %690 = vmatprep.subr.mxu0 0.0
  %691 = vmatpush1.msra.mxu0 0.0
  %692 = vmatprep.subr.mxu0 0.0
  %693 = vmatpush1.msra.mxu0 0.0
  %694 = vmatprep.subr.mxu0 0.0
  %695 = vmatpush1.msra.mxu0 0.0
  %696 = vmatprep.subr.mxu0 0.0
  %697 = vmatpush1.msra.mxu0 0.0
  %698 = vmatprep.subr.mxu0 0.0
  %699 = vmatpush1.msra.mxu0 0.0
  %700 = vmatprep.subr.mxu0 0.0
  %701 = vmatpush1.msra.mxu0 0.0
  %702 = vmatprep.subr.mxu0 0.0
  %703 = vmatpush1.msra.mxu0 0.0
  %704 = vmatprep.subr.mxu0 0.0
  %705 = vmatpush1.msra.mxu0 0.0
  %706 = vmatprep.subr.mxu0 0.0
  %707 = vmatpush1.msra.mxu0 0.0
  %708 = vmatprep.subr.mxu0 0.0
  %709 = vmatpush1.msra.mxu0 0.0
  %710 = vmatprep.subr.mxu0 0.0
  %711 = vmatpush1.msra.mxu0 0.0
  %712 = vmatprep.subr.mxu0 0.0
  %713 = vmatpush1.msra.mxu0 0.0
  %714 = vmatprep.subr.mxu0 0.0
  %715 = vmatpush1.msra.mxu0 0.0
  %716 = vmatprep.subr.mxu0 0.0
  %717 = vmatpush1.msra.mxu0 0.0
  %718 = vmatprep.subr.mxu0 0.0
  %719 = vmatpush1.msra.mxu0 0.0
  %720 = vmatprep.subr.mxu0 0.0
  %721 = vmatpush1.msra.mxu0 0.0
  %722 = vmatprep.subr.mxu0 0.0
  %723 = vmatpush1.msra.mxu0 0.0
  %724 = vmatprep.subr.mxu0 0.0
  %725 = vmatpush1.msra.mxu0 0.0
  %726 = vmatprep.subr.mxu0 0.0
  %727 = vmatpush1.msra.mxu0 0.0
  %728 = vmatprep.mubr.f32.mxu0 0.0
  %729 = vmatmul.mubr.f32.gmra.mrb[0].mxu0 %v641
  %v730 = vpop.f32.mrb[0].mxu0
  %v731 = vadd.f32 0.0, %v730
  %v732 = vpop.f32.mrb[0].mxu0
  %733 = vmatprep.mubr.f32.mxu0 0.0
  %734 = vmatmul.mubr.f32.gmra.mrb[0].mxu0 %v644
  %v735 = vpop.f32.mrb[0].mxu0
  %v736 = vadd.f32 0.0, %v735
  %v737 = vpop.f32.mrb[0].mxu0
  %738 = vmatprep.mubr.f32.mxu0 0.0
  %739 = vmatmul.mubr.f32.gmra.mrb[0].mxu0 %v647
  %v740 = vpop.f32.mrb[0].mxu0
  %v741 = vadd.f32 0.0, %v740
  %v742 = vpop.f32.mrb[0].mxu0
  %743 = vmatprep.mubr.f32.mxu0 0.0
  %744 = vmatmul.mubr.f32.gmra.mrb[0].mxu0 %v650
  %v745 = vpop.f32.mrb[0].mxu0
  %v746 = vadd.f32 0.0, %v745
  %v747 = vpop.f32.mrb[0].mxu0
  %748 = vmatprep.mubr.f32.mxu0 0.0
  %749 = vmatmul.mubr.f32.gmra.mrb[0].mxu0 %v653
  %v750 = vpop.f32.mrb[0].mxu0
  %v751 = vadd.f32 0.0, %v750
  %v752 = vpop.f32.mrb[0].mxu0
  %753 = vmatprep.mubr.f32.mxu0 0.0
  %754 = vmatmul.mubr.f32.gmra.mrb[0].mxu0 %v656
  %v755 = vpop.f32.mrb[0].mxu0
  %v756 = vadd.f32 0.0, %v755
  %v757 = vpop.f32.mrb[0].mxu0
  %758 = vmatprep.mubr.f32.mxu0 0.0
  %759 = vmatmul.mubr.f32.gmra.mrb[0].mxu0 %v659
  %v760 = vpop.f32.mrb[0].mxu0
  %v761 = vadd.f32 0.0, %v760
  %v762 = vpop.f32.mrb[0].mxu0
  %763 = vmatprep.mubr.f32.mxu0 0.0
  %764 = vmatmul.mubr.f32.gmra.mrb[0].mxu0 %v662
  %v765 = vpop.f32.mrb[0].mxu0
  %v766 = vadd.f32 0.0, %v765
  %v767 = vpop.f32.mrb[0].mxu0
  %768 = vdwg.mxu0
  %v769 = vld [vmem:[%s2 + $0x60] sm:$0xff]
  %v770 = vld [vmem:[%s2 + $0x68] sm:$0xff]
  %v771 = vld [vmem:[%s2 + $0x88] sm:$0xff]
  %v772 = vld [vmem:[%s2 + $0x90] sm:$0xff]
  %v773 = vld [vmem:[%s2 + $0x98] sm:$0xff]
  %v774 = vld [vmem:[%s2 + $0xa0] sm:$0xff]
  %v775 = vld [vmem:[%s2 + $0xf8] sm:$0x1]
  %v776 = vlaneseq
  %v777 = vshrl.u32 %v776, 7
  %v778 = vsub.s32 0, %v777
  %v779 = vrot.slane %v775, %v778
  %780 = vmatprep.subr.mxu0 0.0
  %781 = vmatpush1.msra.mxu0 %v771
  %782 = vmatprep.subr.mxu0 0.0
  %783 = vmatpush1.msra.mxu0 %v772
  %784 = vmatprep.subr.mxu0 0.0
  %785 = vmatpush1.msra.mxu0 %v773
  %786 = vmatprep.subr.mxu0 0.0
  %787 = vmatpush1.msra.mxu0 %v774
  %788 = vmatprep.subr.mxu0 0.0
  %789 = vmatpush1.msra.mxu0 0.0
  %790 = vmatprep.subr.mxu0 0.0
  %791 = vmatpush1.msra.mxu0 0.0
  %792 = vmatprep.subr.mxu0 0.0
  %793 = vmatpush1.msra.mxu0 0.0
  %794 = vmatprep.subr.mxu0 0.0
  %795 = vmatpush1.msra.mxu0 0.0
  %796 = vmatprep.subr.mxu0 0.0
  %797 = vmatpush1.msra.mxu0 0.0
  %798 = vmatprep.subr.mxu0 0.0
  %799 = vmatpush1.msra.mxu0 0.0
  %800 = vmatprep.subr.mxu0 0.0
  %801 = vmatpush1.msra.mxu0 0.0
  %802 = vmatprep.subr.mxu0 0.0
  %803 = vmatpush1.msra.mxu0 0.0
  %804 = vmatprep.subr.mxu0 0.0
  %805 = vmatpush1.msra.mxu0 0.0
  %806 = vmatprep.subr.mxu0 0.0
  %807 = vmatpush1.msra.mxu0 0.0
  %808 = vmatprep.subr.mxu0 0.0
  %809 = vmatpush1.msra.mxu0 0.0
  %810 = vmatprep.subr.mxu0 0.0
  %811 = vmatpush1.msra.mxu0 0.0
  %812 = vmatprep.subr.mxu0 0.0
  %813 = vmatpush1.msra.mxu0 0.0
  %814 = vmatprep.subr.mxu0 0.0
  %815 = vmatpush1.msra.mxu0 0.0
  %816 = vmatprep.subr.mxu0 0.0
  %817 = vmatpush1.msra.mxu0 0.0
  %818 = vmatprep.subr.mxu0 0.0
  %819 = vmatpush1.msra.mxu0 0.0
  %820 = vmatprep.subr.mxu0 0.0
  %821 = vmatpush1.msra.mxu0 0.0
  %822 = vmatprep.subr.mxu0 0.0
  %823 = vmatpush1.msra.mxu0 0.0
  %824 = vmatprep.subr.mxu0 0.0
  %825 = vmatpush1.msra.mxu0 0.0
  %826 = vmatprep.subr.mxu0 0.0
  %827 = vmatpush1.msra.mxu0 0.0
  %828 = vmatprep.subr.mxu0 0.0
  %829 = vmatpush1.msra.mxu0 0.0
  %830 = vmatprep.subr.mxu0 0.0
  %831 = vmatpush1.msra.mxu0 0.0
  %832 = vmatprep.subr.mxu0 0.0
  %833 = vmatpush1.msra.mxu0 0.0
  %834 = vmatprep.subr.mxu0 0.0
  %835 = vmatpush1.msra.mxu0 0.0
  %836 = vmatprep.subr.mxu0 0.0
  %837 = vmatpush1.msra.mxu0 0.0
  %838 = vmatprep.subr.mxu0 0.0
  %839 = vmatpush1.msra.mxu0 0.0
  %840 = vmatprep.subr.mxu0 0.0
  %841 = vmatpush1.msra.mxu0 0.0
  %842 = vmatprep.subr.mxu0 0.0
  %843 = vmatpush1.msra.mxu0 0.0
  %844 = vmatprep.mubr.f32.mxu0 0.0
  %845 = vmatmul.mubr.f32.gmra.mrb[0].mxu0 %v41
  %v846 = vpop.f32.mrb[0].mxu0
  %v847 = vadd.f32 %v779, %v846
  %v848 = vpop.f32.mrb[0].mxu0
  %849 = vmatprep.mubr.f32.mxu0 0.0
  %850 = vmatmul.mubr.f32.gmra.mrb[0].mxu0 %v44
  %v851 = vpop.f32.mrb[0].mxu0
  %v852 = vadd.f32 %v779, %v851
  %v853 = vpop.f32.mrb[0].mxu0
  %854 = vmatprep.mubr.f32.mxu0 0.0
  %855 = vmatmul.mubr.f32.gmra.mrb[0].mxu0 %v47
  %v856 = vpop.f32.mrb[0].mxu0
  %v857 = vadd.f32 %v779, %v856
  %v858 = vpop.f32.mrb[0].mxu0
  %859 = vmatprep.mubr.f32.mxu0 0.0
  %860 = vmatmul.mubr.f32.gmra.mrb[0].mxu0 %v50
  %v861 = vpop.f32.mrb[0].mxu0
  %v862 = vadd.f32 %v779, %v861
  %v863 = vpop.f32.mrb[0].mxu0
  %864 = vmatprep.mubr.f32.mxu0 0.0
  %865 = vmatmul.mubr.f32.gmra.mrb[0].mxu0 %v53
  %v866 = vpop.f32.mrb[0].mxu0
  %v867 = vadd.f32 %v779, %v866
  %v868 = vpop.f32.mrb[0].mxu0
  %869 = vmatprep.mubr.f32.mxu0 0.0
  %870 = vmatmul.mubr.f32.gmra.mrb[0].mxu0 %v56
  %v871 = vpop.f32.mrb[0].mxu0
  %v872 = vadd.f32 %v779, %v871
  %v873 = vpop.f32.mrb[0].mxu0
  %874 = vmatprep.mubr.f32.mxu0 0.0
  %875 = vmatmul.mubr.f32.gmra.mrb[0].mxu0 %v59
  %v876 = vpop.f32.mrb[0].mxu0
  %v877 = vadd.f32 %v779, %v876
  %v878 = vpop.f32.mrb[0].mxu0
  %879 = vmatprep.mubr.f32.mxu0 0.0
  %880 = vmatmul.mubr.f32.gmra.mrb[0].mxu0 %v62
  %v881 = vpop.f32.mrb[0].mxu0
  %v882 = vadd.f32 %v779, %v881
  %v883 = vpop.f32.mrb[0].mxu0
  %884 = vdwg.mxu0
  %v885 = vld [vmem:[%s2 + $0xa8] sm:$0xff]
  %v886 = vld [vmem:[%s2 + $0xb0] sm:$0xff]
  %v887 = vld [vmem:[%s2 + $0xb8] sm:$0xff]
  %v888 = vld [vmem:[%s2 + $0xc0] sm:$0xff]
  %v889 = vld [vmem:[%s2 + $0x100] sm:$0x1]
  %v890 = vlaneseq
  %v891 = vshrl.u32 %v890, 7
  %v892 = vsub.s32 0, %v891
  %v893 = vrot.slane %v889, %v892
  %894 = vmatprep.subr.mxu0 0.0
  %895 = vmatpush1.msra.mxu0 %v885
  %896 = vmatprep.subr.mxu0 0.0
  %897 = vmatpush1.msra.mxu0 %v886
  %898 = vmatprep.subr.mxu0 0.0
  %899 = vmatpush1.msra.mxu0 %v887
  %900 = vmatprep.subr.mxu0 0.0
  %901 = vmatpush1.msra.mxu0 %v888
  %902 = vmatprep.subr.mxu0 0.0
  %903 = vmatpush1.msra.mxu0 0.0
  %904 = vmatprep.subr.mxu0 0.0
  %905 = vmatpush1.msra.mxu0 0.0
  %906 = vmatprep.subr.mxu0 0.0
  %907 = vmatpush1.msra.mxu0 0.0
  %908 = vmatprep.subr.mxu0 0.0
  %909 = vmatpush1.msra.mxu0 0.0
  %910 = vmatprep.subr.mxu0 0.0
  %911 = vmatpush1.msra.mxu0 0.0
  %912 = vmatprep.subr.mxu0 0.0
  %913 = vmatpush1.msra.mxu0 0.0
  %914 = vmatprep.subr.mxu0 0.0
  %915 = vmatpush1.msra.mxu0 0.0
  %916 = vmatprep.subr.mxu0 0.0
  %917 = vmatpush1.msra.mxu0 0.0
  %918 = vmatprep.subr.mxu0 0.0
  %919 = vmatpush1.msra.mxu0 0.0
  %920 = vmatprep.subr.mxu0 0.0
  %921 = vmatpush1.msra.mxu0 0.0
  %922 = vmatprep.subr.mxu0 0.0
  %923 = vmatpush1.msra.mxu0 0.0
  %924 = vmatprep.subr.mxu0 0.0
  %925 = vmatpush1.msra.mxu0 0.0
  %926 = vmatprep.subr.mxu0 0.0
  %927 = vmatpush1.msra.mxu0 0.0
  %928 = vmatprep.subr.mxu0 0.0
  %929 = vmatpush1.msra.mxu0 0.0
  %930 = vmatprep.subr.mxu0 0.0
  %931 = vmatpush1.msra.mxu0 0.0
  %932 = vmatprep.subr.mxu0 0.0
  %933 = vmatpush1.msra.mxu0 0.0
  %934 = vmatprep.subr.mxu0 0.0
  %935 = vmatpush1.msra.mxu0 0.0
  %936 = vmatprep.subr.mxu0 0.0
  %937 = vmatpush1.msra.mxu0 0.0
  %938 = vmatprep.subr.mxu0 0.0
  %939 = vmatpush1.msra.mxu0 0.0
  %940 = vmatprep.subr.mxu0 0.0
  %941 = vmatpush1.msra.mxu0 0.0
  %942 = vmatprep.subr.mxu0 0.0
  %943 = vmatpush1.msra.mxu0 0.0
  %944 = vmatprep.subr.mxu0 0.0
  %945 = vmatpush1.msra.mxu0 0.0
  %946 = vmatprep.subr.mxu0 0.0
  %947 = vmatpush1.msra.mxu0 0.0
  %948 = vmatprep.subr.mxu0 0.0
  %949 = vmatpush1.msra.mxu0 0.0
  %950 = vmatprep.subr.mxu0 0.0
  %951 = vmatpush1.msra.mxu0 0.0
  %952 = vmatprep.subr.mxu0 0.0
  %953 = vmatpush1.msra.mxu0 0.0
  %954 = vmatprep.subr.mxu0 0.0
  %955 = vmatpush1.msra.mxu0 0.0
  %956 = vmatprep.subr.mxu0 0.0
  %957 = vmatpush1.msra.mxu0 0.0
  %958 = vmatprep.mubr.f32.mxu0 0.0
  %959 = vmatmul.mubr.f32.gmra.mrb[0].mxu0 %v41
  %v960 = vpop.f32.mrb[0].mxu0
  %v961 = vadd.f32 %v893, %v960
  %v962 = vpop.f32.mrb[0].mxu0
  %963 = vmatprep.mubr.f32.mxu0 0.0
  %964 = vmatmul.mubr.f32.gmra.mrb[0].mxu0 %v44
  %v965 = vpop.f32.mrb[0].mxu0
  %v966 = vadd.f32 %v893, %v965
  %v967 = vpop.f32.mrb[0].mxu0
  %968 = vmatprep.mubr.f32.mxu0 0.0
  %969 = vmatmul.mubr.f32.gmra.mrb[0].mxu0 %v47
  %v970 = vpop.f32.mrb[0].mxu0
  %v971 = vadd.f32 %v893, %v970
  %v972 = vpop.f32.mrb[0].mxu0
  %973 = vmatprep.mubr.f32.mxu0 0.0
  %974 = vmatmul.mubr.f32.gmra.mrb[0].mxu0 %v50
  %v975 = vpop.f32.mrb[0].mxu0
  %v976 = vadd.f32 %v893, %v975
  %v977 = vpop.f32.mrb[0].mxu0
  %978 = vmatprep.mubr.f32.mxu0 0.0
  %979 = vmatmul.mubr.f32.gmra.mrb[0].mxu0 %v53
  %v980 = vpop.f32.mrb[0].mxu0
  %v981 = vadd.f32 %v893, %v980
  %v982 = vpop.f32.mrb[0].mxu0
  %983 = vmatprep.mubr.f32.mxu0 0.0
  %984 = vmatmul.mubr.f32.gmra.mrb[0].mxu0 %v56
  %v985 = vpop.f32.mrb[0].mxu0
  %v986 = vadd.f32 %v893, %v985
  %v987 = vpop.f32.mrb[0].mxu0
  %988 = vmatprep.mubr.f32.mxu0 0.0
  %989 = vmatmul.mubr.f32.gmra.mrb[0].mxu0 %v59
  %v990 = vpop.f32.mrb[0].mxu0
  %v991 = vadd.f32 %v893, %v990
  %v992 = vpop.f32.mrb[0].mxu0
  %993 = vmatprep.mubr.f32.mxu0 0.0
  %994 = vmatmul.mubr.f32.gmra.mrb[0].mxu0 %v62
  %v995 = vpop.f32.mrb[0].mxu0
  %v996 = vadd.f32 %v893, %v995
  %v997 = vpop.f32.mrb[0].mxu0
  %998 = vdwg.mxu0
  %v999 = vld [vmem:[%s2 + $0xc8] sm:$0xff]
  %v1000 = vld [vmem:[%s2 + $0xd0] sm:$0xff]
  %v1001 = vld [vmem:[%s2 + $0xd8] sm:$0xff]
  %v1002 = vld [vmem:[%s2 + $0xe0] sm:$0xff]
  %v1003 = vld [vmem:[%s2 + $0x108] sm:$0x1]
  %v1004 = vlaneseq
  %v1005 = vshrl.u32 %v1004, 7
  %v1006 = vsub.s32 0, %v1005
  %v1007 = vrot.slane %v1003, %v1006
  %1008 = vmatprep.subr.mxu0 0.0
  %1009 = vmatpush1.msra.mxu0 %v999
  %1010 = vmatprep.subr.mxu0 0.0
  %1011 = vmatpush1.msra.mxu0 %v1000
  %1012 = vmatprep.subr.mxu0 0.0
  %1013 = vmatpush1.msra.mxu0 %v1001
  %1014 = vmatprep.subr.mxu0 0.0
  %1015 = vmatpush1.msra.mxu0 %v1002
  %1016 = vmatprep.subr.mxu0 0.0
  %1017 = vmatpush1.msra.mxu0 0.0
  %1018 = vmatprep.subr.mxu0 0.0
  %1019 = vmatpush1.msra.mxu0 0.0
  %1020 = vmatprep.subr.mxu0 0.0
  %1021 = vmatpush1.msra.mxu0 0.0
  %1022 = vmatprep.subr.mxu0 0.0
  %1023 = vmatpush1.msra.mxu0 0.0
  %1024 = vmatprep.subr.mxu0 0.0
  %1025 = vmatpush1.msra.mxu0 0.0
  %1026 = vmatprep.subr.mxu0 0.0
  %1027 = vmatpush1.msra.mxu0 0.0
  %1028 = vmatprep.subr.mxu0 0.0
  %1029 = vmatpush1.msra.mxu0 0.0
  %1030 = vmatprep.subr.mxu0 0.0
  %1031 = vmatpush1.msra.mxu0 0.0
  %1032 = vmatprep.subr.mxu0 0.0
  %1033 = vmatpush1.msra.mxu0 0.0
  %1034 = vmatprep.subr.mxu0 0.0
  %1035 = vmatpush1.msra.mxu0 0.0
  %1036 = vmatprep.subr.mxu0 0.0
  %1037 = vmatpush1.msra.mxu0 0.0
  %1038 = vmatprep.subr.mxu0 0.0
  %1039 = vmatpush1.msra.mxu0 0.0
  %1040 = vmatprep.subr.mxu0 0.0
  %1041 = vmatpush1.msra.mxu0 0.0
  %1042 = vmatprep.subr.mxu0 0.0
  %1043 = vmatpush1.msra.mxu0 0.0
  %1044 = vmatprep.subr.mxu0 0.0
  %1045 = vmatpush1.msra.mxu0 0.0
  %1046 = vmatprep.subr.mxu0 0.0
  %1047 = vmatpush1.msra.mxu0 0.0
  %1048 = vmatprep.subr.mxu0 0.0
  %1049 = vmatpush1.msra.mxu0 0.0
  %1050 = vmatprep.subr.mxu0 0.0
  %1051 = vmatpush1.msra.mxu0 0.0
  %1052 = vmatprep.subr.mxu0 0.0
  %1053 = vmatpush1.msra.mxu0 0.0
  %1054 = vmatprep.subr.mxu0 0.0
  %1055 = vmatpush1.msra.mxu0 0.0
  %1056 = vmatprep.subr.mxu0 0.0
  %1057 = vmatpush1.msra.mxu0 0.0
  %1058 = vmatprep.subr.mxu0 0.0
  %1059 = vmatpush1.msra.mxu0 0.0
  %1060 = vmatprep.subr.mxu0 0.0
  %1061 = vmatpush1.msra.mxu0 0.0
  %1062 = vmatprep.subr.mxu0 0.0
  %1063 = vmatpush1.msra.mxu0 0.0
  %1064 = vmatprep.subr.mxu0 0.0
  %1065 = vmatpush1.msra.mxu0 0.0
  %1066 = vmatprep.subr.mxu0 0.0
  %1067 = vmatpush1.msra.mxu0 0.0
  %1068 = vmatprep.subr.mxu0 0.0
  %1069 = vmatpush1.msra.mxu0 0.0
  %1070 = vmatprep.subr.mxu0 0.0
  %1071 = vmatpush1.msra.mxu0 0.0
  %1072 = vmatprep.mubr.f32.mxu0 0.0
  %1073 = vmatmul.mubr.f32.gmra.mrb[0].mxu0 %v41
  %v1074 = vpop.f32.mrb[0].mxu0
  %v1075 = vadd.f32 %v1007, %v1074
  %v1076 = vpop.f32.mrb[0].mxu0
  %1077 = vmatprep.mubr.f32.mxu0 0.0
  %1078 = vmatmul.mubr.f32.gmra.mrb[0].mxu0 %v44
  %v1079 = vpop.f32.mrb[0].mxu0
  %v1080 = vadd.f32 %v1007, %v1079
  %v1081 = vpop.f32.mrb[0].mxu0
  %1082 = vmatprep.mubr.f32.mxu0 0.0
  %1083 = vmatmul.mubr.f32.gmra.mrb[0].mxu0 %v47
  %v1084 = vpop.f32.mrb[0].mxu0
  %v1085 = vadd.f32 %v1007, %v1084
  %v1086 = vpop.f32.mrb[0].mxu0
  %1087 = vmatprep.mubr.f32.mxu0 0.0
  %1088 = vmatmul.mubr.f32.gmra.mrb[0].mxu0 %v50
  %v1089 = vpop.f32.mrb[0].mxu0
  %v1090 = vadd.f32 %v1007, %v1089
  %v1091 = vpop.f32.mrb[0].mxu0
  %1092 = vmatprep.mubr.f32.mxu0 0.0
  %1093 = vmatmul.mubr.f32.gmra.mrb[0].mxu0 %v53
  %v1094 = vpop.f32.mrb[0].mxu0
  %v1095 = vadd.f32 %v1007, %v1094
  %v1096 = vpop.f32.mrb[0].mxu0
  %1097 = vmatprep.mubr.f32.mxu0 0.0
  %1098 = vmatmul.mubr.f32.gmra.mrb[0].mxu0 %v56
  %v1099 = vpop.f32.mrb[0].mxu0
  %v1100 = vadd.f32 %v1007, %v1099
  %v1101 = vpop.f32.mrb[0].mxu0
  %1102 = vmatprep.mubr.f32.mxu0 0.0
  %1103 = vmatmul.mubr.f32.gmra.mrb[0].mxu0 %v59
  %v1104 = vpop.f32.mrb[0].mxu0
  %v1105 = vadd.f32 %v1007, %v1104
  %v1106 = vpop.f32.mrb[0].mxu0
  %1107 = vmatprep.mubr.f32.mxu0 0.0
  %1108 = vmatmul.mubr.f32.gmra.mrb[0].mxu0 %v62
  %v1109 = vpop.f32.mrb[0].mxu0
  %v1110 = vadd.f32 %v1007, %v1109
  %v1111 = vpop.f32.mrb[0].mxu0
  %1112 = vdwg.mxu0
  %v1114 = vsel %vm397, %v847, 0
  %v1117 = vsel %vm397, %v852, 0
  %v1120 = vsel %vm397, %v857, 0
  %v1123 = vsel %vm397, %v862, 0
  %v1126 = vsel %vm397, %v867, 0
  %v1129 = vsel %vm397, %v872, 0
  %v1132 = vsel %vm397, %v877, 0
  %v1135 = vsel %vm397, %v882, 0
  %v1138 = vsel %vm397, %v961, 0
  %v1141 = vsel %vm397, %v966, 0
  %v1144 = vsel %vm397, %v971, 0
  %v1147 = vsel %vm397, %v976, 0
  %v1150 = vsel %vm397, %v981, 0
  %v1153 = vsel %vm397, %v986, 0
  %v1156 = vsel %vm397, %v991, 0
  %v1159 = vsel %vm397, %v996, 0
  %1161 = vmatprep.subr.mxu0 0.0
  %1162 = vmatpush1.xpose.msra.mxu0 %v1138
  %1163 = vmatprep.subr.mxu0 0.0
  %1164 = vmatpush1.xpose.msra.mxu0 %v1141
  %1165 = vmatprep.subr.mxu0 0.0
  %1166 = vmatpush1.xpose.msra.mxu0 %v1144
  %1167 = vmatprep.subr.mxu0 0.0
  %1168 = vmatpush1.xpose.msra.mxu0 %v1147
  %1169 = vmatprep.subr.mxu0 0.0
  %1170 = vmatpush1.xpose.msra.mxu0 %v1150
  %1171 = vmatprep.subr.mxu0 0.0
  %1172 = vmatpush1.xpose.msra.mxu0 %v1153
  %1173 = vmatprep.subr.mxu0 0.0
  %1174 = vmatpush1.xpose.msra.mxu0 %v1156
  %1175 = vmatprep.subr.mxu0 0.0
  %1176 = vmatpush1.xpose.msra.mxu0 %v1159
  %1177 = vmatprep.subr.mxu0 0.0
  %1178 = vmatpush1.xpose.msra.mxu0 0.0
  %1179 = vmatprep.subr.mxu0 0.0
  %1180 = vmatpush1.xpose.msra.mxu0 0.0
  %1181 = vmatprep.subr.mxu0 0.0
  %1182 = vmatpush1.xpose.msra.mxu0 0.0
  %1183 = vmatprep.subr.mxu0 0.0
  %1184 = vmatpush1.xpose.msra.mxu0 0.0
  %1185 = vmatprep.subr.mxu0 0.0
  %1186 = vmatpush1.xpose.msra.mxu0 0.0
  %1187 = vmatprep.subr.mxu0 0.0
  %1188 = vmatpush1.xpose.msra.mxu0 0.0
  %1189 = vmatprep.subr.mxu0 0.0
  %1190 = vmatpush1.xpose.msra.mxu0 0.0
  %1191 = vmatprep.subr.mxu0 0.0
  %1192 = vmatpush1.xpose.msra.mxu0 0.0
  %1193 = vmatprep.subr.mxu0 0.0
  %1194 = vmatpush1.xpose.msra.mxu0 0.0
  %1195 = vmatprep.subr.mxu0 0.0
  %1196 = vmatpush1.xpose.msra.mxu0 0.0
  %1197 = vmatprep.subr.mxu0 0.0
  %1198 = vmatpush1.xpose.msra.mxu0 0.0
  %1199 = vmatprep.subr.mxu0 0.0
  %1200 = vmatpush1.xpose.msra.mxu0 0.0
  %1201 = vmatprep.subr.mxu0 0.0
  %1202 = vmatpush1.xpose.msra.mxu0 0.0
  %1203 = vmatprep.subr.mxu0 0.0
  %1204 = vmatpush1.xpose.msra.mxu0 0.0
  %1205 = vmatprep.subr.mxu0 0.0
  %1206 = vmatpush1.xpose.msra.mxu0 0.0
  %1207 = vmatprep.subr.mxu0 0.0
  %1208 = vmatpush1.xpose.msra.mxu0 0.0
  %1209 = vmatprep.subr.mxu0 0.0
  %1210 = vmatpush1.xpose.msra.mxu0 0.0
  %1211 = vmatprep.subr.mxu0 0.0
  %1212 = vmatpush1.xpose.msra.mxu0 0.0
  %1213 = vmatprep.subr.mxu0 0.0
  %1214 = vmatpush1.xpose.msra.mxu0 0.0
  %1215 = vmatprep.subr.mxu0 0.0
  %1216 = vmatpush1.xpose.msra.mxu0 0.0
  %1217 = vmatprep.subr.mxu0 0.0
  %1218 = vmatpush1.xpose.msra.mxu0 0.0
  %1219 = vmatprep.subr.mxu0 0.0
  %1220 = vmatpush1.xpose.msra.mxu0 0.0
  %1221 = vmatprep.subr.mxu0 0.0
  %1222 = vmatpush1.xpose.msra.mxu0 0.0
  %1223 = vmatprep.subr.mxu0 0.0
  %1224 = vmatpush1.xpose.msra.mxu0 0.0
  %1225 = vmatprep.mubr.f32.mxu0 0.0
  %1226 = vmatmul.mubr.f32.gmra.mrb[0].mxu0 %v1114
  %v1227 = vpop.f32.mrb[0].mxu0
  %v1228 = vadd.f32 %v22, %v1227
  %v1229 = vpop.f32.mrb[0].mxu0
  %1230 = vmatprep.mubr.f32.mxu0 0.0
  %1231 = vmatmul.mubr.f32.gmra.mrb[0].mxu0 %v1117
  %v1232 = vpop.f32.mrb[0].mxu0
  %v1233 = vadd.f32 %v23, %v1232
  %v1234 = vpop.f32.mrb[0].mxu0
  %1235 = vmatprep.mubr.f32.mxu0 0.0
  %1236 = vmatmul.mubr.f32.gmra.mrb[0].mxu0 %v1120
  %v1237 = vpop.f32.mrb[0].mxu0
  %v1238 = vadd.f32 %v24, %v1237
  %v1239 = vpop.f32.mrb[0].mxu0
  %1240 = vmatprep.mubr.f32.mxu0 0.0
  %1241 = vmatmul.mubr.f32.gmra.mrb[0].mxu0 %v1123
  %v1242 = vpop.f32.mrb[0].mxu0
  %v1243 = vadd.f32 %v25, %v1242
  %v1244 = vpop.f32.mrb[0].mxu0
  %1245 = vmatprep.mubr.f32.mxu0 0.0
  %1246 = vmatmul.mubr.f32.gmra.mrb[0].mxu0 %v1126
  %v1247 = vpop.f32.mrb[0].mxu0
  %v1248 = vadd.f32 %v26, %v1247
  %v1249 = vpop.f32.mrb[0].mxu0
  %1250 = vmatprep.mubr.f32.mxu0 0.0
  %1251 = vmatmul.mubr.f32.gmra.mrb[0].mxu0 %v1129
  %v1252 = vpop.f32.mrb[0].mxu0
  %v1253 = vadd.f32 %v27, %v1252
  %v1254 = vpop.f32.mrb[0].mxu0
  %1255 = vmatprep.mubr.f32.mxu0 0.0
  %1256 = vmatmul.mubr.f32.gmra.mrb[0].mxu0 %v1132
  %v1257 = vpop.f32.mrb[0].mxu0
  %v1258 = vadd.f32 %v28, %v1257
  %v1259 = vpop.f32.mrb[0].mxu0
  %1260 = vmatprep.mubr.f32.mxu0 0.0
  %1261 = vmatmul.mubr.f32.gmra.mrb[0].mxu0 %v1135
  %v1262 = vpop.f32.mrb[0].mxu0
  %v1263 = vadd.f32 %v29, %v1262
  %v1264 = vpop.f32.mrb[0].mxu0
  %1265 = vdwg.mxu0
  %v1266 = vsel %vm551, %v1228, -inf
  %1267 = vmax.xlane.f32.xlu0 %v1266
  %v1268 = vpop.xlane.xlu0 %1267
  %v1269 = vsel %vm551, %v1233, -inf
  %1270 = vmax.xlane.f32.xlu0 %v1269
  %v1271 = vpop.xlane.xlu0 %1270
  %v1272 = vsel %vm551, %v1238, -inf
  %1273 = vmax.xlane.f32.xlu0 %v1272
  %v1274 = vpop.xlane.xlu0 %1273
  %v1275 = vsel %vm551, %v1243, -inf
  %1276 = vmax.xlane.f32.xlu0 %v1275
  %v1277 = vpop.xlane.xlu0 %1276
  %v1278 = vsel %vm551, %v1248, -inf
  %1279 = vmax.xlane.f32.xlu0 %v1278
  %v1280 = vpop.xlane.xlu0 %1279
  %v1281 = vsel %vm551, %v1253, -inf
  %1282 = vmax.xlane.f32.xlu0 %v1281
  %v1283 = vpop.xlane.xlu0 %1282
  %v1284 = vsel %vm551, %v1258, -inf
  %1285 = vmax.xlane.f32.xlu0 %v1284
  %v1286 = vpop.xlane.xlu0 %1285
  %v1287 = vsel %vm551, %v1263, -inf
  %1288 = vmax.xlane.f32.xlu0 %v1287
  %v1289 = vpop.xlane.xlu0 %1288
  %v1290 = vsub.f32 %v1228, %v1268
  %v1291 = vsub.f32 %v1233, %v1271
  %v1292 = vsub.f32 %v1238, %v1274
  %v1293 = vsub.f32 %v1243, %v1277
  %v1294 = vsub.f32 %v1248, %v1280
  %v1295 = vsub.f32 %v1253, %v1283
  %v1296 = vsub.f32 %v1258, %v1286
  %v1297 = vsub.f32 %v1263, %v1289
  %v1298 = vmul.f32 %v1290, 1.442695
  %v1299 = vpow.pop %v1298
  %v1300 = vmul.f32 %v1291, 1.442695
  %v1301 = vpow.pop %v1300
  %v1302 = vmul.f32 %v1292, 1.442695
  %v1303 = vpow.pop %v1302
  %v1304 = vmul.f32 %v1293, 1.442695
  %v1305 = vpow.pop %v1304
  %v1306 = vmul.f32 %v1294, 1.442695
  %v1307 = vpow.pop %v1306
  %v1308 = vmul.f32 %v1295, 1.442695
  %v1309 = vpow.pop %v1308
  %v1310 = vmul.f32 %v1296, 1.442695
  %v1311 = vpow.pop %v1310
  %v1312 = vmul.f32 %v1297, 1.442695
  %v1313 = vpow.pop %v1312
  %v1314 = vsel %vm551, %v1299, 0.0
  %1315 = vadd.xlane.f32.xlu0 %v1314
  %v1316 = vpop.xlane.xlu0 %1315
  %v1317 = vsel %vm551, %v1301, 0.0
  %1318 = vadd.xlane.f32.xlu0 %v1317
  %v1319 = vpop.xlane.xlu0 %1318
  %v1320 = vsel %vm551, %v1303, 0.0
  %1321 = vadd.xlane.f32.xlu0 %v1320
  %v1322 = vpop.xlane.xlu0 %1321
  %v1323 = vsel %vm551, %v1305, 0.0
  %1324 = vadd.xlane.f32.xlu0 %v1323
  %v1325 = vpop.xlane.xlu0 %1324
  %v1326 = vsel %vm551, %v1307, 0.0
  %1327 = vadd.xlane.f32.xlu0 %v1326
  %v1328 = vpop.xlane.xlu0 %1327
  %v1329 = vsel %vm551, %v1309, 0.0
  %1330 = vadd.xlane.f32.xlu0 %v1329
  %v1331 = vpop.xlane.xlu0 %1330
  %v1332 = vsel %vm551, %v1311, 0.0
  %1333 = vadd.xlane.f32.xlu0 %v1332
  %v1334 = vpop.xlane.xlu0 %1333
  %v1335 = vsel %vm551, %v1313, 0.0
  %1336 = vadd.xlane.f32.xlu0 %v1335
  %v1337 = vpop.xlane.xlu0 %1336
  %v1338 = vrcp.pop %v1316
  %v1339 = vrcp.pop %v1319
  %v1340 = vrcp.pop %v1322
  %v1341 = vrcp.pop %v1325
  %v1342 = vrcp.pop %v1328
  %v1343 = vrcp.pop %v1331
  %v1344 = vrcp.pop %v1334
  %v1345 = vrcp.pop %v1337
  %v1346 = vmul.f32 %v1299, %v1338
  %v1347 = vmul.f32 %v1301, %v1339
  %v1348 = vmul.f32 %v1303, %v1340
  %v1349 = vmul.f32 %v1305, %v1341
  %v1350 = vmul.f32 %v1307, %v1342
  %v1351 = vmul.f32 %v1309, %v1343
  %v1352 = vmul.f32 %v1311, %v1344
  %v1353 = vmul.f32 %v1313, %v1345
  %v1355 = vsel %vm551, %v1346, 0
  %v1358 = vsel %vm551, %v1347, 0
  %v1361 = vsel %vm551, %v1348, 0
  %v1364 = vsel %vm551, %v1349, 0
  %v1367 = vsel %vm551, %v1350, 0
  %v1370 = vsel %vm551, %v1351, 0
  %v1373 = vsel %vm551, %v1352, 0
  %v1376 = vsel %vm551, %v1353, 0
  %1378 = vmatprep.subr.mxu0 0.0
  %1379 = vmatpush1.msra.mxu0 %v1075
  %1380 = vmatprep.subr.mxu0 0.0
  %1381 = vmatpush1.msra.mxu0 %v1080
  %1382 = vmatprep.subr.mxu0 0.0
  %1383 = vmatpush1.msra.mxu0 %v1085
  %1384 = vmatprep.subr.mxu0 0.0
  %1385 = vmatpush1.msra.mxu0 %v1090
  %1386 = vmatprep.subr.mxu0 0.0
  %1387 = vmatpush1.msra.mxu0 %v1095
  %1388 = vmatprep.subr.mxu0 0.0
  %1389 = vmatpush1.msra.mxu0 %v1100
  %1390 = vmatprep.subr.mxu0 0.0
  %1391 = vmatpush1.msra.mxu0 %v1105
  %1392 = vmatprep.subr.mxu0 0.0
  %1393 = vmatpush1.msra.mxu0 %v1110
  %1394 = vmatprep.subr.mxu0 0.0
  %1395 = vmatpush1.msra.mxu0 0.0
  %1396 = vmatprep.subr.mxu0 0.0
  %1397 = vmatpush1.msra.mxu0 0.0
  %1398 = vmatprep.subr.mxu0 0.0
  %1399 = vmatpush1.msra.mxu0 0.0
  %1400 = vmatprep.subr.mxu0 0.0
  %1401 = vmatpush1.msra.mxu0 0.0
  %1402 = vmatprep.subr.mxu0 0.0
  %1403 = vmatpush1.msra.mxu0 0.0
  %1404 = vmatprep.subr.mxu0 0.0
  %1405 = vmatpush1.msra.mxu0 0.0
  %1406 = vmatprep.subr.mxu0 0.0
  %1407 = vmatpush1.msra.mxu0 0.0
  %1408 = vmatprep.subr.mxu0 0.0
  %1409 = vmatpush1.msra.mxu0 0.0
  %1410 = vmatprep.subr.mxu0 0.0
  %1411 = vmatpush1.msra.mxu0 0.0
  %1412 = vmatprep.subr.mxu0 0.0
  %1413 = vmatpush1.msra.mxu0 0.0
  %1414 = vmatprep.subr.mxu0 0.0
  %1415 = vmatpush1.msra.mxu0 0.0
  %1416 = vmatprep.subr.mxu0 0.0
  %1417 = vmatpush1.msra.mxu0 0.0
  %1418 = vmatprep.subr.mxu0 0.0
  %1419 = vmatpush1.msra.mxu0 0.0
  %1420 = vmatprep.subr.mxu0 0.0
  %1421 = vmatpush1.msra.mxu0 0.0
  %1422 = vmatprep.subr.mxu0 0.0
  %1423 = vmatpush1.msra.mxu0 0.0
  %1424 = vmatprep.subr.mxu0 0.0
  %1425 = vmatpush1.msra.mxu0 0.0
  %1426 = vmatprep.subr.mxu0 0.0
  %1427 = vmatpush1.msra.mxu0 0.0
  %1428 = vmatprep.subr.mxu0 0.0
  %1429 = vmatpush1.msra.mxu0 0.0
  %1430 = vmatprep.subr.mxu0 0.0
  %1431 = vmatpush1.msra.mxu0 0.0
  %1432 = vmatprep.subr.mxu0 0.0
  %1433 = vmatpush1.msra.mxu0 0.0
  %1434 = vmatprep.subr.mxu0 0.0
  %1435 = vmatpush1.msra.mxu0 0.0
  %1436 = vmatprep.subr.mxu0 0.0
  %1437 = vmatpush1.msra.mxu0 0.0
  %1438 = vmatprep.subr.mxu0 0.0
  %1439 = vmatpush1.msra.mxu0 0.0
  %1440 = vmatprep.subr.mxu0 0.0
  %1441 = vmatpush1.msra.mxu0 0.0
  %1442 = vmatprep.mubr.f32.mxu0 0.0
  %1443 = vmatmul.mubr.f32.gmra.mrb[0].mxu0 %v1355
  %v1444 = vpop.f32.mrb[0].mxu0
  %v1445 = vadd.f32 0.0, %v1444
  %v1446 = vpop.f32.mrb[0].mxu0
  %1447 = vmatprep.mubr.f32.mxu0 0.0
  %1448 = vmatmul.mubr.f32.gmra.mrb[0].mxu0 %v1358
  %v1449 = vpop.f32.mrb[0].mxu0
  %v1450 = vadd.f32 0.0, %v1449
  %v1451 = vpop.f32.mrb[0].mxu0
  %1452 = vmatprep.mubr.f32.mxu0 0.0
  %1453 = vmatmul.mubr.f32.gmra.mrb[0].mxu0 %v1361
  %v1454 = vpop.f32.mrb[0].mxu0
  %v1455 = vadd.f32 0.0, %v1454
  %v1456 = vpop.f32.mrb[0].mxu0
  %1457 = vmatprep.mubr.f32.mxu0 0.0
  %1458 = vmatmul.mubr.f32.gmra.mrb[0].mxu0 %v1364
  %v1459 = vpop.f32.mrb[0].mxu0
  %v1460 = vadd.f32 0.0, %v1459
  %v1461 = vpop.f32.mrb[0].mxu0
  %1462 = vmatprep.mubr.f32.mxu0 0.0
  %1463 = vmatmul.mubr.f32.gmra.mrb[0].mxu0 %v1367
  %v1464 = vpop.f32.mrb[0].mxu0
  %v1465 = vadd.f32 0.0, %v1464
  %v1466 = vpop.f32.mrb[0].mxu0
  %1467 = vmatprep.mubr.f32.mxu0 0.0
  %1468 = vmatmul.mubr.f32.gmra.mrb[0].mxu0 %v1370
  %v1469 = vpop.f32.mrb[0].mxu0
  %v1470 = vadd.f32 0.0, %v1469
  %v1471 = vpop.f32.mrb[0].mxu0
  %1472 = vmatprep.mubr.f32.mxu0 0.0
  %1473 = vmatmul.mubr.f32.gmra.mrb[0].mxu0 %v1373
  %v1474 = vpop.f32.mrb[0].mxu0
  %v1475 = vadd.f32 0.0, %v1474
  %v1476 = vpop.f32.mrb[0].mxu0
  %1477 = vmatprep.mubr.f32.mxu0 0.0
  %1478 = vmatmul.mubr.f32.gmra.mrb[0].mxu0 %v1376
  %v1479 = vpop.f32.mrb[0].mxu0
  %v1480 = vadd.f32 0.0, %v1479
  %v1481 = vpop.f32.mrb[0].mxu0
  %1482 = vdwg.mxu0
  %v1483 = vld [vmem:[%s2 + $0xe8] sm:$0xff]
  %v1484 = vld [vmem:[%s2 + $0xf0] sm:$0xff]
  %v1486 = vsel %vm397, %v1445, 0
  %v1489 = vsel %vm397, %v1450, 0
  %v1492 = vsel %vm397, %v1455, 0
  %v1495 = vsel %vm397, %v1460, 0
  %v1498 = vsel %vm397, %v1465, 0
  %v1501 = vsel %vm397, %v1470, 0
  %v1504 = vsel %vm397, %v1475, 0
  %v1507 = vsel %vm397, %v1480, 0
  %1509 = vmatprep.subr.mxu0 0.0
  %1510 = vmatpush1.msra.mxu0 %v1483
  %1511 = vmatprep.subr.mxu0 0.0
  %1512 = vmatpush1.msra.mxu0 %v1484
  %1513 = vmatprep.subr.mxu0 0.0
  %1514 = vmatpush1.msra.mxu0 0.0
  %1515 = vmatprep.subr.mxu0 0.0
  %1516 = vmatpush1.msra.mxu0 0.0
  %1517 = vmatprep.subr.mxu0 0.0
  %1518 = vmatpush1.msra.mxu0 0.0
  %1519 = vmatprep.subr.mxu0 0.0
  %1520 = vmatpush1.msra.mxu0 0.0
  %1521 = vmatprep.subr.mxu0 0.0
  %1522 = vmatpush1.msra.mxu0 0.0
  %1523 = vmatprep.subr.mxu0 0.0
  %1524 = vmatpush1.msra.mxu0 0.0
  %1525 = vmatprep.subr.mxu0 0.0
  %1526 = vmatpush1.msra.mxu0 0.0
  %1527 = vmatprep.subr.mxu0 0.0
  %1528 = vmatpush1.msra.mxu0 0.0
  %1529 = vmatprep.subr.mxu0 0.0
  %1530 = vmatpush1.msra.mxu0 0.0
  %1531 = vmatprep.subr.mxu0 0.0
  %1532 = vmatpush1.msra.mxu0 0.0
  %1533 = vmatprep.subr.mxu0 0.0
  %1534 = vmatpush1.msra.mxu0 0.0
  %1535 = vmatprep.subr.mxu0 0.0
  %1536 = vmatpush1.msra.mxu0 0.0
  %1537 = vmatprep.subr.mxu0 0.0
  %1538 = vmatpush1.msra.mxu0 0.0
  %1539 = vmatprep.subr.mxu0 0.0
  %1540 = vmatpush1.msra.mxu0 0.0
  %1541 = vmatprep.subr.mxu0 0.0
  %1542 = vmatpush1.msra.mxu0 0.0
  %1543 = vmatprep.subr.mxu0 0.0
  %1544 = vmatpush1.msra.mxu0 0.0
  %1545 = vmatprep.subr.mxu0 0.0
  %1546 = vmatpush1.msra.mxu0 0.0
  %1547 = vmatprep.subr.mxu0 0.0
  %1548 = vmatpush1.msra.mxu0 0.0
  %1549 = vmatprep.subr.mxu0 0.0
  %1550 = vmatpush1.msra.mxu0 0.0
  %1551 = vmatprep.subr.mxu0 0.0
  %1552 = vmatpush1.msra.mxu0 0.0
  %1553 = vmatprep.subr.mxu0 0.0
  %1554 = vmatpush1.msra.mxu0 0.0
  %1555 = vmatprep.subr.mxu0 0.0
  %1556 = vmatpush1.msra.mxu0 0.0
  %1557 = vmatprep.subr.mxu0 0.0
  %1558 = vmatpush1.msra.mxu0 0.0
  %1559 = vmatprep.subr.mxu0 0.0
  %1560 = vmatpush1.msra.mxu0 0.0
  %1561 = vmatprep.subr.mxu0 0.0
  %1562 = vmatpush1.msra.mxu0 0.0
  %1563 = vmatprep.subr.mxu0 0.0
  %1564 = vmatpush1.msra.mxu0 0.0
  %1565 = vmatprep.subr.mxu0 0.0
  %1566 = vmatpush1.msra.mxu0 0.0
  %1567 = vmatprep.subr.mxu0 0.0
  %1568 = vmatpush1.msra.mxu0 0.0
  %1569 = vmatprep.subr.mxu0 0.0
  %1570 = vmatpush1.msra.mxu0 0.0
  %1571 = vmatprep.subr.mxu0 0.0
  %1572 = vmatpush1.msra.mxu0 0.0
  %1573 = vmatprep.mubr.f32.mxu0 0.0
  %1574 = vmatmul.mubr.f32.gmra.mrb[0].mxu0 %v1486
  %v1575 = vpop.f32.mrb[0].mxu0
  %v1576 = vadd.f32 0.0, %v1575
  %v1577 = vpop.f32.mrb[0].mxu0
  %1578 = vmatprep.mubr.f32.mxu0 0.0
  %1579 = vmatmul.mubr.f32.gmra.mrb[0].mxu0 %v1489
  %v1580 = vpop.f32.mrb[0].mxu0
  %v1581 = vadd.f32 0.0, %v1580
  %v1582 = vpop.f32.mrb[0].mxu0
  %1583 = vmatprep.mubr.f32.mxu0 0.0
  %1584 = vmatmul.mubr.f32.gmra.mrb[0].mxu0 %v1492
  %v1585 = vpop.f32.mrb[0].mxu0
  %v1586 = vadd.f32 0.0, %v1585
  %v1587 = vpop.f32.mrb[0].mxu0
  %1588 = vmatprep.mubr.f32.mxu0 0.0
  %1589 = vmatmul.mubr.f32.gmra.mrb[0].mxu0 %v1495
  %v1590 = vpop.f32.mrb[0].mxu0
  %v1591 = vadd.f32 0.0, %v1590
  %v1592 = vpop.f32.mrb[0].mxu0
  %1593 = vmatprep.mubr.f32.mxu0 0.0
  %1594 = vmatmul.mubr.f32.gmra.mrb[0].mxu0 %v1498
  %v1595 = vpop.f32.mrb[0].mxu0
  %v1596 = vadd.f32 0.0, %v1595
  %v1597 = vpop.f32.mrb[0].mxu0
  %1598 = vmatprep.mubr.f32.mxu0 0.0
  %1599 = vmatmul.mubr.f32.gmra.mrb[0].mxu0 %v1501
  %v1600 = vpop.f32.mrb[0].mxu0
  %v1601 = vadd.f32 0.0, %v1600
  %v1602 = vpop.f32.mrb[0].mxu0
  %1603 = vmatprep.mubr.f32.mxu0 0.0
  %1604 = vmatmul.mubr.f32.gmra.mrb[0].mxu0 %v1504
  %v1605 = vpop.f32.mrb[0].mxu0
  %v1606 = vadd.f32 0.0, %v1605
  %v1607 = vpop.f32.mrb[0].mxu0
  %1608 = vmatprep.mubr.f32.mxu0 0.0
  %1609 = vmatmul.mubr.f32.gmra.mrb[0].mxu0 %v1507
  %v1610 = vpop.f32.mrb[0].mxu0
  %v1611 = vadd.f32 0.0, %v1610
  %v1612 = vpop.f32.mrb[0].mxu0
  %1613 = vdwg.mxu0
  %v1615 = vsel %vm397, %v731, 0
  %v1618 = vsel %vm397, %v736, 0
  %v1621 = vsel %vm397, %v741, 0
  %v1624 = vsel %vm397, %v746, 0
  %v1627 = vsel %vm397, %v751, 0
  %v1630 = vsel %vm397, %v756, 0
  %v1633 = vsel %vm397, %v761, 0
  %v1636 = vsel %vm397, %v766, 0
  %1638 = vmatprep.subr.mxu0 0.0
  %1639 = vmatpush1.msra.mxu0 %v769
  %1640 = vmatprep.subr.mxu0 0.0
  %1641 = vmatpush1.msra.mxu0 %v770
  %1642 = vmatprep.subr.mxu0 0.0
  %1643 = vmatpush1.msra.mxu0 0.0
  %1644 = vmatprep.subr.mxu0 0.0
  %1645 = vmatpush1.msra.mxu0 0.0
  %1646 = vmatprep.subr.mxu0 0.0
  %1647 = vmatpush1.msra.mxu0 0.0
  %1648 = vmatprep.subr.mxu0 0.0
  %1649 = vmatpush1.msra.mxu0 0.0
  %1650 = vmatprep.subr.mxu0 0.0
  %1651 = vmatpush1.msra.mxu0 0.0
  %1652 = vmatprep.subr.mxu0 0.0
  %1653 = vmatpush1.msra.mxu0 0.0
  %1654 = vmatprep.subr.mxu0 0.0
  %1655 = vmatpush1.msra.mxu0 0.0
  %1656 = vmatprep.subr.mxu0 0.0
  %1657 = vmatpush1.msra.mxu0 0.0
  %1658 = vmatprep.subr.mxu0 0.0
  %1659 = vmatpush1.msra.mxu0 0.0
  %1660 = vmatprep.subr.mxu0 0.0
  %1661 = vmatpush1.msra.mxu0 0.0
  %1662 = vmatprep.subr.mxu0 0.0
  %1663 = vmatpush1.msra.mxu0 0.0
  %1664 = vmatprep.subr.mxu0 0.0
  %1665 = vmatpush1.msra.mxu0 0.0
  %1666 = vmatprep.subr.mxu0 0.0
  %1667 = vmatpush1.msra.mxu0 0.0
  %1668 = vmatprep.subr.mxu0 0.0
  %1669 = vmatpush1.msra.mxu0 0.0
  %1670 = vmatprep.subr.mxu0 0.0
  %1671 = vmatpush1.msra.mxu0 0.0
  %1672 = vmatprep.subr.mxu0 0.0
  %1673 = vmatpush1.msra.mxu0 0.0
  %1674 = vmatprep.subr.mxu0 0.0
  %1675 = vmatpush1.msra.mxu0 0.0
  %1676 = vmatprep.subr.mxu0 0.0
  %1677 = vmatpush1.msra.mxu0 0.0
  %1678 = vmatprep.subr.mxu0 0.0
  %1679 = vmatpush1.msra.mxu0 0.0
  %1680 = vmatprep.subr.mxu0 0.0
  %1681 = vmatpush1.msra.mxu0 0.0
  %1682 = vmatprep.subr.mxu0 0.0
  %1683 = vmatpush1.msra.mxu0 0.0
  %1684 = vmatprep.subr.mxu0 0.0
  %1685 = vmatpush1.msra.mxu0 0.0
  %1686 = vmatprep.subr.mxu0 0.0
  %1687 = vmatpush1.msra.mxu0 0.0
  %1688 = vmatprep.subr.mxu0 0.0
  %1689 = vmatpush1.msra.mxu0 0.0
  %1690 = vmatprep.subr.mxu0 0.0
  %1691 = vmatpush1.msra.mxu0 0.0
  %1692 = vmatprep.subr.mxu0 0.0
  %1693 = vmatpush1.msra.mxu0 0.0
  %1694 = vmatprep.subr.mxu0 0.0
  %1695 = vmatpush1.msra.mxu0 0.0
  %1696 = vmatprep.subr.mxu0 0.0
  %1697 = vmatpush1.msra.mxu0 0.0
  %1698 = vmatprep.subr.mxu0 0.0
  %1699 = vmatpush1.msra.mxu0 0.0
  %1700 = vmatprep.subr.mxu0 0.0
  %1701 = vmatpush1.msra.mxu0 0.0
  %1702 = vmatprep.mubr.f32.mxu0 0.0
  %1703 = vmatmul.mubr.f32.gmra.mrb[0].mxu0 %v1615
  %v1704 = vpop.f32.mrb[0].mxu0
  %v1705 = vadd.f32 %v1576, %v1704
  %v1706 = vpop.f32.mrb[0].mxu0
  %1707 = vmatprep.mubr.f32.mxu0 0.0
  %1708 = vmatmul.mubr.f32.gmra.mrb[0].mxu0 %v1618
  %v1709 = vpop.f32.mrb[0].mxu0
  %v1710 = vadd.f32 %v1581, %v1709
  %v1711 = vpop.f32.mrb[0].mxu0
  %1712 = vmatprep.mubr.f32.mxu0 0.0
  %1713 = vmatmul.mubr.f32.gmra.mrb[0].mxu0 %v1621
  %v1714 = vpop.f32.mrb[0].mxu0
  %v1715 = vadd.f32 %v1586, %v1714
  %v1716 = vpop.f32.mrb[0].mxu0
  %1717 = vmatprep.mubr.f32.mxu0 0.0
  %1718 = vmatmul.mubr.f32.gmra.mrb[0].mxu0 %v1624
  %v1719 = vpop.f32.mrb[0].mxu0
  %v1720 = vadd.f32 %v1591, %v1719
  %v1721 = vpop.f32.mrb[0].mxu0
  %1722 = vmatprep.mubr.f32.mxu0 0.0
  %1723 = vmatmul.mubr.f32.gmra.mrb[0].mxu0 %v1627
  %v1724 = vpop.f32.mrb[0].mxu0
  %v1725 = vadd.f32 %v1596, %v1724
  %v1726 = vpop.f32.mrb[0].mxu0
  %1727 = vmatprep.mubr.f32.mxu0 0.0
  %1728 = vmatmul.mubr.f32.gmra.mrb[0].mxu0 %v1630
  %v1729 = vpop.f32.mrb[0].mxu0
  %v1730 = vadd.f32 %v1601, %v1729
  %v1731 = vpop.f32.mrb[0].mxu0
  %1732 = vmatprep.mubr.f32.mxu0 0.0
  %1733 = vmatmul.mubr.f32.gmra.mrb[0].mxu0 %v1633
  %v1734 = vpop.f32.mrb[0].mxu0
  %v1735 = vadd.f32 %v1606, %v1734
  %v1736 = vpop.f32.mrb[0].mxu0
  %1737 = vmatprep.mubr.f32.mxu0 0.0
  %1738 = vmatmul.mubr.f32.gmra.mrb[0].mxu0 %v1636
  %v1739 = vpop.f32.mrb[0].mxu0
  %v1740 = vadd.f32 %v1611, %v1739
  %v1741 = vpop.f32.mrb[0].mxu0
  %1742 = vdwg.mxu0
  %v1743 = vld [vmem:[%s2 + $0x110] sm:$0x1]
  %v1744 = vlaneseq
  %v1745 = vshrl.u32 %v1744, 7
  %v1746 = vsub.s32 0, %v1745
  %v1747 = vrot.slane %v1743, %v1746
  %v1748 = vadd.f32 %v1705, %v1747
  %v1749 = vadd.f32 %v1710, %v1747
  %v1750 = vadd.f32 %v1715, %v1747
  %v1751 = vadd.f32 %v1720, %v1747
  %v1752 = vadd.f32 %v1725, %v1747
  %v1753 = vadd.f32 %v1730, %v1747
  %v1754 = vadd.f32 %v1735, %v1747
  %v1755 = vadd.f32 %v1740, %v1747
  %v1756 = vadd.f32 %v14, %v1748
  %v1757 = vadd.f32 %v15, %v1749
  %v1758 = vadd.f32 %v16, %v1750
  %v1759 = vadd.f32 %v17, %v1751
  %v1760 = vadd.f32 %v18, %v1752
  %v1761 = vadd.f32 %v19, %v1753
  %v1762 = vadd.f32 %v20, %v1754
  %v1763 = vadd.f32 %v21, %v1755
  %v1764 = vld [vmem:[%s2 + $0x118] sm:$0x1]
  %v1765 = vld [vmem:[%s2 + $0x120] sm:$0x1]
  %v1766 = vsel %vm39, %v1756, 0.0
  %1767 = vadd.xlane.f32.xlu0 %v1766
  %v1768 = vpop.xlane.xlu0 %1767
  %v1769 = vsel %vm39, %v1757, 0.0
  %1770 = vadd.xlane.f32.xlu0 %v1769
  %v1771 = vpop.xlane.xlu0 %1770
  %v1772 = vsel %vm39, %v1758, 0.0
  %1773 = vadd.xlane.f32.xlu0 %v1772
  %v1774 = vpop.xlane.xlu0 %1773
  %v1775 = vsel %vm39, %v1759, 0.0
  %1776 = vadd.xlane.f32.xlu0 %v1775
  %v1777 = vpop.xlane.xlu0 %1776
  %v1778 = vsel %vm39, %v1760, 0.0
  %1779 = vadd.xlane.f32.xlu0 %v1778
  %v1780 = vpop.xlane.xlu0 %1779
  %v1781 = vsel %vm39, %v1761, 0.0
  %1782 = vadd.xlane.f32.xlu0 %v1781
  %v1783 = vpop.xlane.xlu0 %1782
  %v1784 = vsel %vm39, %v1762, 0.0
  %1785 = vadd.xlane.f32.xlu0 %v1784
  %v1786 = vpop.xlane.xlu0 %1785
  %v1787 = vsel %vm39, %v1763, 0.0
  %1788 = vadd.xlane.f32.xlu0 %v1787
  %v1789 = vpop.xlane.xlu0 %1788
  %v1790 = vrcp.pop 32.0
  %v1791 = vmul.f32 %v1768, %v1790
  %v1792 = vmul.f32 %v1771, %v1790
  %v1793 = vmul.f32 %v1774, %v1790
  %v1794 = vmul.f32 %v1777, %v1790
  %v1795 = vmul.f32 %v1780, %v1790
  %v1796 = vmul.f32 %v1783, %v1790
  %v1797 = vmul.f32 %v1786, %v1790
  %v1798 = vmul.f32 %v1789, %v1790
  %v1799 = vsub.f32 %v1756, %v1791
  %v1800 = vsub.f32 %v1757, %v1792
  %v1801 = vsub.f32 %v1758, %v1793
  %v1802 = vsub.f32 %v1759, %v1794
  %v1803 = vsub.f32 %v1760, %v1795
  %v1804 = vsub.f32 %v1761, %v1796
  %v1805 = vsub.f32 %v1762, %v1797
  %v1806 = vsub.f32 %v1763, %v1798
  %v1807 = vmul.f32 %v1799, %v1799
  %v1808 = vmul.f32 %v1800, %v1800
  %v1809 = vmul.f32 %v1801, %v1801
  %v1810 = vmul.f32 %v1802, %v1802
  %v1811 = vmul.f32 %v1803, %v1803
  %v1812 = vmul.f32 %v1804, %v1804
  %v1813 = vmul.f32 %v1805, %v1805
  %v1814 = vmul.f32 %v1806, %v1806
  %v1815 = vsel %vm39, %v1807, 0.0
  %1816 = vadd.xlane.f32.xlu0 %v1815
  %v1817 = vpop.xlane.xlu0 %1816
  %v1818 = vsel %vm39, %v1808, 0.0
  %1819 = vadd.xlane.f32.xlu0 %v1818
  %v1820 = vpop.xlane.xlu0 %1819
  %v1821 = vsel %vm39, %v1809, 0.0
  %1822 = vadd.xlane.f32.xlu0 %v1821
  %v1823 = vpop.xlane.xlu0 %1822
  %v1824 = vsel %vm39, %v1810, 0.0
  %1825 = vadd.xlane.f32.xlu0 %v1824
  %v1826 = vpop.xlane.xlu0 %1825
  %v1827 = vsel %vm39, %v1811, 0.0
  %1828 = vadd.xlane.f32.xlu0 %v1827
  %v1829 = vpop.xlane.xlu0 %1828
  %v1830 = vsel %vm39, %v1812, 0.0
  %1831 = vadd.xlane.f32.xlu0 %v1830
  %v1832 = vpop.xlane.xlu0 %1831
  %v1833 = vsel %vm39, %v1813, 0.0
  %1834 = vadd.xlane.f32.xlu0 %v1833
  %v1835 = vpop.xlane.xlu0 %1834
  %v1836 = vsel %vm39, %v1814, 0.0
  %1837 = vadd.xlane.f32.xlu0 %v1836
  %v1838 = vpop.xlane.xlu0 %1837
  %v1839 = vmul.f32 %v1817, %v1790
  %v1840 = vmul.f32 %v1820, %v1790
  %v1841 = vmul.f32 %v1823, %v1790
  %v1842 = vmul.f32 %v1826, %v1790
  %v1843 = vmul.f32 %v1829, %v1790
  %v1844 = vmul.f32 %v1832, %v1790
  %v1845 = vmul.f32 %v1835, %v1790
  %v1846 = vmul.f32 %v1838, %v1790
  %v1847 = vadd.f32 %v1839, 1e-12
  %v1848 = vadd.f32 %v1840, 1e-12
  %v1849 = vadd.f32 %v1841, 1e-12
  %v1850 = vadd.f32 %v1842, 1e-12
  %v1851 = vadd.f32 %v1843, 1e-12
  %v1852 = vadd.f32 %v1844, 1e-12
  %v1853 = vadd.f32 %v1845, 1e-12
  %v1854 = vadd.f32 %v1846, 1e-12
  %v1855 = vrsqrt.pop %v1847
  %v1856 = vrsqrt.pop %v1848
  %v1857 = vrsqrt.pop %v1849
  %v1858 = vrsqrt.pop %v1850
  %v1859 = vrsqrt.pop %v1851
  %v1860 = vrsqrt.pop %v1852
  %v1861 = vrsqrt.pop %v1853
  %v1862 = vrsqrt.pop %v1854
  %v1863 = vmul.f32 %v1799, %v1855
  %v1864 = vmul.f32 %v1800, %v1856
  %v1865 = vmul.f32 %v1801, %v1857
  %v1866 = vmul.f32 %v1802, %v1858
  %v1867 = vmul.f32 %v1803, %v1859
  %v1868 = vmul.f32 %v1804, %v1860
  %v1869 = vmul.f32 %v1805, %v1861
  %v1870 = vmul.f32 %v1806, %v1862
  %v1871 = vlaneseq
  %v1872 = vshrl.u32 %v1871, 7
  %v1873 = vsub.s32 0, %v1872
  %v1874 = vrot.slane %v1764, %v1873
  %v1875 = vmul.f32 %v1863, %v1874
  %v1876 = vmul.f32 %v1864, %v1874
  %v1877 = vmul.f32 %v1865, %v1874
  %v1878 = vmul.f32 %v1866, %v1874
  %v1879 = vmul.f32 %v1867, %v1874
  %v1880 = vmul.f32 %v1868, %v1874
  %v1881 = vmul.f32 %v1869, %v1874
  %v1882 = vmul.f32 %v1870, %v1874
  %v1883 = vlaneseq
  %v1884 = vshrl.u32 %v1883, 7
  %v1885 = vsub.s32 0, %v1884
  %v1886 = vrot.slane %v1765, %v1885
  %v1887 = vadd.f32 %v1875, %v1886
  %v1888 = vadd.f32 %v1876, %v1886
  %v1889 = vadd.f32 %v1877, %v1886
  %v1890 = vadd.f32 %v1878, %v1886
  %v1891 = vadd.f32 %v1879, %v1886
  %v1892 = vadd.f32 %v1880, %v1886
  %v1893 = vadd.f32 %v1881, %v1886
  %v1894 = vadd.f32 %v1882, %v1886
  %v1895 = vld [vmem:[%s2 + $0x128] sm:$0xff]
  %v1896 = vld [vmem:[%s2 + $0x130] sm:$0xff]
  %v1897 = vld [vmem:[%s2 + $0x138] sm:$0xff]
  %v1898 = vld [vmem:[%s2 + $0x140] sm:$0xff]
  %v1899 = vld [vmem:[%s2 + $0x148] sm:$0x1]
  %v1900 = vlaneseq
  %v1901 = vshrl.u32 %v1900, 7
  %v1902 = vsub.s32 0, %v1901
  %v1903 = vrot.slane %v1899, %v1902
  %v1905 = vsel %vm39, %v1887, 0
  %v1908 = vsel %vm39, %v1888, 0
  %v1911 = vsel %vm39, %v1889, 0
  %v1914 = vsel %vm39, %v1890, 0
  %v1917 = vsel %vm39, %v1891, 0
  %v1920 = vsel %vm39, %v1892, 0
  %v1923 = vsel %vm39, %v1893, 0
  %v1926 = vsel %vm39, %v1894, 0
  %1928 = vmatprep.subr.mxu0 0.0
  %1929 = vmatpush1.msra.mxu0 %v1895
  %1930 = vmatprep.subr.mxu0 0.0
  %1931 = vmatpush1.msra.mxu0 %v1896
  %1932 = vmatprep.subr.mxu0 0.0
  %1933 = vmatpush1.msra.mxu0 %v1897
  %1934 = vmatprep.subr.mxu0 0.0
  %1935 = vmatpush1.msra.mxu0 %v1898
  %1936 = vmatprep.subr.mxu0 0.0
  %1937 = vmatpush1.msra.mxu0 0.0
  %1938 = vmatprep.subr.mxu0 0.0
  %1939 = vmatpush1.msra.mxu0 0.0
  %1940 = vmatprep.subr.mxu0 0.0
  %1941 = vmatpush1.msra.mxu0 0.0
  %1942 = vmatprep.subr.mxu0 0.0
  %1943 = vmatpush1.msra.mxu0 0.0
  %1944 = vmatprep.subr.mxu0 0.0
  %1945 = vmatpush1.msra.mxu0 0.0
  %1946 = vmatprep.subr.mxu0 0.0
  %1947 = vmatpush1.msra.mxu0 0.0
  %1948 = vmatprep.subr.mxu0 0.0
  %1949 = vmatpush1.msra.mxu0 0.0
  %1950 = vmatprep.subr.mxu0 0.0
  %1951 = vmatpush1.msra.mxu0 0.0
  %1952 = vmatprep.subr.mxu0 0.0
  %1953 = vmatpush1.msra.mxu0 0.0
  %1954 = vmatprep.subr.mxu0 0.0
  %1955 = vmatpush1.msra.mxu0 0.0
  %1956 = vmatprep.subr.mxu0 0.0
  %1957 = vmatpush1.msra.mxu0 0.0
  %1958 = vmatprep.subr.mxu0 0.0
  %1959 = vmatpush1.msra.mxu0 0.0
  %1960 = vmatprep.subr.mxu0 0.0
  %1961 = vmatpush1.msra.mxu0 0.0
  %1962 = vmatprep.subr.mxu0 0.0
  %1963 = vmatpush1.msra.mxu0 0.0
  %1964 = vmatprep.subr.mxu0 0.0
  %1965 = vmatpush1.msra.mxu0 0.0
  %1966 = vmatprep.subr.mxu0 0.0
  %1967 = vmatpush1.msra.mxu0 0.0
  %1968 = vmatprep.subr.mxu0 0.0
  %1969 = vmatpush1.msra.mxu0 0.0
  %1970 = vmatprep.subr.mxu0 0.0
  %1971 = vmatpush1.msra.mxu0 0.0
  %1972 = vmatprep.subr.mxu0 0.0
  %1973 = vmatpush1.msra.mxu0 0.0
  %1974 = vmatprep.subr.mxu0 0.0
  %1975 = vmatpush1.msra.mxu0 0.0
  %1976 = vmatprep.subr.mxu0 0.0
  %1977 = vmatpush1.msra.mxu0 0.0
  %1978 = vmatprep.subr.mxu0 0.0
  %1979 = vmatpush1.msra.mxu0 0.0
  %1980 = vmatprep.subr.mxu0 0.0
  %1981 = vmatpush1.msra.mxu0 0.0
  %1982 = vmatprep.subr.mxu0 0.0
  %1983 = vmatpush1.msra.mxu0 0.0
  %1984 = vmatprep.subr.mxu0 0.0
  %1985 = vmatpush1.msra.mxu0 0.0
  %1986 = vmatprep.subr.mxu0 0.0
  %1987 = vmatpush1.msra.mxu0 0.0
  %1988 = vmatprep.subr.mxu0 0.0
  %1989 = vmatpush1.msra.mxu0 0.0
  %1990 = vmatprep.subr.mxu0 0.0
  %1991 = vmatpush1.msra.mxu0 0.0
  %1992 = vmatprep.mubr.f32.mxu0 0.0
  %1993 = vmatmul.mubr.f32.gmra.mrb[0].mxu0 %v1905
  %v1994 = vpop.f32.mrb[0].mxu0
  %v1995 = vadd.f32 %v1903, %v1994
  %v1996 = vpop.f32.mrb[0].mxu0
  %1997 = vmatprep.mubr.f32.mxu0 0.0
  %1998 = vmatmul.mubr.f32.gmra.mrb[0].mxu0 %v1908
  %v1999 = vpop.f32.mrb[0].mxu0
  %v2000 = vadd.f32 %v1903, %v1999
  %v2001 = vpop.f32.mrb[0].mxu0
  %2002 = vmatprep.mubr.f32.mxu0 0.0
  %2003 = vmatmul.mubr.f32.gmra.mrb[0].mxu0 %v1911
  %v2004 = vpop.f32.mrb[0].mxu0
  %v2005 = vadd.f32 %v1903, %v2004
  %v2006 = vpop.f32.mrb[0].mxu0
  %2007 = vmatprep.mubr.f32.mxu0 0.0
  %2008 = vmatmul.mubr.f32.gmra.mrb[0].mxu0 %v1914
  %v2009 = vpop.f32.mrb[0].mxu0
  %v2010 = vadd.f32 %v1903, %v2009
  %v2011 = vpop.f32.mrb[0].mxu0
  %2012 = vmatprep.mubr.f32.mxu0 0.0
  %2013 = vmatmul.mubr.f32.gmra.mrb[0].mxu0 %v1917
  %v2014 = vpop.f32.mrb[0].mxu0
  %v2015 = vadd.f32 %v1903, %v2014
  %v2016 = vpop.f32.mrb[0].mxu0
  %2017 = vmatprep.mubr.f32.mxu0 0.0
  %2018 = vmatmul.mubr.f32.gmra.mrb[0].mxu0 %v1920
  %v2019 = vpop.f32.mrb[0].mxu0
  %v2020 = vadd.f32 %v1903, %v2019
  %v2021 = vpop.f32.mrb[0].mxu0
  %2022 = vmatprep.mubr.f32.mxu0 0.0
  %2023 = vmatmul.mubr.f32.gmra.mrb[0].mxu0 %v1923
  %v2024 = vpop.f32.mrb[0].mxu0
  %v2025 = vadd.f32 %v1903, %v2024
  %v2026 = vpop.f32.mrb[0].mxu0
  %2027 = vmatprep.mubr.f32.mxu0 0.0
  %2028 = vmatmul.mubr.f32.gmra.mrb[0].mxu0 %v1926
  %v2029 = vpop.f32.mrb[0].mxu0
  %v2030 = vadd.f32 %v1903, %v2029
  %v2031 = vpop.f32.mrb[0].mxu0
  %2032 = vdwg.mxu0
  %v2033 = vmul.f32 %v1995, 0.5
  %v2034 = vmul.f32 %v2000, 0.5
  %v2035 = vmul.f32 %v2005, 0.5
  %v2036 = vmul.f32 %v2010, 0.5
  %v2037 = vmul.f32 %v2015, 0.5
  %v2038 = vmul.f32 %v2020, 0.5
  %v2039 = vmul.f32 %v2025, 0.5
  %v2040 = vmul.f32 %v2030, 0.5
  %v2041 = vmul.f32 %v1995, 0.044715
  %v2042 = vmul.f32 %v2000, 0.044715
  %v2043 = vmul.f32 %v2005, 0.044715
  %v2044 = vmul.f32 %v2010, 0.044715
  %v2045 = vmul.f32 %v2015, 0.044715
  %v2046 = vmul.f32 %v2020, 0.044715
  %v2047 = vmul.f32 %v2025, 0.044715
  %v2048 = vmul.f32 %v2030, 0.044715
  %v2049 = vmul.f32 %v2041, %v1995
  %v2050 = vmul.f32 %v2042, %v2000
  %v2051 = vmul.f32 %v2043, %v2005
  %v2052 = vmul.f32 %v2044, %v2010
  %v2053 = vmul.f32 %v2045, %v2015
  %v2054 = vmul.f32 %v2046, %v2020
  %v2055 = vmul.f32 %v2047, %v2025
  %v2056 = vmul.f32 %v2048, %v2030
  %v2057 = vmul.f32 %v2049, %v1995
  %v2058 = vmul.f32 %v2050, %v2000
  %v2059 = vmul.f32 %v2051, %v2005
  %v2060 = vmul.f32 %v2052, %v2010
  %v2061 = vmul.f32 %v2053, %v2015
  %v2062 = vmul.f32 %v2054, %v2020
  %v2063 = vmul.f32 %v2055, %v2025
  %v2064 = vmul.f32 %v2056, %v2030
  %v2065 = vadd.f32 %v1995, %v2057
  %v2066 = vadd.f32 %v2000, %v2058
  %v2067 = vadd.f32 %v2005, %v2059
  %v2068 = vadd.f32 %v2010, %v2060
  %v2069 = vadd.f32 %v2015, %v2061
  %v2070 = vadd.f32 %v2020, %v2062
  %v2071 = vadd.f32 %v2025, %v2063
  %v2072 = vadd.f32 %v2030, %v2064
  %v2073 = vmul.f32 %v2065, 0.7978846
  %v2074 = vmul.f32 %v2066, 0.7978846
  %v2075 = vmul.f32 %v2067, 0.7978846
  %v2076 = vmul.f32 %v2068, 0.7978846
  %v2077 = vmul.f32 %v2069, 0.7978846
  %v2078 = vmul.f32 %v2070, 0.7978846
  %v2079 = vmul.f32 %v2071, 0.7978846
  %v2080 = vmul.f32 %v2072, 0.7978846
  %v2081 = vtanh.pop %v2073
  %v2082 = vtanh.pop %v2074
  %v2083 = vtanh.pop %v2075
  %v2084 = vtanh.pop %v2076
  %v2085 = vtanh.pop %v2077
  %v2086 = vtanh.pop %v2078
  %v2087 = vtanh.pop %v2079
  %v2088 = vtanh.pop %v2080
  %v2089 = vadd.f32 %v2081, 1.0
  %v2090 = vadd.f32 %v2082, 1.0
  %v2091 = vadd.f32 %v2083, 1.0
  %v2092 = vadd.f32 %v2084, 1.0
  %v2093 = vadd.f32 %v2085, 1.0
  %v2094 = vadd.f32 %v2086, 1.0
  %v2095 = vadd.f32 %v2087, 1.0
  %v2096 = vadd.f32 %v2088, 1.0
  %v2097 = vmul.f32 %v2033, %v2089
  %v2098 = vmul.f32 %v2034, %v2090
  %v2099 = vmul.f32 %v2035, %v2091
  %v2100 = vmul.f32 %v2036, %v2092
  %v2101 = vmul.f32 %v2037, %v2093
  %v2102 = vmul.f32 %v2038, %v2094
  %v2103 = vmul.f32 %v2039, %v2095
  %v2104 = vmul.f32 %v2040, %v2096
  %v2105 = vld [vmem:[%s2 + $0x150] sm:$0xff]
  %v2106 = vld [vmem:[%s2 + $0x158] sm:$0xff]
  %v2107 = vld [vmem:[%s2 + $0x160] sm:$0xff]
  %v2108 = vld [vmem:[%s2 + $0x168] sm:$0xff]
  %v2109 = vld [vmem:[%s2 + $0x170] sm:$0xff]
  %v2110 = vld [vmem:[%s2 + $0x178] sm:$0xff]
  %v2111 = vld [vmem:[%s2 + $0x180] sm:$0xff]
  %v2112 = vld [vmem:[%s2 + $0x188] sm:$0xff]
  %v2113 = vld [vmem:[%s2 + $0x190] sm:$0x1]
  %v2114 = vlaneseq
  %v2115 = vshrl.u32 %v2114, 7
  %v2116 = vsub.s32 0, %v2115
  %v2117 = vrot.slane %v2113, %v2116
  %v2119 = vsel %vm551, %v2097, 0
  %v2122 = vsel %vm551, %v2098, 0
  %v2125 = vsel %vm551, %v2099, 0
  %v2128 = vsel %vm551, %v2100, 0
  %v2131 = vsel %vm551, %v2101, 0
  %v2134 = vsel %vm551, %v2102, 0
  %v2137 = vsel %vm551, %v2103, 0
  %v2140 = vsel %vm551, %v2104, 0
  %2142 = vmatprep.subr.mxu0 0.0
  %2143 = vmatpush1.msra.mxu0 %v2105
  %2144 = vmatprep.subr.mxu0 0.0
  %2145 = vmatpush1.msra.mxu0 %v2106
  %2146 = vmatprep.subr.mxu0 0.0
  %2147 = vmatpush1.msra.mxu0 %v2107
  %2148 = vmatprep.subr.mxu0 0.0
  %2149 = vmatpush1.msra.mxu0 %v2108
  %2150 = vmatprep.subr.mxu0 0.0
  %2151 = vmatpush1.msra.mxu0 %v2109
  %2152 = vmatprep.subr.mxu0 0.0
  %2153 = vmatpush1.msra.mxu0 %v2110
  %2154 = vmatprep.subr.mxu0 0.0
  %2155 = vmatpush1.msra.mxu0 %v2111
  %2156 = vmatprep.subr.mxu0 0.0
  %2157 = vmatpush1.msra.mxu0 %v2112
  %2158 = vmatprep.subr.mxu0 0.0
  %2159 = vmatpush1.msra.mxu0 0.0
  %2160 = vmatprep.subr.mxu0 0.0
  %2161 = vmatpush1.msra.mxu0 0.0
  %2162 = vmatprep.subr.mxu0 0.0
  %2163 = vmatpush1.msra.mxu0 0.0
  %2164 = vmatprep.subr.mxu0 0.0
  %2165 = vmatpush1.msra.mxu0 0.0
  %2166 = vmatprep.subr.mxu0 0.0
  %2167 = vmatpush1.msra.mxu0 0.0
  %2168 = vmatprep.subr.mxu0 0.0
  %2169 = vmatpush1.msra.mxu0 0.0
  %2170 = vmatprep.subr.mxu0 0.0
  %2171 = vmatpush1.msra.mxu0 0.0
  %2172 = vmatprep.subr.mxu0 0.0
  %2173 = vmatpush1.msra.mxu0 0.0
  %2174 = vmatprep.subr.mxu0 0.0
  %2175 = vmatpush1.msra.mxu0 0.0
  %2176 = vmatprep.subr.mxu0 0.0
  %2177 = vmatpush1.msra.mxu0 0.0
  %2178 = vmatprep.subr.mxu0 0.0
  %2179 = vmatpush1.msra.mxu0 0.0
  %2180 = vmatprep.subr.mxu0 0.0
  %2181 = vmatpush1.msra.mxu0 0.0
  %2182 = vmatprep.subr.mxu0 0.0
  %2183 = vmatpush1.msra.mxu0 0.0
  %2184 = vmatprep.subr.mxu0 0.0
  %2185 = vmatpush1.msra.mxu0 0.0
  %2186 = vmatprep.subr.mxu0 0.0
  %2187 = vmatpush1.msra.mxu0 0.0
  %2188 = vmatprep.subr.mxu0 0.0
  %2189 = vmatpush1.msra.mxu0 0.0
  %2190 = vmatprep.subr.mxu0 0.0
  %2191 = vmatpush1.msra.mxu0 0.0
  %2192 = vmatprep.subr.mxu0 0.0
  %2193 = vmatpush1.msra.mxu0 0.0
  %2194 = vmatprep.subr.mxu0 0.0
  %2195 = vmatpush1.msra.mxu0 0.0
  %2196 = vmatprep.subr.mxu0 0.0
  %2197 = vmatpush1.msra.mxu0 0.0
  %2198 = vmatprep.subr.mxu0 0.0
  %2199 = vmatpush1.msra.mxu0 0.0
  %2200 = vmatprep.subr.mxu0 0.0
  %2201 = vmatpush1.msra.mxu0 0.0
  %2202 = vmatprep.subr.mxu0 0.0
  %2203 = vmatpush1.msra.mxu0 0.0
  %2204 = vmatprep.subr.mxu0 0.0
  %2205 = vmatpush1.msra.mxu0 0.0
  %2206 = vmatprep.mubr.f32.mxu0 0.0
  %2207 = vmatmul.mubr.f32.gmra.mrb[0].mxu0 %v2119
  %v2208 = vpop.f32.mrb[0].mxu0
  %v2209 = vadd.f32 %v2117, %v2208
  %v2210 = vpop.f32.mrb[0].mxu0
  %2211 = vmatprep.mubr.f32.mxu0 0.0
  %2212 = vmatmul.mubr.f32.gmra.mrb[0].mxu0 %v2122
  %v2213 = vpop.f32.mrb[0].mxu0
  %v2214 = vadd.f32 %v2117, %v2213
  %v2215 = vpop.f32.mrb[0].mxu0
  %2216 = vmatprep.mubr.f32.mxu0 0.0
  %2217 = vmatmul.mubr.f32.gmra.mrb[0].mxu0 %v2125
  %v2218 = vpop.f32.mrb[0].mxu0
  %v2219 = vadd.f32 %v2117, %v2218
  %v2220 = vpop.f32.mrb[0].mxu0
  %2221 = vmatprep.mubr.f32.mxu0 0.0
  %2222 = vmatmul.mubr.f32.gmra.mrb[0].mxu0 %v2128
  %v2223 = vpop.f32.mrb[0].mxu0
  %v2224 = vadd.f32 %v2117, %v2223
  %v2225 = vpop.f32.mrb[0].mxu0
  %2226 = vmatprep.mubr.f32.mxu0 0.0
  %2227 = vmatmul.mubr.f32.gmra.mrb[0].mxu0 %v2131
  %v2228 = vpop.f32.mrb[0].mxu0
  %v2229 = vadd.f32 %v2117, %v2228
  %v2230 = vpop.f32.mrb[0].mxu0
  %2231 = vmatprep.mubr.f32.mxu0 0.0
  %2232 = vmatmul.mubr.f32.gmra.mrb[0].mxu0 %v2134
  %v2233 = vpop.f32.mrb[0].mxu0
  %v2234 = vadd.f32 %v2117, %v2233
  %v2235 = vpop.f32.mrb[0].mxu0
  %2236 = vmatprep.mubr.f32.mxu0 0.0
  %2237 = vmatmul.mubr.f32.gmra.mrb[0].mxu0 %v2137
  %v2238 = vpop.f32.mrb[0].mxu0
  %v2239 = vadd.f32 %v2117, %v2238
  %v2240 = vpop.f32.mrb[0].mxu0
  %2241 = vmatprep.mubr.f32.mxu0 0.0
  %2242 = vmatmul.mubr.f32.gmra.mrb[0].mxu0 %v2140
  %v2243 = vpop.f32.mrb[0].mxu0
  %v2244 = vadd.f32 %v2117, %v2243
  %v2245 = vpop.f32.mrb[0].mxu0
  %2246 = vdwg.mxu0
  %v2247 = vadd.f32 %v1887, %v2209
  %v2248 = vadd.f32 %v1888, %v2214
  %v2249 = vadd.f32 %v1889, %v2219
  %v2250 = vadd.f32 %v1890, %v2224
  %v2251 = vadd.f32 %v1891, %v2229
  %v2252 = vadd.f32 %v1892, %v2234
  %v2253 = vadd.f32 %v1893, %v2239
  %v2254 = vadd.f32 %v1894, %v2244
  %v2255 = vld [vmem:[%s2 + $0x198] sm:$0x1]
  %v2256 = vld [vmem:[%s2 + $0x1a0] sm:$0x1]
  %v2257 = vsel %vm39, %v2247, 0.0
  %2258 = vadd.xlane.f32.xlu0 %v2257
  %v2259 = vpop.xlane.xlu0 %2258
  %v2260 = vsel %vm39, %v2248, 0.0
  %2261 = vadd.xlane.f32.xlu0 %v2260
  %v2262 = vpop.xlane.xlu0 %2261
  %v2263 = vsel %vm39, %v2249, 0.0
  %2264 = vadd.xlane.f32.xlu0 %v2263
  %v2265 = vpop.xlane.xlu0 %2264
  %v2266 = vsel %vm39, %v2250, 0.0
  %2267 = vadd.xlane.f32.xlu0 %v2266
  %v2268 = vpop.xlane.xlu0 %2267
  %v2269 = vsel %vm39, %v2251, 0.0
  %2270 = vadd.xlane.f32.xlu0 %v2269
  %v2271 = vpop.xlane.xlu0 %2270
  %v2272 = vsel %vm39, %v2252, 0.0
  %2273 = vadd.xlane.f32.xlu0 %v2272
  %v2274 = vpop.xlane.xlu0 %2273
  %v2275 = vsel %vm39, %v2253, 0.0
  %2276 = vadd.xlane.f32.xlu0 %v2275
  %v2277 = vpop.xlane.xlu0 %2276
  %v2278 = vsel %vm39, %v2254, 0.0
  %2279 = vadd.xlane.f32.xlu0 %v2278
  %v2280 = vpop.xlane.xlu0 %2279
  %v2281 = vmul.f32 %v2259, %v1790
  %v2282 = vmul.f32 %v2262, %v1790
  %v2283 = vmul.f32 %v2265, %v1790
  %v2284 = vmul.f32 %v2268, %v1790
  %v2285 = vmul.f32 %v2271, %v1790
  %v2286 = vmul.f32 %v2274, %v1790
  %v2287 = vmul.f32 %v2277, %v1790
  %v2288 = vmul.f32 %v2280, %v1790
  %v2289 = vsub.f32 %v2247, %v2281
  %v2290 = vsub.f32 %v2248, %v2282
  %v2291 = vsub.f32 %v2249, %v2283
  %v2292 = vsub.f32 %v2250, %v2284
  %v2293 = vsub.f32 %v2251, %v2285
  %v2294 = vsub.f32 %v2252, %v2286
  %v2295 = vsub.f32 %v2253, %v2287
  %v2296 = vsub.f32 %v2254, %v2288
  %v2297 = vmul.f32 %v2289, %v2289
  %v2298 = vmul.f32 %v2290, %v2290
  %v2299 = vmul.f32 %v2291, %v2291
  %v2300 = vmul.f32 %v2292, %v2292
  %v2301 = vmul.f32 %v2293, %v2293
  %v2302 = vmul.f32 %v2294, %v2294
  %v2303 = vmul.f32 %v2295, %v2295
  %v2304 = vmul.f32 %v2296, %v2296
  %v2305 = vsel %vm39, %v2297, 0.0
  %2306 = vadd.xlane.f32.xlu0 %v2305
  %v2307 = vpop.xlane.xlu0 %2306
  %v2308 = vsel %vm39, %v2298, 0.0
  %2309 = vadd.xlane.f32.xlu0 %v2308
  %v2310 = vpop.xlane.xlu0 %2309
  %v2311 = vsel %vm39, %v2299, 0.0
  %2312 = vadd.xlane.f32.xlu0 %v2311
  %v2313 = vpop.xlane.xlu0 %2312
  %v2314 = vsel %vm39, %v2300, 0.0
  %2315 = vadd.xlane.f32.xlu0 %v2314
  %v2316 = vpop.xlane.xlu0 %2315
  %v2317 = vsel %vm39, %v2301, 0.0
  %2318 = vadd.xlane.f32.xlu0 %v2317
  %v2319 = vpop.xlane.xlu0 %2318
  %v2320 = vsel %vm39, %v2302, 0.0
  %2321 = vadd.xlane.f32.xlu0 %v2320
  %v2322 = vpop.xlane.xlu0 %2321
  %v2323 = vsel %vm39, %v2303, 0.0
  %2324 = vadd.xlane.f32.xlu0 %v2323
  %v2325 = vpop.xlane.xlu0 %2324
  %v2326 = vsel %vm39, %v2304, 0.0
  %2327 = vadd.xlane.f32.xlu0 %v2326
  %v2328 = vpop.xlane.xlu0 %2327
  %v2329 = vmul.f32 %v2307, %v1790
  %v2330 = vmul.f32 %v2310, %v1790
  %v2331 = vmul.f32 %v2313, %v1790
  %v2332 = vmul.f32 %v2316, %v1790
  %v2333 = vmul.f32 %v2319, %v1790
  %v2334 = vmul.f32 %v2322, %v1790
  %v2335 = vmul.f32 %v2325, %v1790
  %v2336 = vmul.f32 %v2328, %v1790
  %v2337 = vadd.f32 %v2329, 1e-12
  %v2338 = vadd.f32 %v2330, 1e-12
  %v2339 = vadd.f32 %v2331, 1e-12
  %v2340 = vadd.f32 %v2332, 1e-12
  %v2341 = vadd.f32 %v2333, 1e-12
  %v2342 = vadd.f32 %v2334, 1e-12
  %v2343 = vadd.f32 %v2335, 1e-12
  %v2344 = vadd.f32 %v2336, 1e-12
  %v2345 = vrsqrt.pop %v2337
  %v2346 = vrsqrt.pop %v2338
  %v2347 = vrsqrt.pop %v2339
  %v2348 = vrsqrt.pop %v2340
  %v2349 = vrsqrt.pop %v2341
  %v2350 = vrsqrt.pop %v2342
  %v2351 = vrsqrt.pop %v2343
  %v2352 = vrsqrt.pop %v2344
  %v2353 = vmul.f32 %v2289, %v2345
  %v2354 = vmul.f32 %v2290, %v2346
  %v2355 = vmul.f32 %v2291, %v2347
  %v2356 = vmul.f32 %v2292, %v2348
  %v2357 = vmul.f32 %v2293, %v2349
  %v2358 = vmul.f32 %v2294, %v2350
  %v2359 = vmul.f32 %v2295, %v2351
  %v2360 = vmul.f32 %v2296, %v2352
  %v2361 = vlaneseq
  %v2362 = vshrl.u32 %v2361, 7
  %v2363 = vsub.s32 0, %v2362
  %v2364 = vrot.slane %v2255, %v2363
  %v2365 = vmul.f32 %v2353, %v2364
  %v2366 = vmul.f32 %v2354, %v2364
  %v2367 = vmul.f32 %v2355, %v2364
  %v2368 = vmul.f32 %v2356, %v2364
  %v2369 = vmul.f32 %v2357, %v2364
  %v2370 = vmul.f32 %v2358, %v2364
  %v2371 = vmul.f32 %v2359, %v2364
  %v2372 = vmul.f32 %v2360, %v2364
  %v2373 = vlaneseq
  %v2374 = vshrl.u32 %v2373, 7
  %v2375 = vsub.s32 0, %v2374
  %v2376 = vrot.slane %v2256, %v2375
  %v2377 = vadd.f32 %v2365, %v2376
  %v2378 = vadd.f32 %v2366, %v2376
  %v2379 = vadd.f32 %v2367, %v2376
  %v2380 = vadd.f32 %v2368, %v2376
  %v2381 = vadd.f32 %v2369, %v2376
  %v2382 = vadd.f32 %v2370, %v2376
  %v2383 = vadd.f32 %v2371, %v2376
  %v2384 = vadd.f32 %v2372, %v2376
  %v2385 = vld [vmem:[%s2 + $0x1a8] sm:$0xff]
  %v2386 = vld [vmem:[%s2 + $0x1b0] sm:$0xff]
  %v2387 = vld [vmem:[%s2 + $0x1b8] sm:$0xff]
  %v2388 = vld [vmem:[%s2 + $0x1c0] sm:$0xff]
  %v2389 = vld [vmem:[%s2 + $0x218] sm:$0x1]
  %v2390 = vlaneseq
  %v2391 = vshrl.u32 %v2390, 7
  %v2392 = vsub.s32 0, %v2391
  %v2393 = vrot.slane %v2389, %v2392
  %v2395 = vsel %vm39, %v2377, 0
  %v2398 = vsel %vm39, %v2378, 0
  %v2401 = vsel %vm39, %v2379, 0
  %v2404 = vsel %vm39, %v2380, 0
  %v2407 = vsel %vm39, %v2381, 0
  %v2410 = vsel %vm39, %v2382, 0
  %v2413 = vsel %vm39, %v2383, 0
  %v2416 = vsel %vm39, %v2384, 0
  %2418 = vmatprep.subr.mxu0 0.0
  %2419 = vmatpush1.msra.mxu0 %v2385
  %2420 = vmatprep.subr.mxu0 0.0
  %2421 = vmatpush1.msra.mxu0 %v2386
  %2422 = vmatprep.subr.mxu0 0.0
  %2423 = vmatpush1.msra.mxu0 %v2387
  %2424 = vmatprep.subr.mxu0 0.0
  %2425 = vmatpush1.msra.mxu0 %v2388
  %2426 = vmatprep.subr.mxu0 0.0
  %2427 = vmatpush1.msra.mxu0 0.0
  %2428 = vmatprep.subr.mxu0 0.0
  %2429 = vmatpush1.msra.mxu0 0.0
  %2430 = vmatprep.subr.mxu0 0.0
  %2431 = vmatpush1.msra.mxu0 0.0
  %2432 = vmatprep.subr.mxu0 0.0
  %2433 = vmatpush1.msra.mxu0 0.0
  %2434 = vmatprep.subr.mxu0 0.0
  %2435 = vmatpush1.msra.mxu0 0.0
  %2436 = vmatprep.subr.mxu0 0.0
  %2437 = vmatpush1.msra.mxu0 0.0
  %2438 = vmatprep.subr.mxu0 0.0
  %2439 = vmatpush1.msra.mxu0 0.0
  %2440 = vmatprep.subr.mxu0 0.0
  %2441 = vmatpush1.msra.mxu0 0.0
  %2442 = vmatprep.subr.mxu0 0.0
  %2443 = vmatpush1.msra.mxu0 0.0
  %2444 = vmatprep.subr.mxu0 0.0
  %2445 = vmatpush1.msra.mxu0 0.0
  %2446 = vmatprep.subr.mxu0 0.0
  %2447 = vmatpush1.msra.mxu0 0.0
  %2448 = vmatprep.subr.mxu0 0.0
  %2449 = vmatpush1.msra.mxu0 0.0
  %2450 = vmatprep.subr.mxu0 0.0
  %2451 = vmatpush1.msra.mxu0 0.0
  %2452 = vmatprep.subr.mxu0 0.0
  %2453 = vmatpush1.msra.mxu0 0.0
  %2454 = vmatprep.subr.mxu0 0.0
  %2455 = vmatpush1.msra.mxu0 0.0
  %2456 = vmatprep.subr.mxu0 0.0
  %2457 = vmatpush1.msra.mxu0 0.0
  %2458 = vmatprep.subr.mxu0 0.0
  %2459 = vmatpush1.msra.mxu0 0.0
  %2460 = vmatprep.subr.mxu0 0.0
  %2461 = vmatpush1.msra.mxu0 0.0
  %2462 = vmatprep.subr.mxu0 0.0
  %2463 = vmatpush1.msra.mxu0 0.0
  %2464 = vmatprep.subr.mxu0 0.0
  %2465 = vmatpush1.msra.mxu0 0.0
  %2466 = vmatprep.subr.mxu0 0.0
  %2467 = vmatpush1.msra.mxu0 0.0
  %2468 = vmatprep.subr.mxu0 0.0
  %2469 = vmatpush1.msra.mxu0 0.0
  %2470 = vmatprep.subr.mxu0 0.0
  %2471 = vmatpush1.msra.mxu0 0.0
  %2472 = vmatprep.subr.mxu0 0.0
  %2473 = vmatpush1.msra.mxu0 0.0
  %2474 = vmatprep.subr.mxu0 0.0
  %2475 = vmatpush1.msra.mxu0 0.0
  %2476 = vmatprep.subr.mxu0 0.0
  %2477 = vmatpush1.msra.mxu0 0.0
  %2478 = vmatprep.subr.mxu0 0.0
  %2479 = vmatpush1.msra.mxu0 0.0
  %2480 = vmatprep.subr.mxu0 0.0
  %2481 = vmatpush1.msra.mxu0 0.0
  %2482 = vmatprep.mubr.f32.mxu0 0.0
  %2483 = vmatmul.mubr.f32.gmra.mrb[0].mxu0 %v2395
  %v2484 = vpop.f32.mrb[0].mxu0
  %v2485 = vadd.f32 %v2393, %v2484
  %v2486 = vpop.f32.mrb[0].mxu0
  %2487 = vmatprep.mubr.f32.mxu0 0.0
  %2488 = vmatmul.mubr.f32.gmra.mrb[0].mxu0 %v2398
  %v2489 = vpop.f32.mrb[0].mxu0
  %v2490 = vadd.f32 %v2393, %v2489
  %v2491 = vpop.f32.mrb[0].mxu0
  %2492 = vmatprep.mubr.f32.mxu0 0.0
  %2493 = vmatmul.mubr.f32.gmra.mrb[0].mxu0 %v2401
  %v2494 = vpop.f32.mrb[0].mxu0
  %v2495 = vadd.f32 %v2393, %v2494
  %v2496 = vpop.f32.mrb[0].mxu0
  %2497 = vmatprep.mubr.f32.mxu0 0.0
  %2498 = vmatmul.mubr.f32.gmra.mrb[0].mxu0 %v2404
  %v2499 = vpop.f32.mrb[0].mxu0
  %v2500 = vadd.f32 %v2393, %v2499
  %v2501 = vpop.f32.mrb[0].mxu0
  %2502 = vmatprep.mubr.f32.mxu0 0.0
  %2503 = vmatmul.mubr.f32.gmra.mrb[0].mxu0 %v2407
  %v2504 = vpop.f32.mrb[0].mxu0
  %v2505 = vadd.f32 %v2393, %v2504
  %v2506 = vpop.f32.mrb[0].mxu0
  %2507 = vmatprep.mubr.f32.mxu0 0.0
  %2508 = vmatmul.mubr.f32.gmra.mrb[0].mxu0 %v2410
  %v2509 = vpop.f32.mrb[0].mxu0
  %v2510 = vadd.f32 %v2393, %v2509
  %v2511 = vpop.f32.mrb[0].mxu0
  %2512 = vmatprep.mubr.f32.mxu0 0.0
  %2513 = vmatmul.mubr.f32.gmra.mrb[0].mxu0 %v2413
  %v2514 = vpop.f32.mrb[0].mxu0
  %v2515 = vadd.f32 %v2393, %v2514
  %v2516 = vpop.f32.mrb[0].mxu0
  %2517 = vmatprep.mubr.f32.mxu0 0.0
  %2518 = vmatmul.mubr.f32.gmra.mrb[0].mxu0 %v2416
  %v2519 = vpop.f32.mrb[0].mxu0
  %v2520 = vadd.f32 %v2393, %v2519
  %v2521 = vpop.f32.mrb[0].mxu0
  %2522 = vdwg.mxu0
  %v2523 = vld [vmem:[%s2 + $0x1c8] sm:$0xff]
  %v2524 = vld [vmem:[%s2 + $0x1d0] sm:$0xff]
  %v2525 = vld [vmem:[%s2 + $0x1d8] sm:$0xff]
  %v2526 = vld [vmem:[%s2 + $0x1e0] sm:$0xff]
  %v2527 = vld [vmem:[%s2 + $0x220] sm:$0x1]
  %v2528 = vlaneseq
  %v2529 = vshrl.u32 %v2528, 7
  %v2530 = vsub.s32 0, %v2529
  %v2531 = vrot.slane %v2527, %v2530
  %2532 = vmatprep.subr.mxu0 0.0
  %2533 = vmatpush1.msra.mxu0 %v2523
  %2534 = vmatprep.subr.mxu0 0.0
  %2535 = vmatpush1.msra.mxu0 %v2524
  %2536 = vmatprep.subr.mxu0 0.0
  %2537 = vmatpush1.msra.mxu0 %v2525
  %2538 = vmatprep.subr.mxu0 0.0
  %2539 = vmatpush1.msra.mxu0 %v2526
  %2540 = vmatprep.subr.mxu0 0.0
  %2541 = vmatpush1.msra.mxu0 0.0
  %2542 = vmatprep.subr.mxu0 0.0
  %2543 = vmatpush1.msra.mxu0 0.0
  %2544 = vmatprep.subr.mxu0 0.0
  %2545 = vmatpush1.msra.mxu0 0.0
  %2546 = vmatprep.subr.mxu0 0.0
  %2547 = vmatpush1.msra.mxu0 0.0
  %2548 = vmatprep.subr.mxu0 0.0
  %2549 = vmatpush1.msra.mxu0 0.0
  %2550 = vmatprep.subr.mxu0 0.0
  %2551 = vmatpush1.msra.mxu0 0.0
  %2552 = vmatprep.subr.mxu0 0.0
  %2553 = vmatpush1.msra.mxu0 0.0
  %2554 = vmatprep.subr.mxu0 0.0
  %2555 = vmatpush1.msra.mxu0 0.0
  %2556 = vmatprep.subr.mxu0 0.0
  %2557 = vmatpush1.msra.mxu0 0.0
  %2558 = vmatprep.subr.mxu0 0.0
  %2559 = vmatpush1.msra.mxu0 0.0
  %2560 = vmatprep.subr.mxu0 0.0
  %2561 = vmatpush1.msra.mxu0 0.0
  %2562 = vmatprep.subr.mxu0 0.0
  %2563 = vmatpush1.msra.mxu0 0.0
  %2564 = vmatprep.subr.mxu0 0.0
  %2565 = vmatpush1.msra.mxu0 0.0
  %2566 = vmatprep.subr.mxu0 0.0
  %2567 = vmatpush1.msra.mxu0 0.0
  %2568 = vmatprep.subr.mxu0 0.0
  %2569 = vmatpush1.msra.mxu0 0.0
  %2570 = vmatprep.subr.mxu0 0.0
  %2571 = vmatpush1.msra.mxu0 0.0
  %2572 = vmatprep.subr.mxu0 0.0
  %2573 = vmatpush1.msra.mxu0 0.0
  %2574 = vmatprep.subr.mxu0 0.0
  %2575 = vmatpush1.msra.mxu0 0.0
  %2576 = vmatprep.subr.mxu0 0.0
  %2577 = vmatpush1.msra.mxu0 0.0
  %2578 = vmatprep.subr.mxu0 0.0
  %2579 = vmatpush1.msra.mxu0 0.0
  %2580 = vmatprep.subr.mxu0 0.0
  %2581 = vmatpush1.msra.mxu0 0.0
  %2582 = vmatprep.subr.mxu0 0.0
  %2583 = vmatpush1.msra.mxu0 0.0
  %2584 = vmatprep.subr.mxu0 0.0
  %2585 = vmatpush1.msra.mxu0 0.0
  %2586 = vmatprep.subr.mxu0 0.0
  %2587 = vmatpush1.msra.mxu0 0.0
  %2588 = vmatprep.subr.mxu0 0.0
  %2589 = vmatpush1.msra.mxu0 0.0
  %2590 = vmatprep.subr.mxu0 0.0
  %2591 = vmatpush1.msra.mxu0 0.0
  %2592 = vmatprep.subr.mxu0 0.0
  %2593 = vmatpush1.msra.mxu0 0.0
  %2594 = vmatprep.subr.mxu0 0.0
  %2595 = vmatpush1.msra.mxu0 0.0
  %2596 = vmatprep.mubr.f32.mxu0 0.0
  %2597 = vmatmul.mubr.f32.gmra.mrb[0].mxu0 %v2395
  %v2598 = vpop.f32.mrb[0].mxu0
  %v2599 = vadd.f32 %v2531, %v2598
  %v2600 = vpop.f32.mrb[0].mxu0
  %2601 = vmatprep.mubr.f32.mxu0 0.0
  %2602 = vmatmul.mubr.f32.gmra.mrb[0].mxu0 %v2398
  %v2603 = vpop.f32.mrb[0].mxu0
  %v2604 = vadd.f32 %v2531, %v2603
  %v2605 = vpop.f32.mrb[0].mxu0
  %2606 = vmatprep.mubr.f32.mxu0 0.0
  %2607 = vmatmul.mubr.f32.gmra.mrb[0].mxu0 %v2401
  %v2608 = vpop.f32.mrb[0].mxu0
  %v2609 = vadd.f32 %v2531, %v2608
  %v2610 = vpop.f32.mrb[0].mxu0
  %2611 = vmatprep.mubr.f32.mxu0 0.0
  %2612 = vmatmul.mubr.f32.gmra.mrb[0].mxu0 %v2404
  %v2613 = vpop.f32.mrb[0].mxu0
  %v2614 = vadd.f32 %v2531, %v2613
  %v2615 = vpop.f32.mrb[0].mxu0
  %2616 = vmatprep.mubr.f32.mxu0 0.0
  %2617 = vmatmul.mubr.f32.gmra.mrb[0].mxu0 %v2407
  %v2618 = vpop.f32.mrb[0].mxu0
  %v2619 = vadd.f32 %v2531, %v2618
  %v2620 = vpop.f32.mrb[0].mxu0
  %2621 = vmatprep.mubr.f32.mxu0 0.0
  %2622 = vmatmul.mubr.f32.gmra.mrb[0].mxu0 %v2410
  %v2623 = vpop.f32.mrb[0].mxu0
  %v2624 = vadd.f32 %v2531, %v2623
  %v2625 = vpop.f32.mrb[0].mxu0
  %2626 = vmatprep.mubr.f32.mxu0 0.0
  %2627 = vmatmul.mubr.f32.gmra.mrb[0].mxu0 %v2413
  %v2628 = vpop.f32.mrb[0].mxu0
  %v2629 = vadd.f32 %v2531, %v2628
  %v2630 = vpop.f32.mrb[0].mxu0
  %2631 = vmatprep.mubr.f32.mxu0 0.0
  %2632 = vmatmul.mubr.f32.gmra.mrb[0].mxu0 %v2416
  %v2633 = vpop.f32.mrb[0].mxu0
  %v2634 = vadd.f32 %v2531, %v2633
  %v2635 = vpop.f32.mrb[0].mxu0
  %2636 = vdwg.mxu0
  %v2637 = vld [vmem:[%s2 + $0x1e8] sm:$0xff]
  %v2638 = vld [vmem:[%s2 + $0x1f0] sm:$0xff]
  %v2639 = vld [vmem:[%s2 + $0x1f8] sm:$0xff]
  %v2640 = vld [vmem:[%s2 + $0x200] sm:$0xff]
  %v2641 = vld [vmem:[%s2 + $0x228] sm:$0x1]
  %v2642 = vlaneseq
  %v2643 = vshrl.u32 %v2642, 7
  %v2644 = vsub.s32 0, %v2643
  %v2645 = vrot.slane %v2641, %v2644
  %2646 = vmatprep.subr.mxu0 0.0
  %2647 = vmatpush1.msra.mxu0 %v2637
  %2648 = vmatprep.subr.mxu0 0.0
  %2649 = vmatpush1.msra.mxu0 %v2638
  %2650 = vmatprep.subr.mxu0 0.0
  %2651 = vmatpush1.msra.mxu0 %v2639
  %2652 = vmatprep.subr.mxu0 0.0
  %2653 = vmatpush1.msra.mxu0 %v2640
  %2654 = vmatprep.subr.mxu0 0.0
  %2655 = vmatpush1.msra.mxu0 0.0
  %2656 = vmatprep.subr.mxu0 0.0
  %2657 = vmatpush1.msra.mxu0 0.0
  %2658 = vmatprep.subr.mxu0 0.0
  %2659 = vmatpush1.msra.mxu0 0.0
  %2660 = vmatprep.subr.mxu0 0.0
  %2661 = vmatpush1.msra.mxu0 0.0
  %2662 = vmatprep.subr.mxu0 0.0
  %2663 = vmatpush1.msra.mxu0 0.0
  %2664 = vmatprep.subr.mxu0 0.0
  %2665 = vmatpush1.msra.mxu0 0.0
  %2666 = vmatprep.subr.mxu0 0.0
  %2667 = vmatpush1.msra.mxu0 0.0
  %2668 = vmatprep.subr.mxu0 0.0
  %2669 = vmatpush1.msra.mxu0 0.0
  %2670 = vmatprep.subr.mxu0 0.0
  %2671 = vmatpush1.msra.mxu0 0.0
  %2672 = vmatprep.subr.mxu0 0.0
  %2673 = vmatpush1.msra.mxu0 0.0
  %2674 = vmatprep.subr.mxu0 0.0
  %2675 = vmatpush1.msra.mxu0 0.0
  %2676 = vmatprep.subr.mxu0 0.0
  %2677 = vmatpush1.msra.mxu0 0.0
  %2678 = vmatprep.subr.mxu0 0.0
  %2679 = vmatpush1.msra.mxu0 0.0
  %2680 = vmatprep.subr.mxu0 0.0
  %2681 = vmatpush1.msra.mxu0 0.0
  %2682 = vmatprep.subr.mxu0 0.0
  %2683 = vmatpush1.msra.mxu0 0.0
  %2684 = vmatprep.subr.mxu0 0.0
  %2685 = vmatpush1.msra.mxu0 0.0
  %2686 = vmatprep.subr.mxu0 0.0
  %2687 = vmatpush1.msra.mxu0 0.0
  %2688 = vmatprep.subr.mxu0 0.0
  %2689 = vmatpush1.msra.mxu0 0.0
  %2690 = vmatprep.subr.mxu0 0.0
  %2691 = vmatpush1.msra.mxu0 0.0
  %2692 = vmatprep.subr.mxu0 0.0
  %2693 = vmatpush1.msra.mxu0 0.0
  %2694 = vmatprep.subr.mxu0 0.0
  %2695 = vmatpush1.msra.mxu0 0.0
  %2696 = vmatprep.subr.mxu0 0.0
  %2697 = vmatpush1.msra.mxu0 0.0
  %2698 = vmatprep.subr.mxu0 0.0
  %2699 = vmatpush1.msra.mxu0 0.0
  %2700 = vmatprep.subr.mxu0 0.0
  %2701 = vmatpush1.msra.mxu0 0.0
  %2702 = vmatprep.subr.mxu0 0.0
  %2703 = vmatpush1.msra.mxu0 0.0
  %2704 = vmatprep.subr.mxu0 0.0
  %2705 = vmatpush1.msra.mxu0 0.0
  %2706 = vmatprep.subr.mxu0 0.0
  %2707 = vmatpush1.msra.mxu0 0.0
  %2708 = vmatprep.subr.mxu0 0.0
  %2709 = vmatpush1.msra.mxu0 0.0
  %2710 = vmatprep.mubr.f32.mxu0 0.0
  %2711 = vmatmul.mubr.f32.gmra.mrb[0].mxu0 %v2395
  %v2712 = vpop.f32.mrb[0].mxu0
  %v2713 = vadd.f32 %v2645, %v2712
  %v2714 = vpop.f32.mrb[0].mxu0
  %2715 = vmatprep.mubr.f32.mxu0 0.0
  %2716 = vmatmul.mubr.f32.gmra.mrb[0].mxu0 %v2398
  %v2717 = vpop.f32.mrb[0].mxu0
  %v2718 = vadd.f32 %v2645, %v2717
  %v2719 = vpop.f32.mrb[0].mxu0
  %2720 = vmatprep.mubr.f32.mxu0 0.0
  %2721 = vmatmul.mubr.f32.gmra.mrb[0].mxu0 %v2401
  %v2722 = vpop.f32.mrb[0].mxu0
  %v2723 = vadd.f32 %v2645, %v2722
  %v2724 = vpop.f32.mrb[0].mxu0
  %2725 = vmatprep.mubr.f32.mxu0 0.0
  %2726 = vmatmul.mubr.f32.gmra.mrb[0].mxu0 %v2404
  %v2727 = vpop.f32.mrb[0].mxu0
  %v2728 = vadd.f32 %v2645, %v2727
  %v2729 = vpop.f32.mrb[0].mxu0
  %2730 = vmatprep.mubr.f32.mxu0 0.0
  %2731 = vmatmul.mubr.f32.gmra.mrb[0].mxu0 %v2407
  %v2732 = vpop.f32.mrb[0].mxu0
  %v2733 = vadd.f32 %v2645, %v2732
  %v2734 = vpop.f32.mrb[0].mxu0
  %2735 = vmatprep.mubr.f32.mxu0 0.0
  %2736 = vmatmul.mubr.f32.gmra.mrb[0].mxu0 %v2410
  %v2737 = vpop.f32.mrb[0].mxu0
  %v2738 = vadd.f32 %v2645, %v2737
  %v2739 = vpop.f32.mrb[0].mxu0
  %2740 = vmatprep.mubr.f32.mxu0 0.0
  %2741 = vmatmul.mubr.f32.gmra.mrb[0].mxu0 %v2413
  %v2742 = vpop.f32.mrb[0].mxu0
  %v2743 = vadd.f32 %v2645, %v2742
  %v2744 = vpop.f32.mrb[0].mxu0
  %2745 = vmatprep.mubr.f32.mxu0 0.0
  %2746 = vmatmul.mubr.f32.gmra.mrb[0].mxu0 %v2416
  %v2747 = vpop.f32.mrb[0].mxu0
  %v2748 = vadd.f32 %v2645, %v2747
  %v2749 = vpop.f32.mrb[0].mxu0
  %2750 = vdwg.mxu0
  %v2752 = vsel %vm397, %v2485, 0
  %v2755 = vsel %vm397, %v2490, 0
  %v2758 = vsel %vm397, %v2495, 0
  %v2761 = vsel %vm397, %v2500, 0
  %v2764 = vsel %vm397, %v2505, 0
  %v2767 = vsel %vm397, %v2510, 0
  %v2770 = vsel %vm397, %v2515, 0
  %v2773 = vsel %vm397, %v2520, 0
  %v2776 = vsel %vm397, %v2599, 0
  %v2779 = vsel %vm397, %v2604, 0
  %v2782 = vsel %vm397, %v2609, 0
  %v2785 = vsel %vm397, %v2614, 0
  %v2788 = vsel %vm397, %v2619, 0
  %v2791 = vsel %vm397, %v2624, 0
  %v2794 = vsel %vm397, %v2629, 0
  %v2797 = vsel %vm397, %v2634, 0
  %2799 = vmatprep.subr.mxu0 0.0
  %2800 = vmatpush1.xpose.msra.mxu0 %v2776
  %2801 = vmatprep.subr.mxu0 0.0
  %2802 = vmatpush1.xpose.msra.mxu0 %v2779
  %2803 = vmatprep.subr.mxu0 0.0
  %2804 = vmatpush1.xpose.msra.mxu0 %v2782
  %2805 = vmatprep.subr.mxu0 0.0
  %2806 = vmatpush1.xpose.msra.mxu0 %v2785
  %2807 = vmatprep.subr.mxu0 0.0
  %2808 = vmatpush1.xpose.msra.mxu0 %v2788
  %2809 = vmatprep.subr.mxu0 0.0
  %2810 = vmatpush1.xpose.msra.mxu0 %v2791
  %2811 = vmatprep.subr.mxu0 0.0
  %2812 = vmatpush1.xpose.msra.mxu0 %v2794
  %2813 = vmatprep.subr.mxu0 0.0
  %2814 = vmatpush1.xpose.msra.mxu0 %v2797
  %2815 = vmatprep.subr.mxu0 0.0
  %2816 = vmatpush1.xpose.msra.mxu0 0.0
  %2817 = vmatprep.subr.mxu0 0.0
  %2818 = vmatpush1.xpose.msra.mxu0 0.0
  %2819 = vmatprep.subr.mxu0 0.0
  %2820 = vmatpush1.xpose.msra.mxu0 0.0
  %2821 = vmatprep.subr.mxu0 0.0
  %2822 = vmatpush1.xpose.msra.mxu0 0.0
  %2823 = vmatprep.subr.mxu0 0.0
  %2824 = vmatpush1.xpose.msra.mxu0 0.0
  %2825 = vmatprep.subr.mxu0 0.0
  %2826 = vmatpush1.xpose.msra.mxu0 0.0
  %2827 = vmatprep.subr.mxu0 0.0
  %2828 = vmatpush1.xpose.msra.mxu0 0.0
  %2829 = vmatprep.subr.mxu0 0.0
  %2830 = vmatpush1.xpose.msra.mxu0 0.0
  %2831 = vmatprep.subr.mxu0 0.0
  %2832 = vmatpush1.xpose.msra.mxu0 0.0
  %2833 = vmatprep.subr.mxu0 0.0
  %2834 = vmatpush1.xpose.msra.mxu0 0.0
  %2835 = vmatprep.subr.mxu0 0.0
  %2836 = vmatpush1.xpose.msra.mxu0 0.0
  %2837 = vmatprep.subr.mxu0 0.0
  %2838 = vmatpush1.xpose.msra.mxu0 0.0
  %2839 = vmatprep.subr.mxu0 0.0
  %2840 = vmatpush1.xpose.msra.mxu0 0.0
  %2841 = vmatprep.subr.mxu0 0.0
  %2842 = vmatpush1.xpose.msra.mxu0 0.0
  %2843 = vmatprep.subr.mxu0 0.0
  %2844 = vmatpush1.xpose.msra.mxu0 0.0
  %2845 = vmatprep.subr.mxu0 0.0
  %2846 = vmatpush1.xpose.msra.mxu0 0.0
  %2847 = vmatprep.subr.mxu0 0.0
  %2848 = vmatpush1.xpose.msra.mxu0 0.0
  %2849 = vmatprep.subr.mxu0 0.0
  %2850 = vmatpush1.xpose.msra.mxu0 0.0
  %2851 = vmatprep.subr.mxu0 0.0
  %2852 = vmatpush1.xpose.msra.mxu0 0.0
  %2853 = vmatprep.subr.mxu0 0.0
  %2854 = vmatpush1.xpose.msra.mxu0 0.0
  %2855 = vmatprep.subr.mxu0 0.0
  %2856 = vmatpush1.xpose.msra.mxu0 0.0
  %2857 = vmatprep.subr.mxu0 0.0
  %2858 = vmatpush1.xpose.msra.mxu0 0.0
  %2859 = vmatprep.subr.mxu0 0.0
  %2860 = vmatpush1.xpose.msra.mxu0 0.0
  %2861 = vmatprep.subr.mxu0 0.0
  %2862 = vmatpush1.xpose.msra.mxu0 0.0
  %2863 = vmatprep.mubr.f32.mxu0 0.0
  %2864 = vmatmul.mubr.f32.gmra.mrb[0].mxu0 %v2752
  %v2865 = vpop.f32.mrb[0].mxu0
  %v2866 = vadd.f32 %v22, %v2865
  %v2867 = vpop.f32.mrb[0].mxu0
  %2868 = vmatprep.mubr.f32.mxu0 0.0
  %2869 = vmatmul.mubr.f32.gmra.mrb[0].mxu0 %v2755
  %v2870 = vpop.f32.mrb[0].mxu0
  %v2871 = vadd.f32 %v23, %v2870
  %v2872 = vpop.f32.mrb[0].mxu0
  %2873 = vmatprep.mubr.f32.mxu0 0.0
  %2874 = vmatmul.mubr.f32.gmra.mrb[0].mxu0 %v2758
  %v2875 = vpop.f32.mrb[0].mxu0
  %v2876 = vadd.f32 %v24, %v2875
  %v2877 = vpop.f32.mrb[0].mxu0
  %2878 = vmatprep.mubr.f32.mxu0 0.0
  %2879 = vmatmul.mubr.f32.gmra.mrb[0].mxu0 %v2761
  %v2880 = vpop.f32.mrb[0].mxu0
  %v2881 = vadd.f32 %v25, %v2880
  %v2882 = vpop.f32.mrb[0].mxu0
  %2883 = vmatprep.mubr.f32.mxu0 0.0
  %2884 = vmatmul.mubr.f32.gmra.mrb[0].mxu0 %v2764
  %v2885 = vpop.f32.mrb[0].mxu0
  %v2886 = vadd.f32 %v26, %v2885
  %v2887 = vpop.f32.mrb[0].mxu0
  %2888 = vmatprep.mubr.f32.mxu0 0.0
  %2889 = vmatmul.mubr.f32.gmra.mrb[0].mxu0 %v2767
  %v2890 = vpop.f32.mrb[0].mxu0
  %v2891 = vadd.f32 %v27, %v2890
  %v2892 = vpop.f32.mrb[0].mxu0
  %2893 = vmatprep.mubr.f32.mxu0 0.0
  %2894 = vmatmul.mubr.f32.gmra.mrb[0].mxu0 %v2770
  %v2895 = vpop.f32.mrb[0].mxu0
  %v2896 = vadd.f32 %v28, %v2895
  %v2897 = vpop.f32.mrb[0].mxu0
  %2898 = vmatprep.mubr.f32.mxu0 0.0
  %2899 = vmatmul.mubr.f32.gmra.mrb[0].mxu0 %v2773
  %v2900 = vpop.f32.mrb[0].mxu0
  %v2901 = vadd.f32 %v29, %v2900
  %v2902 = vpop.f32.mrb[0].mxu0
  %2903 = vdwg.mxu0
  %v2904 = vsel %vm551, %v2866, -inf
  %2905 = vmax.xlane.f32.xlu0 %v2904
  %v2906 = vpop.xlane.xlu0 %2905
  %v2907 = vsel %vm551, %v2871, -inf
  %2908 = vmax.xlane.f32.xlu0 %v2907
  %v2909 = vpop.xlane.xlu0 %2908
  %v2910 = vsel %vm551, %v2876, -inf
  %2911 = vmax.xlane.f32.xlu0 %v2910
  %v2912 = vpop.xlane.xlu0 %2911
  %v2913 = vsel %vm551, %v2881, -inf
  %2914 = vmax.xlane.f32.xlu0 %v2913
  %v2915 = vpop.xlane.xlu0 %2914
  %v2916 = vsel %vm551, %v2886, -inf
  %2917 = vmax.xlane.f32.xlu0 %v2916
  %v2918 = vpop.xlane.xlu0 %2917
  %v2919 = vsel %vm551, %v2891, -inf
  %2920 = vmax.xlane.f32.xlu0 %v2919
  %v2921 = vpop.xlane.xlu0 %2920
  %v2922 = vsel %vm551, %v2896, -inf
  %2923 = vmax.xlane.f32.xlu0 %v2922
  %v2924 = vpop.xlane.xlu0 %2923
  %v2925 = vsel %vm551, %v2901, -inf
  %2926 = vmax.xlane.f32.xlu0 %v2925
  %v2927 = vpop.xlane.xlu0 %2926
  %v2928 = vsub.f32 %v2866, %v2906
  %v2929 = vsub.f32 %v2871, %v2909
  %v2930 = vsub.f32 %v2876, %v2912
  %v2931 = vsub.f32 %v2881, %v2915
  %v2932 = vsub.f32 %v2886, %v2918
  %v2933 = vsub.f32 %v2891, %v2921
  %v2934 = vsub.f32 %v2896, %v2924
  %v2935 = vsub.f32 %v2901, %v2927
  %v2936 = vmul.f32 %v2928, 1.442695
  %v2937 = vpow.pop %v2936
  %v2938 = vmul.f32 %v2929, 1.442695
  %v2939 = vpow.pop %v2938
  %v2940 = vmul.f32 %v2930, 1.442695
  %v2941 = vpow.pop %v2940
  %v2942 = vmul.f32 %v2931, 1.442695
  %v2943 = vpow.pop %v2942
  %v2944 = vmul.f32 %v2932, 1.442695
  %v2945 = vpow.pop %v2944
  %v2946 = vmul.f32 %v2933, 1.442695
  %v2947 = vpow.pop %v2946
  %v2948 = vmul.f32 %v2934, 1.442695
  %v2949 = vpow.pop %v2948
  %v2950 = vmul.f32 %v2935, 1.442695
  %v2951 = vpow.pop %v2950
  %v2952 = vsel %vm551, %v2937, 0.0
  %2953 = vadd.xlane.f32.xlu0 %v2952
  %v2954 = vpop.xlane.xlu0 %2953
  %v2955 = vsel %vm551, %v2939, 0.0
  %2956 = vadd.xlane.f32.xlu0 %v2955
  %v2957 = vpop.xlane.xlu0 %2956
  %v2958 = vsel %vm551, %v2941, 0.0
  %2959 = vadd.xlane.f32.xlu0 %v2958
  %v2960 = vpop.xlane.xlu0 %2959
  %v2961 = vsel %vm551, %v2943, 0.0
  %2962 = vadd.xlane.f32.xlu0 %v2961
  %v2963 = vpop.xlane.xlu0 %2962
  %v2964 = vsel %vm551, %v2945, 0.0
  %2965 = vadd.xlane.f32.xlu0 %v2964
  %v2966 = vpop.xlane.xlu0 %2965
  %v2967 = vsel %vm551, %v2947, 0.0
  %2968 = vadd.xlane.f32.xlu0 %v2967
  %v2969 = vpop.xlane.xlu0 %2968
  %v2970 = vsel %vm551, %v2949, 0.0
  %2971 = vadd.xlane.f32.xlu0 %v2970
  %v2972 = vpop.xlane.xlu0 %2971
  %v2973 = vsel %vm551, %v2951, 0.0
  %2974 = vadd.xlane.f32.xlu0 %v2973
  %v2975 = vpop.xlane.xlu0 %2974
  %v2976 = vrcp.pop %v2954
  %v2977 = vrcp.pop %v2957
  %v2978 = vrcp.pop %v2960
  %v2979 = vrcp.pop %v2963
  %v2980 = vrcp.pop %v2966
  %v2981 = vrcp.pop %v2969
  %v2982 = vrcp.pop %v2972
  %v2983 = vrcp.pop %v2975
  %v2984 = vmul.f32 %v2937, %v2976
  %v2985 = vmul.f32 %v2939, %v2977
  %v2986 = vmul.f32 %v2941, %v2978
  %v2987 = vmul.f32 %v2943, %v2979
  %v2988 = vmul.f32 %v2945, %v2980
  %v2989 = vmul.f32 %v2947, %v2981
  %v2990 = vmul.f32 %v2949, %v2982
  %v2991 = vmul.f32 %v2951, %v2983
  %v2993 = vsel %vm551, %v2984, 0
  %v2996 = vsel %vm551, %v2985, 0
  %v2999 = vsel %vm551, %v2986, 0
  %v3002 = vsel %vm551, %v2987, 0
  %v3005 = vsel %vm551, %v2988, 0
  %v3008 = vsel %vm551, %v2989, 0
  %v3011 = vsel %vm551, %v2990, 0
  %v3014 = vsel %vm551, %v2991, 0
  %3016 = vmatprep.subr.mxu0 0.0
  %3017 = vmatpush1.msra.mxu0 %v2713
  %3018 = vmatprep.subr.mxu0 0.0
  %3019 = vmatpush1.msra.mxu0 %v2718
  %3020 = vmatprep.subr.mxu0 0.0
  %3021 = vmatpush1.msra.mxu0 %v2723
  %3022 = vmatprep.subr.mxu0 0.0
  %3023 = vmatpush1.msra.mxu0 %v2728
  %3024 = vmatprep.subr.mxu0 0.0
  %3025 = vmatpush1.msra.mxu0 %v2733
  %3026 = vmatprep.subr.mxu0 0.0
  %3027 = vmatpush1.msra.mxu0 %v2738
  %3028 = vmatprep.subr.mxu0 0.0
  %3029 = vmatpush1.msra.mxu0 %v2743
  %3030 = vmatprep.subr.mxu0 0.0
  %3031 = vmatpush1.msra.mxu0 %v2748
  %3032 = vmatprep.subr.mxu0 0.0
  %3033 = vmatpush1.msra.mxu0 0.0
  %3034 = vmatprep.subr.mxu0 0.0
  %3035 = vmatpush1.msra.mxu0 0.0
  %3036 = vmatprep.subr.mxu0 0.0
  %3037 = vmatpush1.msra.mxu0 0.0
  %3038 = vmatprep.subr.mxu0 0.0
  %3039 = vmatpush1.msra.mxu0 0.0
  %3040 = vmatprep.subr.mxu0 0.0
  %3041 = vmatpush1.msra.mxu0 0.0
  %3042 = vmatprep.subr.mxu0 0.0
  %3043 = vmatpush1.msra.mxu0 0.0
  %3044 = vmatprep.subr.mxu0 0.0
  %3045 = vmatpush1.msra.mxu0 0.0
  %3046 = vmatprep.subr.mxu0 0.0
  %3047 = vmatpush1.msra.mxu0 0.0
  %3048 = vmatprep.subr.mxu0 0.0
  %3049 = vmatpush1.msra.mxu0 0.0
  %3050 = vmatprep.subr.mxu0 0.0
  %3051 = vmatpush1.msra.mxu0 0.0
  %3052 = vmatprep.subr.mxu0 0.0
  %3053 = vmatpush1.msra.mxu0 0.0
  %3054 = vmatprep.subr.mxu0 0.0
  %3055 = vmatpush1.msra.mxu0 0.0
  %3056 = vmatprep.subr.mxu0 0.0
  %3057 = vmatpush1.msra.mxu0 0.0
  %3058 = vmatprep.subr.mxu0 0.0
  %3059 = vmatpush1.msra.mxu0 0.0
  %3060 = vmatprep.subr.mxu0 0.0
  %3061 = vmatpush1.msra.mxu0 0.0
  %3062 = vmatprep.subr.mxu0 0.0
  %3063 = vmatpush1.msra.mxu0 0.0
  %3064 = vmatprep.subr.mxu0 0.0
  %3065 = vmatpush1.msra.mxu0 0.0
  %3066 = vmatprep.subr.mxu0 0.0
  %3067 = vmatpush1.msra.mxu0 0.0
  %3068 = vmatprep.subr.mxu0 0.0
  %3069 = vmatpush1.msra.mxu0 0.0
  %3070 = vmatprep.subr.mxu0 0.0
  %3071 = vmatpush1.msra.mxu0 0.0
  %3072 = vmatprep.subr.mxu0 0.0
  %3073 = vmatpush1.msra.mxu0 0.0
  %3074 = vmatprep.subr.mxu0 0.0
  %3075 = vmatpush1.msra.mxu0 0.0
  %3076 = vmatprep.subr.mxu0 0.0
  %3077 = vmatpush1.msra.mxu0 0.0
  %3078 = vmatprep.subr.mxu0 0.0
  %3079 = vmatpush1.msra.mxu0 0.0
  %3080 = vmatprep.mubr.f32.mxu0 0.0
  %3081 = vmatmul.mubr.f32.gmra.mrb[0].mxu0 %v2993
  %v3082 = vpop.f32.mrb[0].mxu0
  %v3083 = vadd.f32 0.0, %v3082
  %v3084 = vpop.f32.mrb[0].mxu0
  %3085 = vmatprep.mubr.f32.mxu0 0.0
  %3086 = vmatmul.mubr.f32.gmra.mrb[0].mxu0 %v2996
  %v3087 = vpop.f32.mrb[0].mxu0
  %v3088 = vadd.f32 0.0, %v3087
  %v3089 = vpop.f32.mrb[0].mxu0
  %3090 = vmatprep.mubr.f32.mxu0 0.0
  %3091 = vmatmul.mubr.f32.gmra.mrb[0].mxu0 %v2999
  %v3092 = vpop.f32.mrb[0].mxu0
  %v3093 = vadd.f32 0.0, %v3092
  %v3094 = vpop.f32.mrb[0].mxu0
  %3095 = vmatprep.mubr.f32.mxu0 0.0
  %3096 = vmatmul.mubr.f32.gmra.mrb[0].mxu0 %v3002
  %v3097 = vpop.f32.mrb[0].mxu0
  %v3098 = vadd.f32 0.0, %v3097
  %v3099 = vpop.f32.mrb[0].mxu0
  %3100 = vmatprep.mubr.f32.mxu0 0.0
  %3101 = vmatmul.mubr.f32.gmra.mrb[0].mxu0 %v3005
  %v3102 = vpop.f32.mrb[0].mxu0
  %v3103 = vadd.f32 0.0, %v3102
  %v3104 = vpop.f32.mrb[0].mxu0
  %3105 = vmatprep.mubr.f32.mxu0 0.0
  %3106 = vmatmul.mubr.f32.gmra.mrb[0].mxu0 %v3008
  %v3107 = vpop.f32.mrb[0].mxu0
  %v3108 = vadd.f32 0.0, %v3107
  %v3109 = vpop.f32.mrb[0].mxu0
  %3110 = vmatprep.mubr.f32.mxu0 0.0
  %3111 = vmatmul.mubr.f32.gmra.mrb[0].mxu0 %v3011
  %v3112 = vpop.f32.mrb[0].mxu0
  %v3113 = vadd.f32 0.0, %v3112
  %v3114 = vpop.f32.mrb[0].mxu0
  %3115 = vmatprep.mubr.f32.mxu0 0.0
  %3116 = vmatmul.mubr.f32.gmra.mrb[0].mxu0 %v3014
  %v3117 = vpop.f32.mrb[0].mxu0
  %v3118 = vadd.f32 0.0, %v3117
  %v3119 = vpop.f32.mrb[0].mxu0
  %3120 = vdwg.mxu0
  %v3121 = vld [vmem:[%s2 + $0x208] sm:$0xff]
  %v3122 = vld [vmem:[%s2 + $0x210] sm:$0xff]
  %v3123 = vld [vmem:[%s2 + $0x230] sm:$0xff]
  %v3124 = vld [vmem:[%s2 + $0x238] sm:$0xff]
  %v3125 = vld [vmem:[%s2 + $0x240] sm:$0xff]
  %v3126 = vld [vmem:[%s2 + $0x248] sm:$0xff]
  %v3127 = vld [vmem:[%s2 + $0x2a0] sm:$0x1]
  %v3128 = vlaneseq
  %v3129 = vshrl.u32 %v3128, 7
  %v3130 = vsub.s32 0, %v3129
  %v3131 = vrot.slane %v3127, %v3130
  %3132 = vmatprep.subr.mxu0 0.0
  %3133 = vmatpush1.msra.mxu0 %v3123
  %3134 = vmatprep.subr.mxu0 0.0
  %3135 = vmatpush1.msra.mxu0 %v3124
  %3136 = vmatprep.subr.mxu0 0.0
  %3137 = vmatpush1.msra.mxu0 %v3125
  %3138 = vmatprep.subr.mxu0 0.0
  %3139 = vmatpush1.msra.mxu0 %v3126
  %3140 = vmatprep.subr.mxu0 0.0
  %3141 = vmatpush1.msra.mxu0 0.0
  %3142 = vmatprep.subr.mxu0 0.0
  %3143 = vmatpush1.msra.mxu0 0.0
  %3144 = vmatprep.subr.mxu0 0.0
  %3145 = vmatpush1.msra.mxu0 0.0
  %3146 = vmatprep.subr.mxu0 0.0
  %3147 = vmatpush1.msra.mxu0 0.0
  %3148 = vmatprep.subr.mxu0 0.0
  %3149 = vmatpush1.msra.mxu0 0.0
  %3150 = vmatprep.subr.mxu0 0.0
  %3151 = vmatpush1.msra.mxu0 0.0
  %3152 = vmatprep.subr.mxu0 0.0
  %3153 = vmatpush1.msra.mxu0 0.0
  %3154 = vmatprep.subr.mxu0 0.0
  %3155 = vmatpush1.msra.mxu0 0.0
  %3156 = vmatprep.subr.mxu0 0.0
  %3157 = vmatpush1.msra.mxu0 0.0
  %3158 = vmatprep.subr.mxu0 0.0
  %3159 = vmatpush1.msra.mxu0 0.0
  %3160 = vmatprep.subr.mxu0 0.0
  %3161 = vmatpush1.msra.mxu0 0.0
  %3162 = vmatprep.subr.mxu0 0.0
  %3163 = vmatpush1.msra.mxu0 0.0
  %3164 = vmatprep.subr.mxu0 0.0
  %3165 = vmatpush1.msra.mxu0 0.0
  %3166 = vmatprep.subr.mxu0 0.0
  %3167 = vmatpush1.msra.mxu0 0.0
  %3168 = vmatprep.subr.mxu0 0.0
  %3169 = vmatpush1.msra.mxu0 0.0
  %3170 = vmatprep.subr.mxu0 0.0
  %3171 = vmatpush1.msra.mxu0 0.0
  %3172 = vmatprep.subr.mxu0 0.0
  %3173 = vmatpush1.msra.mxu0 0.0
  %3174 = vmatprep.subr.mxu0 0.0
  %3175 = vmatpush1.msra.mxu0 0.0
  %3176 = vmatprep.subr.mxu0 0.0
  %3177 = vmatpush1.msra.mxu0 0.0
  %3178 = vmatprep.subr.mxu0 0.0
  %3179 = vmatpush1.msra.mxu0 0.0
  %3180 = vmatprep.subr.mxu0 0.0
  %3181 = vmatpush1.msra.mxu0 0.0
  %3182 = vmatprep.subr.mxu0 0.0
  %3183 = vmatpush1.msra.mxu0 0.0
  %3184 = vmatprep.subr.mxu0 0.0
  %3185 = vmatpush1.msra.mxu0 0.0
  %3186 = vmatprep.subr.mxu0 0.0
  %3187 = vmatpush1.msra.mxu0 0.0
  %3188 = vmatprep.subr.mxu0 0.0
  %3189 = vmatpush1.msra.mxu0 0.0
  %3190 = vmatprep.subr.mxu0 0.0
  %3191 = vmatpush1.msra.mxu0 0.0
  %3192 = vmatprep.subr.mxu0 0.0
  %3193 = vmatpush1.msra.mxu0 0.0
  %3194 = vmatprep.subr.mxu0 0.0
  %3195 = vmatpush1.msra.mxu0 0.0
  %3196 = vmatprep.mubr.f32.mxu0 0.0
  %3197 = vmatmul.mubr.f32.gmra.mrb[0].mxu0 %v2395
  %v3198 = vpop.f32.mrb[0].mxu0
  %v3199 = vadd.f32 %v3131, %v3198
  %v3200 = vpop.f32.mrb[0].mxu0
  %3201 = vmatprep.mubr.f32.mxu0 0.0
  %3202 = vmatmul.mubr.f32.gmra.mrb[0].mxu0 %v2398
  %v3203 = vpop.f32.mrb[0].mxu0
  %v3204 = vadd.f32 %v3131, %v3203
  %v3205 = vpop.f32.mrb[0].mxu0
  %3206 = vmatprep.mubr.f32.mxu0 0.0
  %3207 = vmatmul.mubr.f32.gmra.mrb[0].mxu0 %v2401
  %v3208 = vpop.f32.mrb[0].mxu0
  %v3209 = vadd.f32 %v3131, %v3208
  %v3210 = vpop.f32.mrb[0].mxu0
  %3211 = vmatprep.mubr.f32.mxu0 0.0
  %3212 = vmatmul.mubr.f32.gmra.mrb[0].mxu0 %v2404
  %v3213 = vpop.f32.mrb[0].mxu0
  %v3214 = vadd.f32 %v3131, %v3213
  %v3215 = vpop.f32.mrb[0].mxu0
  %3216 = vmatprep.mubr.f32.mxu0 0.0
  %3217 = vmatmul.mubr.f32.gmra.mrb[0].mxu0 %v2407
  %v3218 = vpop.f32.mrb[0].mxu0
  %v3219 = vadd.f32 %v3131, %v3218
  %v3220 = vpop.f32.mrb[0].mxu0
  %3221 = vmatprep.mubr.f32.mxu0 0.0
  %3222 = vmatmul.mubr.f32.gmra.mrb[0].mxu0 %v2410
  %v3223 = vpop.f32.mrb[0].mxu0
  %v3224 = vadd.f32 %v3131, %v3223
  %v3225 = vpop.f32.mrb[0].mxu0
  %3226 = vmatprep.mubr.f32.mxu0 0.0
  %3227 = vmatmul.mubr.f32.gmra.mrb[0].mxu0 %v2413
  %v3228 = vpop.f32.mrb[0].mxu0
  %v3229 = vadd.f32 %v3131, %v3228
  %v3230 = vpop.f32.mrb[0].mxu0
  %3231 = vmatprep.mubr.f32.mxu0 0.0
  %3232 = vmatmul.mubr.f32.gmra.mrb[0].mxu0 %v2416
  %v3233 = vpop.f32.mrb[0].mxu0
  %v3234 = vadd.f32 %v3131, %v3233
  %v3235 = vpop.f32.mrb[0].mxu0
  %3236 = vdwg.mxu0
  %v3237 = vld [vmem:[%s2 + $0x250] sm:$0xff]
  %v3238 = vld [vmem:[%s2 + $0x258] sm:$0xff]
  %v3239 = vld [vmem:[%s2 + $0x260] sm:$0xff]
  %v3240 = vld [vmem:[%s2 + $0x268] sm:$0xff]
  %v3241 = vld [vmem:[%s2 + $0x2a8] sm:$0x1]
  %v3242 = vlaneseq
  %v3243 = vshrl.u32 %v3242, 7
  %v3244 = vsub.s32 0, %v3243
  %v3245 = vrot.slane %v3241, %v3244
  %3246 = vmatprep.subr.mxu0 0.0
  %3247 = vmatpush1.msra.mxu0 %v3237
  %3248 = vmatprep.subr.mxu0 0.0
  %3249 = vmatpush1.msra.mxu0 %v3238
  %3250 = vmatprep.subr.mxu0 0.0
  %3251 = vmatpush1.msra.mxu0 %v3239
  %3252 = vmatprep.subr.mxu0 0.0
  %3253 = vmatpush1.msra.mxu0 %v3240
  %3254 = vmatprep.subr.mxu0 0.0
  %3255 = vmatpush1.msra.mxu0 0.0
  %3256 = vmatprep.subr.mxu0 0.0
  %3257 = vmatpush1.msra.mxu0 0.0
  %3258 = vmatprep.subr.mxu0 0.0
  %3259 = vmatpush1.msra.mxu0 0.0
  %3260 = vmatprep.subr.mxu0 0.0
  %3261 = vmatpush1.msra.mxu0 0.0
  %3262 = vmatprep.subr.mxu0 0.0
  %3263 = vmatpush1.msra.mxu0 0.0
  %3264 = vmatprep.subr.mxu0 0.0
  %3265 = vmatpush1.msra.mxu0 0.0
  %3266 = vmatprep.subr.mxu0 0.0
  %3267 = vmatpush1.msra.mxu0 0.0
  %3268 = vmatprep.subr.mxu0 0.0
  %3269 = vmatpush1.msra.mxu0 0.0
  %3270 = vmatprep.subr.mxu0 0.0
  %3271 = vmatpush1.msra.mxu0 0.0
  %3272 = vmatprep.subr.mxu0 0.0
  %3273 = vmatpush1.msra.mxu0 0.0
  %3274 = vmatprep.subr.mxu0 0.0
  %3275 = vmatpush1.msra.mxu0 0.0
  %3276 = vmatprep.subr.mxu0 0.0
  %3277 = vmatpush1.msra.mxu0 0.0
  %3278 = vmatprep.subr.mxu0 0.0
  %3279 = vmatpush1.msra.mxu0 0.0
  %3280 = vmatprep.subr.mxu0 0.0
  %3281 = vmatpush1.msra.mxu0 0.0
  %3282 = vmatprep.subr.mxu0 0.0
  %3283 = vmatpush1.msra.mxu0 0.0
  %3284 = vmatprep.subr.mxu0 0.0
  %3285 = vmatpush1.msra.mxu0 0.0
  %3286 = vmatprep.subr.mxu0 0.0
  %3287 = vmatpush1.msra.mxu0 0.0
  %3288 = vmatprep.subr.mxu0 0.0
  %3289 = vmatpush1.msra.mxu0 0.0
  %3290 = vmatprep.subr.mxu0 0.0
  %3291 = vmatpush1.msra.mxu0 0.0
  %3292 = vmatprep.subr.mxu0 0.0
  %3293 = vmatpush1.msra.mxu0 0.0
  %3294 = vmatprep.subr.mxu0 0.0
  %3295 = vmatpush1.msra.mxu0 0.0
  %3296 = vmatprep.subr.mxu0 0.0
  %3297 = vmatpush1.msra.mxu0 0.0
  %3298 = vmatprep.subr.mxu0 0.0
  %3299 = vmatpush1.msra.mxu0 0.0
  %3300 = vmatprep.subr.mxu0 0.0
  %3301 = vmatpush1.msra.mxu0 0.0
  %3302 = vmatprep.subr.mxu0 0.0
  %3303 = vmatpush1.msra.mxu0 0.0
  %3304 = vmatprep.subr.mxu0 0.0
  %3305 = vmatpush1.msra.mxu0 0.0
  %3306 = vmatprep.subr.mxu0 0.0
  %3307 = vmatpush1.msra.mxu0 0.0
  %3308 = vmatprep.subr.mxu0 0.0
  %3309 = vmatpush1.msra.mxu0 0.0
  %3310 = vmatprep.mubr.f32.mxu0 0.0
  %3311 = vmatmul.mubr.f32.gmra.mrb[0].mxu0 %v2395
  %v3312 = vpop.f32.mrb[0].mxu0
  %v3313 = vadd.f32 %v3245, %v3312
  %v3314 = vpop.f32.mrb[0].mxu0
  %3315 = vmatprep.mubr.f32.mxu0 0.0
  %3316 = vmatmul.mubr.f32.gmra.mrb[0].mxu0 %v2398
  %v3317 = vpop.f32.mrb[0].mxu0
  %v3318 = vadd.f32 %v3245, %v3317
  %v3319 = vpop.f32.mrb[0].mxu0
  %3320 = vmatprep.mubr.f32.mxu0 0.0
  %3321 = vmatmul.mubr.f32.gmra.mrb[0].mxu0 %v2401
  %v3322 = vpop.f32.mrb[0].mxu0
  %v3323 = vadd.f32 %v3245, %v3322
  %v3324 = vpop.f32.mrb[0].mxu0
  %3325 = vmatprep.mubr.f32.mxu0 0.0
  %3326 = vmatmul.mubr.f32.gmra.mrb[0].mxu0 %v2404
  %v3327 = vpop.f32.mrb[0].mxu0
  %v3328 = vadd.f32 %v3245, %v3327
  %v3329 = vpop.f32.mrb[0].mxu0
  %3330 = vmatprep.mubr.f32.mxu0 0.0
  %3331 = vmatmul.mubr.f32.gmra.mrb[0].mxu0 %v2407
  %v3332 = vpop.f32.mrb[0].mxu0
  %v3333 = vadd.f32 %v3245, %v3332
  %v3334 = vpop.f32.mrb[0].mxu0
  %3335 = vmatprep.mubr.f32.mxu0 0.0
  %3336 = vmatmul.mubr.f32.gmra.mrb[0].mxu0 %v2410
  %v3337 = vpop.f32.mrb[0].mxu0
  %v3338 = vadd.f32 %v3245, %v3337
  %v3339 = vpop.f32.mrb[0].mxu0
  %3340 = vmatprep.mubr.f32.mxu0 0.0
  %3341 = vmatmul.mubr.f32.gmra.mrb[0].mxu0 %v2413
  %v3342 = vpop.f32.mrb[0].mxu0
  %v3343 = vadd.f32 %v3245, %v3342
  %v3344 = vpop.f32.mrb[0].mxu0
  %3345 = vmatprep.mubr.f32.mxu0 0.0
  %3346 = vmatmul.mubr.f32.gmra.mrb[0].mxu0 %v2416
  %v3347 = vpop.f32.mrb[0].mxu0
  %v3348 = vadd.f32 %v3245, %v3347
  %v3349 = vpop.f32.mrb[0].mxu0
  %3350 = vdwg.mxu0
  %v3351 = vld [vmem:[%s2 + $0x270] sm:$0xff]
  %v3352 = vld [vmem:[%s2 + $0x278] sm:$0xff]
  %v3353 = vld [vmem:[%s2 + $0x280] sm:$0xff]
  %v3354 = vld [vmem:[%s2 + $0x288] sm:$0xff]
  %v3355 = vld [vmem:[%s2 + $0x2b0] sm:$0x1]
  %v3356 = vlaneseq
  %v3357 = vshrl.u32 %v3356, 7
  %v3358 = vsub.s32 0, %v3357
  %v3359 = vrot.slane %v3355, %v3358
  %3360 = vmatprep.subr.mxu0 0.0
  %3361 = vmatpush1.msra.mxu0 %v3351
  %3362 = vmatprep.subr.mxu0 0.0
  %3363 = vmatpush1.msra.mxu0 %v3352
  %3364 = vmatprep.subr.mxu0 0.0
  %3365 = vmatpush1.msra.mxu0 %v3353
  %3366 = vmatprep.subr.mxu0 0.0
  %3367 = vmatpush1.msra.mxu0 %v3354
  %3368 = vmatprep.subr.mxu0 0.0
  %3369 = vmatpush1.msra.mxu0 0.0
  %3370 = vmatprep.subr.mxu0 0.0
  %3371 = vmatpush1.msra.mxu0 0.0
  %3372 = vmatprep.subr.mxu0 0.0
  %3373 = vmatpush1.msra.mxu0 0.0
  %3374 = vmatprep.subr.mxu0 0.0
  %3375 = vmatpush1.msra.mxu0 0.0
  %3376 = vmatprep.subr.mxu0 0.0
  %3377 = vmatpush1.msra.mxu0 0.0
  %3378 = vmatprep.subr.mxu0 0.0
  %3379 = vmatpush1.msra.mxu0 0.0
  %3380 = vmatprep.subr.mxu0 0.0
  %3381 = vmatpush1.msra.mxu0 0.0
  %3382 = vmatprep.subr.mxu0 0.0
  %3383 = vmatpush1.msra.mxu0 0.0
  %3384 = vmatprep.subr.mxu0 0.0
  %3385 = vmatpush1.msra.mxu0 0.0
  %3386 = vmatprep.subr.mxu0 0.0
  %3387 = vmatpush1.msra.mxu0 0.0
  %3388 = vmatprep.subr.mxu0 0.0
  %3389 = vmatpush1.msra.mxu0 0.0
  %3390 = vmatprep.subr.mxu0 0.0
  %3391 = vmatpush1.msra.mxu0 0.0
  %3392 = vmatprep.subr.mxu0 0.0
  %3393 = vmatpush1.msra.mxu0 0.0
  %3394 = vmatprep.subr.mxu0 0.0
  %3395 = vmatpush1.msra.mxu0 0.0
  %3396 = vmatprep.subr.mxu0 0.0
  %3397 = vmatpush1.msra.mxu0 0.0
  %3398 = vmatprep.subr.mxu0 0.0
  %3399 = vmatpush1.msra.mxu0 0.0
  %3400 = vmatprep.subr.mxu0 0.0
  %3401 = vmatpush1.msra.mxu0 0.0
  %3402 = vmatprep.subr.mxu0 0.0
  %3403 = vmatpush1.msra.mxu0 0.0
  %3404 = vmatprep.subr.mxu0 0.0
  %3405 = vmatpush1.msra.mxu0 0.0
  %3406 = vmatprep.subr.mxu0 0.0
  %3407 = vmatpush1.msra.mxu0 0.0
  %3408 = vmatprep.subr.mxu0 0.0
  %3409 = vmatpush1.msra.mxu0 0.0
  %3410 = vmatprep.subr.mxu0 0.0
  %3411 = vmatpush1.msra.mxu0 0.0
  %3412 = vmatprep.subr.mxu0 0.0
  %3413 = vmatpush1.msra.mxu0 0.0
  %3414 = vmatprep.subr.mxu0 0.0
  %3415 = vmatpush1.msra.mxu0 0.0
  %3416 = vmatprep.subr.mxu0 0.0
  %3417 = vmatpush1.msra.mxu0 0.0
  %3418 = vmatprep.subr.mxu0 0.0
  %3419 = vmatpush1.msra.mxu0 0.0
  %3420 = vmatprep.subr.mxu0 0.0
  %3421 = vmatpush1.msra.mxu0 0.0
  %3422 = vmatprep.subr.mxu0 0.0
  %3423 = vmatpush1.msra.mxu0 0.0
  %3424 = vmatprep.mubr.f32.mxu0 0.0
  %3425 = vmatmul.mubr.f32.gmra.mrb[0].mxu0 %v2395
  %v3426 = vpop.f32.mrb[0].mxu0
  %v3427 = vadd.f32 %v3359, %v3426
  %v3428 = vpop.f32.mrb[0].mxu0
  %3429 = vmatprep.mubr.f32.mxu0 0.0
  %3430 = vmatmul.mubr.f32.gmra.mrb[0].mxu0 %v2398
  %v3431 = vpop.f32.mrb[0].mxu0
  %v3432 = vadd.f32 %v3359, %v3431
  %v3433 = vpop.f32.mrb[0].mxu0
  %3434 = vmatprep.mubr.f32.mxu0 0.0
  %3435 = vmatmul.mubr.f32.gmra.mrb[0].mxu0 %v2401
  %v3436 = vpop.f32.mrb[0].mxu0
  %v3437 = vadd.f32 %v3359, %v3436
  %v3438 = vpop.f32.mrb[0].mxu0
  %3439 = vmatprep.mubr.f32.mxu0 0.0
  %3440 = vmatmul.mubr.f32.gmra.mrb[0].mxu0 %v2404
  %v3441 = vpop.f32.mrb[0].mxu0
  %v3442 = vadd.f32 %v3359, %v3441
  %v3443 = vpop.f32.mrb[0].mxu0
  %3444 = vmatprep.mubr.f32.mxu0 0.0
  %3445 = vmatmul.mubr.f32.gmra.mrb[0].mxu0 %v2407
  %v3446 = vpop.f32.mrb[0].mxu0
  %v3447 = vadd.f32 %v3359, %v3446
  %v3448 = vpop.f32.mrb[0].mxu0
  %3449 = vmatprep.mubr.f32.mxu0 0.0
  %3450 = vmatmul.mubr.f32.gmra.mrb[0].mxu0 %v2410
  %v3451 = vpop.f32.mrb[0].mxu0
  %v3452 = vadd.f32 %v3359, %v3451
  %v3453 = vpop.f32.mrb[0].mxu0
  %3454 = vmatprep.mubr.f32.mxu0 0.0
  %3455 = vmatmul.mubr.f32.gmra.mrb[0].mxu0 %v2413
  %v3456 = vpop.f32.mrb[0].mxu0
  %v3457 = vadd.f32 %v3359, %v3456
  %v3458 = vpop.f32.mrb[0].mxu0
  %3459 = vmatprep.mubr.f32.mxu0 0.0
  %3460 = vmatmul.mubr.f32.gmra.mrb[0].mxu0 %v2416
  %v3461 = vpop.f32.mrb[0].mxu0
  %v3462 = vadd.f32 %v3359, %v3461
  %v3463 = vpop.f32.mrb[0].mxu0
  %3464 = vdwg.mxu0
  %v3466 = vsel %vm397, %v3199, 0
  %v3469 = vsel %vm397, %v3204, 0
  %v3472 = vsel %vm397, %v3209, 0
  %v3475 = vsel %vm397, %v3214, 0
  %v3478 = vsel %vm397, %v3219, 0
  %v3481 = vsel %vm397, %v3224, 0
  %v3484 = vsel %vm397, %v3229, 0
  %v3487 = vsel %vm397, %v3234, 0
  %v3490 = vsel %vm397, %v3313, 0
  %v3493 = vsel %vm397, %v3318, 0
  %v3496 = vsel %vm397, %v3323, 0
  %v3499 = vsel %vm397, %v3328, 0
  %v3502 = vsel %vm397, %v3333, 0
  %v3505 = vsel %vm397, %v3338, 0
  %v3508 = vsel %vm397, %v3343, 0
  %v3511 = vsel %vm397, %v3348, 0
  %3513 = vmatprep.subr.mxu0 0.0
  %3514 = vmatpush1.xpose.msra.mxu0 %v3490
  %3515 = vmatprep.subr.mxu0 0.0
  %3516 = vmatpush1.xpose.msra.mxu0 %v3493
  %3517 = vmatprep.subr.mxu0 0.0
  %3518 = vmatpush1.xpose.msra.mxu0 %v3496
  %3519 = vmatprep.subr.mxu0 0.0
  %3520 = vmatpush1.xpose.msra.mxu0 %v3499
  %3521 = vmatprep.subr.mxu0 0.0
  %3522 = vmatpush1.xpose.msra.mxu0 %v3502
  %3523 = vmatprep.subr.mxu0 0.0
  %3524 = vmatpush1.xpose.msra.mxu0 %v3505
  %3525 = vmatprep.subr.mxu0 0.0
  %3526 = vmatpush1.xpose.msra.mxu0 %v3508
  %3527 = vmatprep.subr.mxu0 0.0
  %3528 = vmatpush1.xpose.msra.mxu0 %v3511
  %3529 = vmatprep.subr.mxu0 0.0
  %3530 = vmatpush1.xpose.msra.mxu0 0.0
  %3531 = vmatprep.subr.mxu0 0.0
  %3532 = vmatpush1.xpose.msra.mxu0 0.0
  %3533 = vmatprep.subr.mxu0 0.0
  %3534 = vmatpush1.xpose.msra.mxu0 0.0
  %3535 = vmatprep.subr.mxu0 0.0
  %3536 = vmatpush1.xpose.msra.mxu0 0.0
  %3537 = vmatprep.subr.mxu0 0.0
  %3538 = vmatpush1.xpose.msra.mxu0 0.0
  %3539 = vmatprep.subr.mxu0 0.0
  %3540 = vmatpush1.xpose.msra.mxu0 0.0
  %3541 = vmatprep.subr.mxu0 0.0
  %3542 = vmatpush1.xpose.msra.mxu0 0.0
  %3543 = vmatprep.subr.mxu0 0.0
  %3544 = vmatpush1.xpose.msra.mxu0 0.0
  %3545 = vmatprep.subr.mxu0 0.0
  %3546 = vmatpush1.xpose.msra.mxu0 0.0
  %3547 = vmatprep.subr.mxu0 0.0
  %3548 = vmatpush1.xpose.msra.mxu0 0.0
  %3549 = vmatprep.subr.mxu0 0.0
  %3550 = vmatpush1.xpose.msra.mxu0 0.0
  %3551 = vmatprep.subr.mxu0 0.0
  %3552 = vmatpush1.xpose.msra.mxu0 0.0
  %3553 = vmatprep.subr.mxu0 0.0
  %3554 = vmatpush1.xpose.msra.mxu0 0.0
  %3555 = vmatprep.subr.mxu0 0.0
  %3556 = vmatpush1.xpose.msra.mxu0 0.0
  %3557 = vmatprep.subr.mxu0 0.0
  %3558 = vmatpush1.xpose.msra.mxu0 0.0
  %3559 = vmatprep.subr.mxu0 0.0
  %3560 = vmatpush1.xpose.msra.mxu0 0.0
  %3561 = vmatprep.subr.mxu0 0.0
  %3562 = vmatpush1.xpose.msra.mxu0 0.0
  %3563 = vmatprep.subr.mxu0 0.0
  %3564 = vmatpush1.xpose.msra.mxu0 0.0
  %3565 = vmatprep.subr.mxu0 0.0
  %3566 = vmatpush1.xpose.msra.mxu0 0.0
  %3567 = vmatprep.subr.mxu0 0.0
  %3568 = vmatpush1.xpose.msra.mxu0 0.0
  %3569 = vmatprep.subr.mxu0 0.0
  %3570 = vmatpush1.xpose.msra.mxu0 0.0
  %3571 = vmatprep.subr.mxu0 0.0
  %3572 = vmatpush1.xpose.msra.mxu0 0.0
  %3573 = vmatprep.subr.mxu0 0.0
  %3574 = vmatpush1.xpose.msra.mxu0 0.0
  %3575 = vmatprep.subr.mxu0 0.0
  %3576 = vmatpush1.xpose.msra.mxu0 0.0
  %3577 = vmatprep.mubr.f32.mxu0 0.0
  %3578 = vmatmul.mubr.f32.gmra.mrb[0].mxu0 %v3466
  %v3579 = vpop.f32.mrb[0].mxu0
  %v3580 = vadd.f32 %v22, %v3579
  %v3581 = vpop.f32.mrb[0].mxu0
  %3582 = vmatprep.mubr.f32.mxu0 0.0
  %3583 = vmatmul.mubr.f32.gmra.mrb[0].mxu0 %v3469
  %v3584 = vpop.f32.mrb[0].mxu0
  %v3585 = vadd.f32 %v23, %v3584
  %v3586 = vpop.f32.mrb[0].mxu0
  %3587 = vmatprep.mubr.f32.mxu0 0.0
  %3588 = vmatmul.mubr.f32.gmra.mrb[0].mxu0 %v3472
  %v3589 = vpop.f32.mrb[0].mxu0
  %v3590 = vadd.f32 %v24, %v3589
  %v3591 = vpop.f32.mrb[0].mxu0
  %3592 = vmatprep.mubr.f32.mxu0 0.0
  %3593 = vmatmul.mubr.f32.gmra.mrb[0].mxu0 %v3475
  %v3594 = vpop.f32.mrb[0].mxu0
  %v3595 = vadd.f32 %v25, %v3594
  %v3596 = vpop.f32.mrb[0].mxu0
  %3597 = vmatprep.mubr.f32.mxu0 0.0
  %3598 = vmatmul.mubr.f32.gmra.mrb[0].mxu0 %v3478
  %v3599 = vpop.f32.mrb[0].mxu0
  %v3600 = vadd.f32 %v26, %v3599
  %v3601 = vpop.f32.mrb[0].mxu0
  %3602 = vmatprep.mubr.f32.mxu0 0.0
  %3603 = vmatmul.mubr.f32.gmra.mrb[0].mxu0 %v3481
  %v3604 = vpop.f32.mrb[0].mxu0
  %v3605 = vadd.f32 %v27, %v3604
  %v3606 = vpop.f32.mrb[0].mxu0
  %3607 = vmatprep.mubr.f32.mxu0 0.0
  %3608 = vmatmul.mubr.f32.gmra.mrb[0].mxu0 %v3484
  %v3609 = vpop.f32.mrb[0].mxu0
  %v3610 = vadd.f32 %v28, %v3609
  %v3611 = vpop.f32.mrb[0].mxu0
  %3612 = vmatprep.mubr.f32.mxu0 0.0
  %3613 = vmatmul.mubr.f32.gmra.mrb[0].mxu0 %v3487
  %v3614 = vpop.f32.mrb[0].mxu0
  %v3615 = vadd.f32 %v29, %v3614
  %v3616 = vpop.f32.mrb[0].mxu0
  %3617 = vdwg.mxu0
  %v3618 = vsel %vm551, %v3580, -inf
  %3619 = vmax.xlane.f32.xlu0 %v3618
  %v3620 = vpop.xlane.xlu0 %3619
  %v3621 = vsel %vm551, %v3585, -inf
  %3622 = vmax.xlane.f32.xlu0 %v3621
  %v3623 = vpop.xlane.xlu0 %3622
  %v3624 = vsel %vm551, %v3590, -inf
  %3625 = vmax.xlane.f32.xlu0 %v3624
  %v3626 = vpop.xlane.xlu0 %3625
  %v3627 = vsel %vm551, %v3595, -inf
  %3628 = vmax.xlane.f32.xlu0 %v3627
  %v3629 = vpop.xlane.xlu0 %3628
  %v3630 = vsel %vm551, %v3600, -inf
  %3631 = vmax.xlane.f32.xlu0 %v3630
  %v3632 = vpop.xlane.xlu0 %3631
  %v3633 = vsel %vm551, %v3605, -inf
  %3634 = vmax.xlane.f32.xlu0 %v3633
  %v3635 = vpop.xlane.xlu0 %3634
  %v3636 = vsel %vm551, %v3610, -inf
  %3637 = vmax.xlane.f32.xlu0 %v3636
  %v3638 = vpop.xlane.xlu0 %3637
  %v3639 = vsel %vm551, %v3615, -inf
  %3640 = vmax.xlane.f32.xlu0 %v3639
  %v3641 = vpop.xlane.xlu0 %3640
  %v3642 = vsub.f32 %v3580, %v3620
  %v3643 = vsub.f32 %v3585, %v3623
  %v3644 = vsub.f32 %v3590, %v3626
  %v3645 = vsub.f32 %v3595, %v3629
  %v3646 = vsub.f32 %v3600, %v3632
  %v3647 = vsub.f32 %v3605, %v3635
  %v3648 = vsub.f32 %v3610, %v3638
  %v3649 = vsub.f32 %v3615, %v3641
  %v3650 = vmul.f32 %v3642, 1.442695
  %v3651 = vpow.pop %v3650
  %v3652 = vmul.f32 %v3643, 1.442695
  %v3653 = vpow.pop %v3652
  %v3654 = vmul.f32 %v3644, 1.442695
  %v3655 = vpow.pop %v3654
  %v3656 = vmul.f32 %v3645, 1.442695
  %v3657 = vpow.pop %v3656
  %v3658 = vmul.f32 %v3646, 1.442695
  %v3659 = vpow.pop %v3658
  %v3660 = vmul.f32 %v3647, 1.442695
  %v3661 = vpow.pop %v3660
  %v3662 = vmul.f32 %v3648, 1.442695
  %v3663 = vpow.pop %v3662
  %v3664 = vmul.f32 %v3649, 1.442695
  %v3665 = vpow.pop %v3664
  %v3666 = vsel %vm551, %v3651, 0.0
  %3667 = vadd.xlane.f32.xlu0 %v3666
  %v3668 = vpop.xlane.xlu0 %3667
  %v3669 = vsel %vm551, %v3653, 0.0
  %3670 = vadd.xlane.f32.xlu0 %v3669
  %v3671 = vpop.xlane.xlu0 %3670
  %v3672 = vsel %vm551, %v3655, 0.0
  %3673 = vadd.xlane.f32.xlu0 %v3672
  %v3674 = vpop.xlane.xlu0 %3673
  %v3675 = vsel %vm551, %v3657, 0.0
  %3676 = vadd.xlane.f32.xlu0 %v3675
  %v3677 = vpop.xlane.xlu0 %3676
  %v3678 = vsel %vm551, %v3659, 0.0
  %3679 = vadd.xlane.f32.xlu0 %v3678
  %v3680 = vpop.xlane.xlu0 %3679
  %v3681 = vsel %vm551, %v3661, 0.0
  %3682 = vadd.xlane.f32.xlu0 %v3681
  %v3683 = vpop.xlane.xlu0 %3682
  %v3684 = vsel %vm551, %v3663, 0.0
  %3685 = vadd.xlane.f32.xlu0 %v3684
  %v3686 = vpop.xlane.xlu0 %3685
  %v3687 = vsel %vm551, %v3665, 0.0
  %3688 = vadd.xlane.f32.xlu0 %v3687
  %v3689 = vpop.xlane.xlu0 %3688
  %v3690 = vrcp.pop %v3668
  %v3691 = vrcp.pop %v3671
  %v3692 = vrcp.pop %v3674
  %v3693 = vrcp.pop %v3677
  %v3694 = vrcp.pop %v3680
  %v3695 = vrcp.pop %v3683
  %v3696 = vrcp.pop %v3686
  %v3697 = vrcp.pop %v3689
  %v3698 = vmul.f32 %v3651, %v3690
  %v3699 = vmul.f32 %v3653, %v3691
  %v3700 = vmul.f32 %v3655, %v3692
  %v3701 = vmul.f32 %v3657, %v3693
  %v3702 = vmul.f32 %v3659, %v3694
  %v3703 = vmul.f32 %v3661, %v3695
  %v3704 = vmul.f32 %v3663, %v3696
  %v3705 = vmul.f32 %v3665, %v3697
  %v3707 = vsel %vm551, %v3698, 0
  %v3710 = vsel %vm551, %v3699, 0
  %v3713 = vsel %vm551, %v3700, 0
  %v3716 = vsel %vm551, %v3701, 0
  %v3719 = vsel %vm551, %v3702, 0
  %v3722 = vsel %vm551, %v3703, 0
  %v3725 = vsel %vm551, %v3704, 0
  %v3728 = vsel %vm551, %v3705, 0
  %3730 = vmatprep.subr.mxu0 0.0
  %3731 = vmatpush1.msra.mxu0 %v3427
  %3732 = vmatprep.subr.mxu0 0.0
  %3733 = vmatpush1.msra.mxu0 %v3432
  %3734 = vmatprep.subr.mxu0 0.0
  %3735 = vmatpush1.msra.mxu0 %v3437
  %3736 = vmatprep.subr.mxu0 0.0
  %3737 = vmatpush1.msra.mxu0 %v3442
  %3738 = vmatprep.subr.mxu0 0.0
  %3739 = vmatpush1.msra.mxu0 %v3447
  %3740 = vmatprep.subr.mxu0 0.0
  %3741 = vmatpush1.msra.mxu0 %v3452
  %3742 = vmatprep.subr.mxu0 0.0
  %3743 = vmatpush1.msra.mxu0 %v3457
  %3744 = vmatprep.subr.mxu0 0.0
  %3745 = vmatpush1.msra.mxu0 %v3462
  %3746 = vmatprep.subr.mxu0 0.0
  %3747 = vmatpush1.msra.mxu0 0.0
  %3748 = vmatprep.subr.mxu0 0.0
  %3749 = vmatpush1.msra.mxu0 0.0
  %3750 = vmatprep.subr.mxu0 0.0
  %3751 = vmatpush1.msra.mxu0 0.0
  %3752 = vmatprep.subr.mxu0 0.0
  %3753 = vmatpush1.msra.mxu0 0.0
  %3754 = vmatprep.subr.mxu0 0.0
  %3755 = vmatpush1.msra.mxu0 0.0
  %3756 = vmatprep.subr.mxu0 0.0
  %3757 = vmatpush1.msra.mxu0 0.0
  %3758 = vmatprep.subr.mxu0 0.0
  %3759 = vmatpush1.msra.mxu0 0.0
  %3760 = vmatprep.subr.mxu0 0.0
  %3761 = vmatpush1.msra.mxu0 0.0
  %3762 = vmatprep.subr.mxu0 0.0
  %3763 = vmatpush1.msra.mxu0 0.0
  %3764 = vmatprep.subr.mxu0 0.0
  %3765 = vmatpush1.msra.mxu0 0.0
  %3766 = vmatprep.subr.mxu0 0.0
  %3767 = vmatpush1.msra.mxu0 0.0
  %3768 = vmatprep.subr.mxu0 0.0
  %3769 = vmatpush1.msra.mxu0 0.0
  %3770 = vmatprep.subr.mxu0 0.0
  %3771 = vmatpush1.msra.mxu0 0.0
  %3772 = vmatprep.subr.mxu0 0.0
  %3773 = vmatpush1.msra.mxu0 0.0
  %3774 = vmatprep.subr.mxu0 0.0
  %3775 = vmatpush1.msra.mxu0 0.0
  %3776 = vmatprep.subr.mxu0 0.0
  %3777 = vmatpush1.msra.mxu0 0.0
  %3778 = vmatprep.subr.mxu0 0.0
  %3779 = vmatpush1.msra.mxu0 0.0
  %3780 = vmatprep.subr.mxu0 0.0
  %3781 = vmatpush1.msra.mxu0 0.0
  %3782 = vmatprep.subr.mxu0 0.0
  %3783 = vmatpush1.msra.mxu0 0.0
  %3784 = vmatprep.subr.mxu0 0.0
  %3785 = vmatpush1.msra.mxu0 0.0
  %3786 = vmatprep.subr.mxu0 0.0
  %3787 = vmatpush1.msra.mxu0 0.0
  %3788 = vmatprep.subr.mxu0 0.0
  %3789 = vmatpush1.msra.mxu0 0.0
  %3790 = vmatprep.subr.mxu0 0.0
  %3791 = vmatpush1.msra.mxu0 0.0
  %3792 = vmatprep.subr.mxu0 0.0
  %3793 = vmatpush1.msra.mxu0 0.0
  %3794 = vmatprep.mubr.f32.mxu0 0.0
  %3795 = vmatmul.mubr.f32.gmra.mrb[0].mxu0 %v3707
  %v3796 = vpop.f32.mrb[0].mxu0
  %v3797 = vadd.f32 0.0, %v3796
  %v3798 = vpop.f32.mrb[0].mxu0
  %3799 = vmatprep.mubr.f32.mxu0 0.0
  %3800 = vmatmul.mubr.f32.gmra.mrb[0].mxu0 %v3710
  %v3801 = vpop.f32.mrb[0].mxu0
  %v3802 = vadd.f32 0.0, %v3801
  %v3803 = vpop.f32.mrb[0].mxu0
  %3804 = vmatprep.mubr.f32.mxu0 0.0
  %3805 = vmatmul.mubr.f32.gmra.mrb[0].mxu0 %v3713
  %v3806 = vpop.f32.mrb[0].mxu0
  %v3807 = vadd.f32 0.0, %v3806
  %v3808 = vpop.f32.mrb[0].mxu0
  %3809 = vmatprep.mubr.f32.mxu0 0.0
  %3810 = vmatmul.mubr.f32.gmra.mrb[0].mxu0 %v3716
  %v3811 = vpop.f32.mrb[0].mxu0
  %v3812 = vadd.f32 0.0, %v3811
  %v3813 = vpop.f32.mrb[0].mxu0
  %3814 = vmatprep.mubr.f32.mxu0 0.0
  %3815 = vmatmul.mubr.f32.gmra.mrb[0].mxu0 %v3719
  %v3816 = vpop.f32.mrb[0].mxu0
  %v3817 = vadd.f32 0.0, %v3816
  %v3818 = vpop.f32.mrb[0].mxu0
  %3819 = vmatprep.mubr.f32.mxu0 0.0
  %3820 = vmatmul.mubr.f32.gmra.mrb[0].mxu0 %v3722
  %v3821 = vpop.f32.mrb[0].mxu0
  %v3822 = vadd.f32 0.0, %v3821
  %v3823 = vpop.f32.mrb[0].mxu0
  %3824 = vmatprep.mubr.f32.mxu0 0.0
  %3825 = vmatmul.mubr.f32.gmra.mrb[0].mxu0 %v3725
  %v3826 = vpop.f32.mrb[0].mxu0
  %v3827 = vadd.f32 0.0, %v3826
  %v3828 = vpop.f32.mrb[0].mxu0
  %3829 = vmatprep.mubr.f32.mxu0 0.0
  %3830 = vmatmul.mubr.f32.gmra.mrb[0].mxu0 %v3728
  %v3831 = vpop.f32.mrb[0].mxu0
  %v3832 = vadd.f32 0.0, %v3831
  %v3833 = vpop.f32.mrb[0].mxu0
  %3834 = vdwg.mxu0
  %v3835 = vld [vmem:[%s2 + $0x290] sm:$0xff]
  %v3836 = vld [vmem:[%s2 + $0x298] sm:$0xff]
  %v3838 = vsel %vm397, %v3797, 0
  %v3841 = vsel %vm397, %v3802, 0
  %v3844 = vsel %vm397, %v3807, 0
  %v3847 = vsel %vm397, %v3812, 0
  %v3850 = vsel %vm397, %v3817, 0
  %v3853 = vsel %vm397, %v3822, 0
  %v3856 = vsel %vm397, %v3827, 0
  %v3859 = vsel %vm397, %v3832, 0
  %3861 = vmatprep.subr.mxu0 0.0
  %3862 = vmatpush1.msra.mxu0 %v3835
  %3863 = vmatprep.subr.mxu0 0.0
  %3864 = vmatpush1.msra.mxu0 %v3836
  %3865 = vmatprep.subr.mxu0 0.0
  %3866 = vmatpush1.msra.mxu0 0.0
  %3867 = vmatprep.subr.mxu0 0.0
  %3868 = vmatpush1.msra.mxu0 0.0
  %3869 = vmatprep.subr.mxu0 0.0
  %3870 = vmatpush1.msra.mxu0 0.0
  %3871 = vmatprep.subr.mxu0 0.0
  %3872 = vmatpush1.msra.mxu0 0.0
  %3873 = vmatprep.subr.mxu0 0.0
  %3874 = vmatpush1.msra.mxu0 0.0
  %3875 = vmatprep.subr.mxu0 0.0
  %3876 = vmatpush1.msra.mxu0 0.0
  %3877 = vmatprep.subr.mxu0 0.0
  %3878 = vmatpush1.msra.mxu0 0.0
  %3879 = vmatprep.subr.mxu0 0.0
  %3880 = vmatpush1.msra.mxu0 0.0
  %3881 = vmatprep.subr.mxu0 0.0
  %3882 = vmatpush1.msra.mxu0 0.0
  %3883 = vmatprep.subr.mxu0 0.0
  %3884 = vmatpush1.msra.mxu0 0.0
  %3885 = vmatprep.subr.mxu0 0.0
  %3886 = vmatpush1.msra.mxu0 0.0
  %3887 = vmatprep.subr.mxu0 0.0
  %3888 = vmatpush1.msra.mxu0 0.0
  %3889 = vmatprep.subr.mxu0 0.0
  %3890 = vmatpush1.msra.mxu0 0.0
  %3891 = vmatprep.subr.mxu0 0.0
  %3892 = vmatpush1.msra.mxu0 0.0
  %3893 = vmatprep.subr.mxu0 0.0
  %3894 = vmatpush1.msra.mxu0 0.0
  %3895 = vmatprep.subr.mxu0 0.0
  %3896 = vmatpush1.msra.mxu0 0.0
  %3897 = vmatprep.subr.mxu0 0.0
  %3898 = vmatpush1.msra.mxu0 0.0
  %3899 = vmatprep.subr.mxu0 0.0
  %3900 = vmatpush1.msra.mxu0 0.0
  %3901 = vmatprep.subr.mxu0 0.0
  %3902 = vmatpush1.msra.mxu0 0.0
  %3903 = vmatprep.subr.mxu0 0.0
  %3904 = vmatpush1.msra.mxu0 0.0
  %3905 = vmatprep.subr.mxu0 0.0
  %3906 = vmatpush1.msra.mxu0 0.0
  %3907 = vmatprep.subr.mxu0 0.0
  %3908 = vmatpush1.msra.mxu0 0.0
  %3909 = vmatprep.subr.mxu0 0.0
  %3910 = vmatpush1.msra.mxu0 0.0
  %3911 = vmatprep.subr.mxu0 0.0
  %3912 = vmatpush1.msra.mxu0 0.0
  %3913 = vmatprep.subr.mxu0 0.0
  %3914 = vmatpush1.msra.mxu0 0.0
  %3915 = vmatprep.subr.mxu0 0.0
  %3916 = vmatpush1.msra.mxu0 0.0
  %3917 = vmatprep.subr.mxu0 0.0
  %3918 = vmatpush1.msra.mxu0 0.0
  %3919 = vmatprep.subr.mxu0 0.0
  %3920 = vmatpush1.msra.mxu0 0.0
  %3921 = vmatprep.subr.mxu0 0.0
  %3922 = vmatpush1.msra.mxu0 0.0
  %3923 = vmatprep.subr.mxu0 0.0
  %3924 = vmatpush1.msra.mxu0 0.0
  %3925 = vmatprep.mubr.f32.mxu0 0.0
  %3926 = vmatmul.mubr.f32.gmra.mrb[0].mxu0 %v3838
  %v3927 = vpop.f32.mrb[0].mxu0
  %v3928 = vadd.f32 0.0, %v3927
  %v3929 = vpop.f32.mrb[0].mxu0
  %3930 = vmatprep.mubr.f32.mxu0 0.0
  %3931 = vmatmul.mubr.f32.gmra.mrb[0].mxu0 %v3841
  %v3932 = vpop.f32.mrb[0].mxu0
  %v3933 = vadd.f32 0.0, %v3932
  %v3934 = vpop.f32.mrb[0].mxu0
  %3935 = vmatprep.mubr.f32.mxu0 0.0
  %3936 = vmatmul.mubr.f32.gmra.mrb[0].mxu0 %v3844
  %v3937 = vpop.f32.mrb[0].mxu0
  %v3938 = vadd.f32 0.0, %v3937
  %v3939 = vpop.f32.mrb[0].mxu0
  %3940 = vmatprep.mubr.f32.mxu0 0.0
  %3941 = vmatmul.mubr.f32.gmra.mrb[0].mxu0 %v3847
  %v3942 = vpop.f32.mrb[0].mxu0
  %v3943 = vadd.f32 0.0, %v3942
  %v3944 = vpop.f32.mrb[0].mxu0
  %3945 = vmatprep.mubr.f32.mxu0 0.0
  %3946 = vmatmul.mubr.f32.gmra.mrb[0].mxu0 %v3850
  %v3947 = vpop.f32.mrb[0].mxu0
  %v3948 = vadd.f32 0.0, %v3947
  %v3949 = vpop.f32.mrb[0].mxu0
  %3950 = vmatprep.mubr.f32.mxu0 0.0
  %3951 = vmatmul.mubr.f32.gmra.mrb[0].mxu0 %v3853
  %v3952 = vpop.f32.mrb[0].mxu0
  %v3953 = vadd.f32 0.0, %v3952
  %v3954 = vpop.f32.mrb[0].mxu0
  %3955 = vmatprep.mubr.f32.mxu0 0.0
  %3956 = vmatmul.mubr.f32.gmra.mrb[0].mxu0 %v3856
  %v3957 = vpop.f32.mrb[0].mxu0
  %v3958 = vadd.f32 0.0, %v3957
  %v3959 = vpop.f32.mrb[0].mxu0
  %3960 = vmatprep.mubr.f32.mxu0 0.0
  %3961 = vmatmul.mubr.f32.gmra.mrb[0].mxu0 %v3859
  %v3962 = vpop.f32.mrb[0].mxu0
  %v3963 = vadd.f32 0.0, %v3962
  %v3964 = vpop.f32.mrb[0].mxu0
  %3965 = vdwg.mxu0
  %v3967 = vsel %vm397, %v3083, 0
  %v3970 = vsel %vm397, %v3088, 0
  %v3973 = vsel %vm397, %v3093, 0
  %v3976 = vsel %vm397, %v3098, 0
  %v3979 = vsel %vm397, %v3103, 0
  %v3982 = vsel %vm397, %v3108, 0
  %v3985 = vsel %vm397, %v3113, 0
  %v3988 = vsel %vm397, %v3118, 0
  %3990 = vmatprep.subr.mxu0 0.0
  %3991 = vmatpush1.msra.mxu0 %v3121
  %3992 = vmatprep.subr.mxu0 0.0
  %3993 = vmatpush1.msra.mxu0 %v3122
  %3994 = vmatprep.subr.mxu0 0.0
  %3995 = vmatpush1.msra.mxu0 0.0
  %3996 = vmatprep.subr.mxu0 0.0
  %3997 = vmatpush1.msra.mxu0 0.0
  %3998 = vmatprep.subr.mxu0 0.0
  %3999 = vmatpush1.msra.mxu0 0.0
  %4000 = vmatprep.subr.mxu0 0.0
  %4001 = vmatpush1.msra.mxu0 0.0
  %4002 = vmatprep.subr.mxu0 0.0
  %4003 = vmatpush1.msra.mxu0 0.0
  %4004 = vmatprep.subr.mxu0 0.0
  %4005 = vmatpush1.msra.mxu0 0.0
  %4006 = vmatprep.subr.mxu0 0.0
  %4007 = vmatpush1.msra.mxu0 0.0
  %4008 = vmatprep.subr.mxu0 0.0
  %4009 = vmatpush1.msra.mxu0 0.0
  %4010 = vmatprep.subr.mxu0 0.0
  %4011 = vmatpush1.msra.mxu0 0.0
  %4012 = vmatprep.subr.mxu0 0.0
  %4013 = vmatpush1.msra.mxu0 0.0
  %4014 = vmatprep.subr.mxu0 0.0
  %4015 = vmatpush1.msra.mxu0 0.0
  %4016 = vmatprep.subr.mxu0 0.0
  %4017 = vmatpush1.msra.mxu0 0.0
  %4018 = vmatprep.subr.mxu0 0.0
  %4019 = vmatpush1.msra.mxu0 0.0
  %4020 = vmatprep.subr.mxu0 0.0
  %4021 = vmatpush1.msra.mxu0 0.0
  %4022 = vmatprep.subr.mxu0 0.0
  %4023 = vmatpush1.msra.mxu0 0.0
  %4024 = vmatprep.subr.mxu0 0.0
  %4025 = vmatpush1.msra.mxu0 0.0
  %4026 = vmatprep.subr.mxu0 0.0
  %4027 = vmatpush1.msra.mxu0 0.0
  %4028 = vmatprep.subr.mxu0 0.0
  %4029 = vmatpush1.msra.mxu0 0.0
  %4030 = vmatprep.subr.mxu0 0.0
  %4031 = vmatpush1.msra.mxu0 0.0
  %4032 = vmatprep.subr.mxu0 0.0
  %4033 = vmatpush1.msra.mxu0 0.0
  %4034 = vmatprep.subr.mxu0 0.0
  %4035 = vmatpush1.msra.mxu0 0.0
  %4036 = vmatprep.subr.mxu0 0.0
  %4037 = vmatpush1.msra.mxu0 0.0
  %4038 = vmatprep.subr.mxu0 0.0
  %4039 = vmatpush1.msra.mxu0 0.0
  %4040 = vmatprep.subr.mxu0 0.0
  %4041 = vmatpush1.msra.mxu0 0.0
  %4042 = vmatprep.subr.mxu0 0.0
  %4043 = vmatpush1.msra.mxu0 0.0
  %4044 = vmatprep.subr.mxu0 0.0
  %4045 = vmatpush1.msra.mxu0 0.0
  %4046 = vmatprep.subr.mxu0 0.0
  %4047 = vmatpush1.msra.mxu0 0.0
  %4048 = vmatprep.subr.mxu0 0.0
  %4049 = vmatpush1.msra.mxu0 0.0
  %4050 = vmatprep.subr.mxu0 0.0
  %4051 = vmatpush1.msra.mxu0 0.0
  %4052 = vmatprep.subr.mxu0 0.0
  %4053 = vmatpush1.msra.mxu0 0.0
  %4054 = vmatprep.mubr.f32.mxu0 0.0
  %4055 = vmatmul.mubr.f32.gmra.mrb[0].mxu0 %v3967
  %v4056 = vpop.f32.mrb[0].mxu0
  %v4057 = vadd.f32 %v3928, %v4056
  %v4058 = vpop.f32.mrb[0].mxu0
  %4059 = vmatprep.mubr.f32.mxu0 0.0
  %4060 = vmatmul.mubr.f32.gmra.mrb[0].mxu0 %v3970
  %v4061 = vpop.f32.mrb[0].mxu0
  %v4062 = vadd.f32 %v3933, %v4061
  %v4063 = vpop.f32.mrb[0].mxu0
  %4064 = vmatprep.mubr.f32.mxu0 0.0
  %4065 = vmatmul.mubr.f32.gmra.mrb[0].mxu0 %v3973
  %v4066 = vpop.f32.mrb[0].mxu0
  %v4067 = vadd.f32 %v3938, %v4066
  %v4068 = vpop.f32.mrb[0].mxu0
  %4069 = vmatprep.mubr.f32.mxu0 0.0
  %4070 = vmatmul.mubr.f32.gmra.mrb[0].mxu0 %v3976
  %v4071 = vpop.f32.mrb[0].mxu0
  %v4072 = vadd.f32 %v3943, %v4071
  %v4073 = vpop.f32.mrb[0].mxu0
  %4074 = vmatprep.mubr.f32.mxu0 0.0
  %4075 = vmatmul.mubr.f32.gmra.mrb[0].mxu0 %v3979
  %v4076 = vpop.f32.mrb[0].mxu0
  %v4077 = vadd.f32 %v3948, %v4076
  %v4078 = vpop.f32.mrb[0].mxu0
  %4079 = vmatprep.mubr.f32.mxu0 0.0
  %4080 = vmatmul.mubr.f32.gmra.mrb[0].mxu0 %v3982
  %v4081 = vpop.f32.mrb[0].mxu0
  %v4082 = vadd.f32 %v3953, %v4081
  %v4083 = vpop.f32.mrb[0].mxu0
  %4084 = vmatprep.mubr.f32.mxu0 0.0
  %4085 = vmatmul.mubr.f32.gmra.mrb[0].mxu0 %v3985
  %v4086 = vpop.f32.mrb[0].mxu0
  %v4087 = vadd.f32 %v3958, %v4086
  %v4088 = vpop.f32.mrb[0].mxu0
  %4089 = vmatprep.mubr.f32.mxu0 0.0
  %4090 = vmatmul.mubr.f32.gmra.mrb[0].mxu0 %v3988
  %v4091 = vpop.f32.mrb[0].mxu0
  %v4092 = vadd.f32 %v3963, %v4091
  %v4093 = vpop.f32.mrb[0].mxu0
  %4094 = vdwg.mxu0
  %v4095 = vld [vmem:[%s2 + $0x2b8] sm:$0x1]
  %v4096 = vlaneseq
  %v4097 = vshrl.u32 %v4096, 7
  %v4098 = vsub.s32 0, %v4097
  %v4099 = vrot.slane %v4095, %v4098
  %v4100 = vadd.f32 %v4057, %v4099
  %v4101 = vadd.f32 %v4062, %v4099
  %v4102 = vadd.f32 %v4067, %v4099
  %v4103 = vadd.f32 %v4072, %v4099
  %v4104 = vadd.f32 %v4077, %v4099
  %v4105 = vadd.f32 %v4082, %v4099
  %v4106 = vadd.f32 %v4087, %v4099
  %v4107 = vadd.f32 %v4092, %v4099
  %v4108 = vadd.f32 %v2377, %v4100
  %v4109 = vadd.f32 %v2378, %v4101
  %v4110 = vadd.f32 %v2379, %v4102
  %v4111 = vadd.f32 %v2380, %v4103
  %v4112 = vadd.f32 %v2381, %v4104
  %v4113 = vadd.f32 %v2382, %v4105
  %v4114 = vadd.f32 %v2383, %v4106
  %v4115 = vadd.f32 %v2384, %v4107
  %v4116 = vld [vmem:[%s2 + $0x2c0] sm:$0x1]
  %v4117 = vld [vmem:[%s2 + $0x2c8] sm:$0x1]
  %v4118 = vsel %vm39, %v4108, 0.0
  %4119 = vadd.xlane.f32.xlu0 %v4118
  %v4120 = vpop.xlane.xlu0 %4119
  %v4121 = vsel %vm39, %v4109, 0.0
  %4122 = vadd.xlane.f32.xlu0 %v4121
  %v4123 = vpop.xlane.xlu0 %4122
  %v4124 = vsel %vm39, %v4110, 0.0
  %4125 = vadd.xlane.f32.xlu0 %v4124
  %v4126 = vpop.xlane.xlu0 %4125
  %v4127 = vsel %vm39, %v4111, 0.0
  %4128 = vadd.xlane.f32.xlu0 %v4127
  %v4129 = vpop.xlane.xlu0 %4128
  %v4130 = vsel %vm39, %v4112, 0.0
  %4131 = vadd.xlane.f32.xlu0 %v4130
  %v4132 = vpop.xlane.xlu0 %4131
  %v4133 = vsel %vm39, %v4113, 0.0
  %4134 = vadd.xlane.f32.xlu0 %v4133
  %v4135 = vpop.xlane.xlu0 %4134
  %v4136 = vsel %vm39, %v4114, 0.0
  %4137 = vadd.xlane.f32.xlu0 %v4136
  %v4138 = vpop.xlane.xlu0 %4137
  %v4139 = vsel %vm39, %v4115, 0.0
  %4140 = vadd.xlane.f32.xlu0 %v4139
  %v4141 = vpop.xlane.xlu0 %4140
  %v4142 = vmul.f32 %v4120, %v1790
  %v4143 = vmul.f32 %v4123, %v1790
  %v4144 = vmul.f32 %v4126, %v1790
  %v4145 = vmul.f32 %v4129, %v1790
  %v4146 = vmul.f32 %v4132, %v1790
  %v4147 = vmul.f32 %v4135, %v1790
  %v4148 = vmul.f32 %v4138, %v1790
  %v4149 = vmul.f32 %v4141, %v1790
  %v4150 = vsub.f32 %v4108, %v4142
  %v4151 = vsub.f32 %v4109, %v4143
  %v4152 = vsub.f32 %v4110, %v4144
  %v4153 = vsub.f32 %v4111, %v4145
  %v4154 = vsub.f32 %v4112, %v4146
  %v4155 = vsub.f32 %v4113, %v4147
  %v4156 = vsub.f32 %v4114, %v4148
  %v4157 = vsub.f32 %v4115, %v4149
  %v4158 = vmul.f32 %v4150, %v4150
  %v4159 = vmul.f32 %v4151, %v4151
  %v4160 = vmul.f32 %v4152, %v4152
  %v4161 = vmul.f32 %v4153, %v4153
  %v4162 = vmul.f32 %v4154, %v4154
  %v4163 = vmul.f32 %v4155, %v4155
  %v4164 = vmul.f32 %v4156, %v4156
  %v4165 = vmul.f32 %v4157, %v4157
  %v4166 = vsel %vm39, %v4158, 0.0
  %4167 = vadd.xlane.f32.xlu0 %v4166
  %v4168 = vpop.xlane.xlu0 %4167
  %v4169 = vsel %vm39, %v4159, 0.0
  %4170 = vadd.xlane.f32.xlu0 %v4169
  %v4171 = vpop.xlane.xlu0 %4170
  %v4172 = vsel %vm39, %v4160, 0.0
  %4173 = vadd.xlane.f32.xlu0 %v4172
  %v4174 = vpop.xlane.xlu0 %4173
  %v4175 = vsel %vm39, %v4161, 0.0
  %4176 = vadd.xlane.f32.xlu0 %v4175
  %v4177 = vpop.xlane.xlu0 %4176
  %v4178 = vsel %vm39, %v4162, 0.0
  %4179 = vadd.xlane.f32.xlu0 %v4178
  %v4180 = vpop.xlane.xlu0 %4179
  %v4181 = vsel %vm39, %v4163, 0.0
  %4182 = vadd.xlane.f32.xlu0 %v4181
  %v4183 = vpop.xlane.xlu0 %4182
  %v4184 = vsel %vm39, %v4164, 0.0
  %4185 = vadd.xlane.f32.xlu0 %v4184
  %v4186 = vpop.xlane.xlu0 %4185
  %v4187 = vsel %vm39, %v4165, 0.0
  %4188 = vadd.xlane.f32.xlu0 %v4187
  %v4189 = vpop.xlane.xlu0 %4188
  %v4190 = vmul.f32 %v4168, %v1790
  %v4191 = vmul.f32 %v4171, %v1790
  %v4192 = vmul.f32 %v4174, %v1790
  %v4193 = vmul.f32 %v4177, %v1790
  %v4194 = vmul.f32 %v4180, %v1790
  %v4195 = vmul.f32 %v4183, %v1790
  %v4196 = vmul.f32 %v4186, %v1790
  %v4197 = vmul.f32 %v4189, %v1790
  %v4198 = vadd.f32 %v4190, 1e-12
  %v4199 = vadd.f32 %v4191, 1e-12
  %v4200 = vadd.f32 %v4192, 1e-12
  %v4201 = vadd.f32 %v4193, 1e-12
  %v4202 = vadd.f32 %v4194, 1e-12
  %v4203 = vadd.f32 %v4195, 1e-12
  %v4204 = vadd.f32 %v4196, 1e-12
  %v4205 = vadd.f32 %v4197, 1e-12
  %v4206 = vrsqrt.pop %v4198
  %v4207 = vrsqrt.pop %v4199
  %v4208 = vrsqrt.pop %v4200
  %v4209 = vrsqrt.pop %v4201
  %v4210 = vrsqrt.pop %v4202
  %v4211 = vrsqrt.pop %v4203
  %v4212 = vrsqrt.pop %v4204
  %v4213 = vrsqrt.pop %v4205
  %v4214 = vmul.f32 %v4150, %v4206
  %v4215 = vmul.f32 %v4151, %v4207
  %v4216 = vmul.f32 %v4152, %v4208
  %v4217 = vmul.f32 %v4153, %v4209
  %v4218 = vmul.f32 %v4154, %v4210
  %v4219 = vmul.f32 %v4155, %v4211
  %v4220 = vmul.f32 %v4156, %v4212
  %v4221 = vmul.f32 %v4157, %v4213
  %v4222 = vlaneseq
  %v4223 = vshrl.u32 %v4222, 7
  %v4224 = vsub.s32 0, %v4223
  %v4225 = vrot.slane %v4116, %v4224
  %v4226 = vmul.f32 %v4214, %v4225
  %v4227 = vmul.f32 %v4215, %v4225
  %v4228 = vmul.f32 %v4216, %v4225
  %v4229 = vmul.f32 %v4217, %v4225
  %v4230 = vmul.f32 %v4218, %v4225
  %v4231 = vmul.f32 %v4219, %v4225
  %v4232 = vmul.f32 %v4220, %v4225
  %v4233 = vmul.f32 %v4221, %v4225
  %v4234 = vlaneseq
  %v4235 = vshrl.u32 %v4234, 7
  %v4236 = vsub.s32 0, %v4235
  %v4237 = vrot.slane %v4117, %v4236
  %v4238 = vadd.f32 %v4226, %v4237
  %v4239 = vadd.f32 %v4227, %v4237
  %v4240 = vadd.f32 %v4228, %v4237
  %v4241 = vadd.f32 %v4229, %v4237
  %v4242 = vadd.f32 %v4230, %v4237
  %v4243 = vadd.f32 %v4231, %v4237
  %v4244 = vadd.f32 %v4232, %v4237
  %v4245 = vadd.f32 %v4233, %v4237
  %v4246 = vld [vmem:[%s2 + $0x2d0] sm:$0xff]
  %v4247 = vld [vmem:[%s2 + $0x2d8] sm:$0xff]
  %v4248 = vld [vmem:[%s2 + $0x2e0] sm:$0xff]
  %v4249 = vld [vmem:[%s2 + $0x2e8] sm:$0xff]
  %v4250 = vld [vmem:[%s2 + $0x2f0] sm:$0x1]
  %v4251 = vlaneseq
  %v4252 = vshrl.u32 %v4251, 7
  %v4253 = vsub.s32 0, %v4252
  %v4254 = vrot.slane %v4250, %v4253
  %v4256 = vsel %vm39, %v4238, 0
  %v4259 = vsel %vm39, %v4239, 0
  %v4262 = vsel %vm39, %v4240, 0
  %v4265 = vsel %vm39, %v4241, 0
  %v4268 = vsel %vm39, %v4242, 0
  %v4271 = vsel %vm39, %v4243, 0
  %v4274 = vsel %vm39, %v4244, 0
  %v4277 = vsel %vm39, %v4245, 0
  %4279 = vmatprep.subr.mxu0 0.0
  %4280 = vmatpush1.msra.mxu0 %v4246
  %4281 = vmatprep.subr.mxu0 0.0
  %4282 = vmatpush1.msra.mxu0 %v4247
  %4283 = vmatprep.subr.mxu0 0.0
  %4284 = vmatpush1.msra.mxu0 %v4248
  %4285 = vmatprep.subr.mxu0 0.0
  %4286 = vmatpush1.msra.mxu0 %v4249
  %4287 = vmatprep.subr.mxu0 0.0
  %4288 = vmatpush1.msra.mxu0 0.0
  %4289 = vmatprep.subr.mxu0 0.0
  %4290 = vmatpush1.msra.mxu0 0.0
  %4291 = vmatprep.subr.mxu0 0.0
  %4292 = vmatpush1.msra.mxu0 0.0
  %4293 = vmatprep.subr.mxu0 0.0
  %4294 = vmatpush1.msra.mxu0 0.0
  %4295 = vmatprep.subr.mxu0 0.0
  %4296 = vmatpush1.msra.mxu0 0.0
  %4297 = vmatprep.subr.mxu0 0.0
  %4298 = vmatpush1.msra.mxu0 0.0
  %4299 = vmatprep.subr.mxu0 0.0
  %4300 = vmatpush1.msra.mxu0 0.0
  %4301 = vmatprep.subr.mxu0 0.0
  %4302 = vmatpush1.msra.mxu0 0.0
  %4303 = vmatprep.subr.mxu0 0.0
  %4304 = vmatpush1.msra.mxu0 0.0
  %4305 = vmatprep.subr.mxu0 0.0
  %4306 = vmatpush1.msra.mxu0 0.0
  %4307 = vmatprep.subr.mxu0 0.0
  %4308 = vmatpush1.msra.mxu0 0.0
  %4309 = vmatprep.subr.mxu0 0.0
  %4310 = vmatpush1.msra.mxu0 0.0
  %4311 = vmatprep.subr.mxu0 0.0
  %4312 = vmatpush1.msra.mxu0 0.0
  %4313 = vmatprep.subr.mxu0 0.0
  %4314 = vmatpush1.msra.mxu0 0.0
  %4315 = vmatprep.subr.mxu0 0.0
  %4316 = vmatpush1.msra.mxu0 0.0
  %4317 = vmatprep.subr.mxu0 0.0
  %4318 = vmatpush1.msra.mxu0 0.0
  %4319 = vmatprep.subr.mxu0 0.0
  %4320 = vmatpush1.msra.mxu0 0.0
  %4321 = vmatprep.subr.mxu0 0.0
  %4322 = vmatpush1.msra.mxu0 0.0
  %4323 = vmatprep.subr.mxu0 0.0
  %4324 = vmatpush1.msra.mxu0 0.0
  %4325 = vmatprep.subr.mxu0 0.0
  %4326 = vmatpush1.msra.mxu0 0.0
  %4327 = vmatprep.subr.mxu0 0.0
  %4328 = vmatpush1.msra.mxu0 0.0
  %4329 = vmatprep.subr.mxu0 0.0
  %4330 = vmatpush1.msra.mxu0 0.0
  %4331 = vmatprep.subr.mxu0 0.0
  %4332 = vmatpush1.msra.mxu0 0.0
  %4333 = vmatprep.subr.mxu0 0.0
  %4334 = vmatpush1.msra.mxu0 0.0
  %4335 = vmatprep.subr.mxu0 0.0
  %4336 = vmatpush1.msra.mxu0 0.0
  %4337 = vmatprep.subr.mxu0 0.0
  %4338 = vmatpush1.msra.mxu0 0.0
  %4339 = vmatprep.subr.mxu0 0.0
  %4340 = vmatpush1.msra.mxu0 0.0
  %4341 = vmatprep.subr.mxu0 0.0
  %4342 = vmatpush1.msra.mxu0 0.0
  %4343 = vmatprep.mubr.f32.mxu0 0.0
  %4344 = vmatmul.mubr.f32.gmra.mrb[0].mxu0 %v4256
  %v4345 = vpop.f32.mrb[0].mxu0
  %v4346 = vadd.f32 %v4254, %v4345
  %v4347 = vpop.f32.mrb[0].mxu0
  %4348 = vmatprep.mubr.f32.mxu0 0.0
  %4349 = vmatmul.mubr.f32.gmra.mrb[0].mxu0 %v4259
  %v4350 = vpop.f32.mrb[0].mxu0
  %v4351 = vadd.f32 %v4254, %v4350
  %v4352 = vpop.f32.mrb[0].mxu0
  %4353 = vmatprep.mubr.f32.mxu0 0.0
  %4354 = vmatmul.mubr.f32.gmra.mrb[0].mxu0 %v4262
  %v4355 = vpop.f32.mrb[0].mxu0
  %v4356 = vadd.f32 %v4254, %v4355
  %v4357 = vpop.f32.mrb[0].mxu0
  %4358 = vmatprep.mubr.f32.mxu0 0.0
  %4359 = vmatmul.mubr.f32.gmra.mrb[0].mxu0 %v4265
  %v4360 = vpop.f32.mrb[0].mxu0
  %v4361 = vadd.f32 %v4254, %v4360
  %v4362 = vpop.f32.mrb[0].mxu0
  %4363 = vmatprep.mubr.f32.mxu0 0.0
  %4364 = vmatmul.mubr.f32.gmra.mrb[0].mxu0 %v4268
  %v4365 = vpop.f32.mrb[0].mxu0
  %v4366 = vadd.f32 %v4254, %v4365
  %v4367 = vpop.f32.mrb[0].mxu0
  %4368 = vmatprep.mubr.f32.mxu0 0.0
  %4369 = vmatmul.mubr.f32.gmra.mrb[0].mxu0 %v4271
  %v4370 = vpop.f32.mrb[0].mxu0
  %v4371 = vadd.f32 %v4254, %v4370
  %v4372 = vpop.f32.mrb[0].mxu0
  %4373 = vmatprep.mubr.f32.mxu0 0.0
  %4374 = vmatmul.mubr.f32.gmra.mrb[0].mxu0 %v4274
  %v4375 = vpop.f32.mrb[0].mxu0
  %v4376 = vadd.f32 %v4254, %v4375
  %v4377 = vpop.f32.mrb[0].mxu0
  %4378 = vmatprep.mubr.f32.mxu0 0.0
  %4379 = vmatmul.mubr.f32.gmra.mrb[0].mxu0 %v4277
  %v4380 = vpop.f32.mrb[0].mxu0
  %v4381 = vadd.f32 %v4254, %v4380
  %v4382 = vpop.f32.mrb[0].mxu0
  %4383 = vdwg.mxu0
  %v4384 = vmul.f32 %v4346, 0.5
  %v4385 = vmul.f32 %v4351, 0.5
  %v4386 = vmul.f32 %v4356, 0.5
  %v4387 = vmul.f32 %v4361, 0.5
  %v4388 = vmul.f32 %v4366, 0.5
  %v4389 = vmul.f32 %v4371, 0.5
  %v4390 = vmul.f32 %v4376, 0.5
  %v4391 = vmul.f32 %v4381, 0.5
  %v4392 = vmul.f32 %v4346, 0.044715
  %v4393 = vmul.f32 %v4351, 0.044715
  %v4394 = vmul.f32 %v4356, 0.044715
  %v4395 = vmul.f32 %v4361, 0.044715
  %v4396 = vmul.f32 %v4366, 0.044715
  %v4397 = vmul.f32 %v4371, 0.044715
  %v4398 = vmul.f32 %v4376, 0.044715
  %v4399 = vmul.f32 %v4381, 0.044715
  %v4400 = vmul.f32 %v4392, %v4346
  %v4401 = vmul.f32 %v4393, %v4351
  %v4402 = vmul.f32 %v4394, %v4356
  %v4403 = vmul.f32 %v4395, %v4361
  %v4404 = vmul.f32 %v4396, %v4366
  %v4405 = vmul.f32 %v4397, %v4371
  %v4406 = vmul.f32 %v4398, %v4376
  %v4407 = vmul.f32 %v4399, %v4381
  %v4408 = vmul.f32 %v4400, %v4346
  %v4409 = vmul.f32 %v4401, %v4351
  %v4410 = vmul.f32 %v4402, %v4356
  %v4411 = vmul.f32 %v4403, %v4361
  %v4412 = vmul.f32 %v4404, %v4366
  %v4413 = vmul.f32 %v4405, %v4371
  %v4414 = vmul.f32 %v4406, %v4376
  %v4415 = vmul.f32 %v4407, %v4381
  %v4416 = vadd.f32 %v4346, %v4408
  %v4417 = vadd.f32 %v4351, %v4409
  %v4418 = vadd.f32 %v4356, %v4410
  %v4419 = vadd.f32 %v4361, %v4411
  %v4420 = vadd.f32 %v4366, %v4412
  %v4421 = vadd.f32 %v4371, %v4413
  %v4422 = vadd.f32 %v4376, %v4414
  %v4423 = vadd.f32 %v4381, %v4415
  %v4424 = vmul.f32 %v4416, 0.7978846
  %v4425 = vmul.f32 %v4417, 0.7978846
  %v4426 = vmul.f32 %v4418, 0.7978846
  %v4427 = vmul.f32 %v4419, 0.7978846
  %v4428 = vmul.f32 %v4420, 0.7978846
  %v4429 = vmul.f32 %v4421, 0.7978846
  %v4430 = vmul.f32 %v4422, 0.7978846
  %v4431 = vmul.f32 %v4423, 0.7978846
  %v4432 = vtanh.pop %v4424
  %v4433 = vtanh.pop %v4425
  %v4434 = vtanh.pop %v4426
  %v4435 = vtanh.pop %v4427
  %v4436 = vtanh.pop %v4428
  %v4437 = vtanh.pop %v4429
  %v4438 = vtanh.pop %v4430
  %v4439 = vtanh.pop %v4431
  %v4440 = vadd.f32 %v4432, 1.0
  %v4441 = vadd.f32 %v4433, 1.0
  %v4442 = vadd.f32 %v4434, 1.0
  %v4443 = vadd.f32 %v4435, 1.0
  %v4444 = vadd.f32 %v4436, 1.0
  %v4445 = vadd.f32 %v4437, 1.0
  %v4446 = vadd.f32 %v4438, 1.0
  %v4447 = vadd.f32 %v4439, 1.0
  %v4448 = vmul.f32 %v4384, %v4440
  %v4449 = vmul.f32 %v4385, %v4441
  %v4450 = vmul.f32 %v4386, %v4442
  %v4451 = vmul.f32 %v4387, %v4443
  %v4452 = vmul.f32 %v4388, %v4444
  %v4453 = vmul.f32 %v4389, %v4445
  %v4454 = vmul.f32 %v4390, %v4446
  %v4455 = vmul.f32 %v4391, %v4447
  %v4456 = vld [vmem:[%s2 + $0x2f8] sm:$0xff]
  %v4457 = vld [vmem:[%s2 + $0x300] sm:$0xff]
  %v4458 = vld [vmem:[%s2 + $0x308] sm:$0xff]
  %v4459 = vld [vmem:[%s2 + $0x310] sm:$0xff]
  %v4460 = vld [vmem:[%s2 + $0x318] sm:$0xff]
  %v4461 = vld [vmem:[%s2 + $0x320] sm:$0xff]
  %v4462 = vld [vmem:[%s2 + $0x328] sm:$0xff]
  %v4463 = vld [vmem:[%s2 + $0x330] sm:$0xff]
  %v4464 = vld [vmem:[%s2 + $0x338] sm:$0x1]
  %v4465 = vlaneseq
  %v4466 = vshrl.u32 %v4465, 7
  %v4467 = vsub.s32 0, %v4466
  %v4468 = vrot.slane %v4464, %v4467
  %v4470 = vsel %vm551, %v4448, 0
  %v4473 = vsel %vm551, %v4449, 0
  %v4476 = vsel %vm551, %v4450, 0
  %v4479 = vsel %vm551, %v4451, 0
  %v4482 = vsel %vm551, %v4452, 0
  %v4485 = vsel %vm551, %v4453, 0
  %v4488 = vsel %vm551, %v4454, 0
  %v4491 = vsel %vm551, %v4455, 0
  %4493 = vmatprep.subr.mxu0 0.0
  %4494 = vmatpush1.msra.mxu0 %v4456
  %4495 = vmatprep.subr.mxu0 0.0
  %4496 = vmatpush1.msra.mxu0 %v4457
  %4497 = vmatprep.subr.mxu0 0.0
  %4498 = vmatpush1.msra.mxu0 %v4458
  %4499 = vmatprep.subr.mxu0 0.0
  %4500 = vmatpush1.msra.mxu0 %v4459
  %4501 = vmatprep.subr.mxu0 0.0
  %4502 = vmatpush1.msra.mxu0 %v4460
  %4503 = vmatprep.subr.mxu0 0.0
  %4504 = vmatpush1.msra.mxu0 %v4461
  %4505 = vmatprep.subr.mxu0 0.0
  %4506 = vmatpush1.msra.mxu0 %v4462
  %4507 = vmatprep.subr.mxu0 0.0
  %4508 = vmatpush1.msra.mxu0 %v4463
  %4509 = vmatprep.subr.mxu0 0.0
  %4510 = vmatpush1.msra.mxu0 0.0
  %4511 = vmatprep.subr.mxu0 0.0
  %4512 = vmatpush1.msra.mxu0 0.0
  %4513 = vmatprep.subr.mxu0 0.0
  %4514 = vmatpush1.msra.mxu0 0.0
  %4515 = vmatprep.subr.mxu0 0.0
  %4516 = vmatpush1.msra.mxu0 0.0
  %4517 = vmatprep.subr.mxu0 0.0
  %4518 = vmatpush1.msra.mxu0 0.0
  %4519 = vmatprep.subr.mxu0 0.0
  %4520 = vmatpush1.msra.mxu0 0.0
  %4521 = vmatprep.subr.mxu0 0.0
  %4522 = vmatpush1.msra.mxu0 0.0
  %4523 = vmatprep.subr.mxu0 0.0
  %4524 = vmatpush1.msra.mxu0 0.0
  %4525 = vmatprep.subr.mxu0 0.0
  %4526 = vmatpush1.msra.mxu0 0.0
  %4527 = vmatprep.subr.mxu0 0.0
  %4528 = vmatpush1.msra.mxu0 0.0
  %4529 = vmatprep.subr.mxu0 0.0
  %4530 = vmatpush1.msra.mxu0 0.0
  %4531 = vmatprep.subr.mxu0 0.0
  %4532 = vmatpush1.msra.mxu0 0.0
  %4533 = vmatprep.subr.mxu0 0.0
  %4534 = vmatpush1.msra.mxu0 0.0
  %4535 = vmatprep.subr.mxu0 0.0
  %4536 = vmatpush1.msra.mxu0 0.0
  %4537 = vmatprep.subr.mxu0 0.0
  %4538 = vmatpush1.msra.mxu0 0.0
  %4539 = vmatprep.subr.mxu0 0.0
  %4540 = vmatpush1.msra.mxu0 0.0
  %4541 = vmatprep.subr.mxu0 0.0
  %4542 = vmatpush1.msra.mxu0 0.0
  %4543 = vmatprep.subr.mxu0 0.0
  %4544 = vmatpush1.msra.mxu0 0.0
  %4545 = vmatprep.subr.mxu0 0.0
  %4546 = vmatpush1.msra.mxu0 0.0
  %4547 = vmatprep.subr.mxu0 0.0
  %4548 = vmatpush1.msra.mxu0 0.0
  %4549 = vmatprep.subr.mxu0 0.0
  %4550 = vmatpush1.msra.mxu0 0.0
  %4551 = vmatprep.subr.mxu0 0.0
  %4552 = vmatpush1.msra.mxu0 0.0
  %4553 = vmatprep.subr.mxu0 0.0
  %4554 = vmatpush1.msra.mxu0 0.0
  %4555 = vmatprep.subr.mxu0 0.0
  %4556 = vmatpush1.msra.mxu0 0.0
  %4557 = vmatprep.mubr.f32.mxu0 0.0
  %4558 = vmatmul.mubr.f32.gmra.mrb[0].mxu0 %v4470
  %v4559 = vpop.f32.mrb[0].mxu0
  %v4560 = vadd.f32 %v4468, %v4559
  %v4561 = vpop.f32.mrb[0].mxu0
  %4562 = vmatprep.mubr.f32.mxu0 0.0
  %4563 = vmatmul.mubr.f32.gmra.mrb[0].mxu0 %v4473
  %v4564 = vpop.f32.mrb[0].mxu0
  %v4565 = vadd.f32 %v4468, %v4564
  %v4566 = vpop.f32.mrb[0].mxu0
  %4567 = vmatprep.mubr.f32.mxu0 0.0
  %4568 = vmatmul.mubr.f32.gmra.mrb[0].mxu0 %v4476
  %v4569 = vpop.f32.mrb[0].mxu0
  %v4570 = vadd.f32 %v4468, %v4569
  %v4571 = vpop.f32.mrb[0].mxu0
  %4572 = vmatprep.mubr.f32.mxu0 0.0
  %4573 = vmatmul.mubr.f32.gmra.mrb[0].mxu0 %v4479
  %v4574 = vpop.f32.mrb[0].mxu0
  %v4575 = vadd.f32 %v4468, %v4574
  %v4576 = vpop.f32.mrb[0].mxu0
  %4577 = vmatprep.mubr.f32.mxu0 0.0
  %4578 = vmatmul.mubr.f32.gmra.mrb[0].mxu0 %v4482
  %v4579 = vpop.f32.mrb[0].mxu0
  %v4580 = vadd.f32 %v4468, %v4579
  %v4581 = vpop.f32.mrb[0].mxu0
  %4582 = vmatprep.mubr.f32.mxu0 0.0
  %4583 = vmatmul.mubr.f32.gmra.mrb[0].mxu0 %v4485
  %v4584 = vpop.f32.mrb[0].mxu0
  %v4585 = vadd.f32 %v4468, %v4584
  %v4586 = vpop.f32.mrb[0].mxu0
  %4587 = vmatprep.mubr.f32.mxu0 0.0
  %4588 = vmatmul.mubr.f32.gmra.mrb[0].mxu0 %v4488
  %v4589 = vpop.f32.mrb[0].mxu0
  %v4590 = vadd.f32 %v4468, %v4589
  %v4591 = vpop.f32.mrb[0].mxu0
  %4592 = vmatprep.mubr.f32.mxu0 0.0
  %4593 = vmatmul.mubr.f32.gmra.mrb[0].mxu0 %v4491
  %v4594 = vpop.f32.mrb[0].mxu0
  %v4595 = vadd.f32 %v4468, %v4594
  %v4596 = vpop.f32.mrb[0].mxu0
  %4597 = vdwg.mxu0
  %v4598 = vadd.f32 %v4238, %v4560
  %v4599 = vadd.f32 %v4239, %v4565
  %v4600 = vadd.f32 %v4240, %v4570
  %v4601 = vadd.f32 %v4241, %v4575
  %v4602 = vadd.f32 %v4242, %v4580
  %v4603 = vadd.f32 %v4243, %v4585
  %v4604 = vadd.f32 %v4244, %v4590
  %v4605 = vadd.f32 %v4245, %v4595
  %v4606 = vld [vmem:[%s2 + $0x340] sm:$0x1]
  %v4607 = vld [vmem:[%s2 + $0x348] sm:$0x1]
  %v4608 = vsel %vm39, %v4598, 0.0
  %4609 = vadd.xlane.f32.xlu0 %v4608
  %v4610 = vpop.xlane.xlu0 %4609
  %v4611 = vsel %vm39, %v4599, 0.0
  %4612 = vadd.xlane.f32.xlu0 %v4611
  %v4613 = vpop.xlane.xlu0 %4612
  %v4614 = vsel %vm39, %v4600, 0.0
  %4615 = vadd.xlane.f32.xlu0 %v4614
  %v4616 = vpop.xlane.xlu0 %4615
  %v4617 = vsel %vm39, %v4601, 0.0
  %4618 = vadd.xlane.f32.xlu0 %v4617
  %v4619 = vpop.xlane.xlu0 %4618
  %v4620 = vsel %vm39, %v4602, 0.0
  %4621 = vadd.xlane.f32.xlu0 %v4620
  %v4622 = vpop.xlane.xlu0 %4621
  %v4623 = vsel %vm39, %v4603, 0.0
  %4624 = vadd.xlane.f32.xlu0 %v4623
  %v4625 = vpop.xlane.xlu0 %4624
  %v4626 = vsel %vm39, %v4604, 0.0
  %4627 = vadd.xlane.f32.xlu0 %v4626
  %v4628 = vpop.xlane.xlu0 %4627
  %v4629 = vsel %vm39, %v4605, 0.0
  %4630 = vadd.xlane.f32.xlu0 %v4629
  %v4631 = vpop.xlane.xlu0 %4630
  %v4632 = vmul.f32 %v4610, %v1790
  %v4633 = vmul.f32 %v4613, %v1790
  %v4634 = vmul.f32 %v4616, %v1790
  %v4635 = vmul.f32 %v4619, %v1790
  %v4636 = vmul.f32 %v4622, %v1790
  %v4637 = vmul.f32 %v4625, %v1790
  %v4638 = vmul.f32 %v4628, %v1790
  %v4639 = vmul.f32 %v4631, %v1790
  %v4640 = vsub.f32 %v4598, %v4632
  %v4641 = vsub.f32 %v4599, %v4633
  %v4642 = vsub.f32 %v4600, %v4634
  %v4643 = vsub.f32 %v4601, %v4635
  %v4644 = vsub.f32 %v4602, %v4636
  %v4645 = vsub.f32 %v4603, %v4637
  %v4646 = vsub.f32 %v4604, %v4638
  %v4647 = vsub.f32 %v4605, %v4639
  %v4648 = vmul.f32 %v4640, %v4640
  %v4649 = vmul.f32 %v4641, %v4641
  %v4650 = vmul.f32 %v4642, %v4642
  %v4651 = vmul.f32 %v4643, %v4643
  %v4652 = vmul.f32 %v4644, %v4644
  %v4653 = vmul.f32 %v4645, %v4645
  %v4654 = vmul.f32 %v4646, %v4646
  %v4655 = vmul.f32 %v4647, %v4647
  %v4656 = vsel %vm39, %v4648, 0.0
  %4657 = vadd.xlane.f32.xlu0 %v4656
  %v4658 = vpop.xlane.xlu0 %4657
  %v4659 = vsel %vm39, %v4649, 0.0
  %4660 = vadd.xlane.f32.xlu0 %v4659
  %v4661 = vpop.xlane.xlu0 %4660
  %v4662 = vsel %vm39, %v4650, 0.0
  %4663 = vadd.xlane.f32.xlu0 %v4662
  %v4664 = vpop.xlane.xlu0 %4663
  %v4665 = vsel %vm39, %v4651, 0.0
  %4666 = vadd.xlane.f32.xlu0 %v4665
  %v4667 = vpop.xlane.xlu0 %4666
  %v4668 = vsel %vm39, %v4652, 0.0
  %4669 = vadd.xlane.f32.xlu0 %v4668
  %v4670 = vpop.xlane.xlu0 %4669
  %v4671 = vsel %vm39, %v4653, 0.0
  %4672 = vadd.xlane.f32.xlu0 %v4671
  %v4673 = vpop.xlane.xlu0 %4672
  %v4674 = vsel %vm39, %v4654, 0.0
  %4675 = vadd.xlane.f32.xlu0 %v4674
  %v4676 = vpop.xlane.xlu0 %4675
  %v4677 = vsel %vm39, %v4655, 0.0
  %4678 = vadd.xlane.f32.xlu0 %v4677
  %v4679 = vpop.xlane.xlu0 %4678
  %v4680 = vmul.f32 %v4658, %v1790
  %v4681 = vmul.f32 %v4661, %v1790
  %v4682 = vmul.f32 %v4664, %v1790
  %v4683 = vmul.f32 %v4667, %v1790
  %v4684 = vmul.f32 %v4670, %v1790
  %v4685 = vmul.f32 %v4673, %v1790
  %v4686 = vmul.f32 %v4676, %v1790
  %v4687 = vmul.f32 %v4679, %v1790
  %v4688 = vadd.f32 %v4680, 1e-12
  %v4689 = vadd.f32 %v4681, 1e-12
  %v4690 = vadd.f32 %v4682, 1e-12
  %v4691 = vadd.f32 %v4683, 1e-12
  %v4692 = vadd.f32 %v4684, 1e-12
  %v4693 = vadd.f32 %v4685, 1e-12
  %v4694 = vadd.f32 %v4686, 1e-12
  %v4695 = vadd.f32 %v4687, 1e-12
  %v4696 = vrsqrt.pop %v4688
  %v4697 = vrsqrt.pop %v4689
  %v4698 = vrsqrt.pop %v4690
  %v4699 = vrsqrt.pop %v4691
  %v4700 = vrsqrt.pop %v4692
  %v4701 = vrsqrt.pop %v4693
  %v4702 = vrsqrt.pop %v4694
  %v4703 = vrsqrt.pop %v4695
  %v4704 = vmul.f32 %v4640, %v4696
  %v4705 = vmul.f32 %v4641, %v4697
  %v4706 = vmul.f32 %v4642, %v4698
  %v4707 = vmul.f32 %v4643, %v4699
  %v4708 = vmul.f32 %v4644, %v4700
  %v4709 = vmul.f32 %v4645, %v4701
  %v4710 = vmul.f32 %v4646, %v4702
  %v4711 = vmul.f32 %v4647, %v4703
  %v4712 = vlaneseq
  %v4713 = vshrl.u32 %v4712, 7
  %v4714 = vsub.s32 0, %v4713
  %v4715 = vrot.slane %v4606, %v4714
  %v4716 = vmul.f32 %v4704, %v4715
  %v4717 = vmul.f32 %v4705, %v4715
  %v4718 = vmul.f32 %v4706, %v4715
  %v4719 = vmul.f32 %v4707, %v4715
  %v4720 = vmul.f32 %v4708, %v4715
  %v4721 = vmul.f32 %v4709, %v4715
  %v4722 = vmul.f32 %v4710, %v4715
  %v4723 = vmul.f32 %v4711, %v4715
  %v4724 = vlaneseq
  %v4725 = vshrl.u32 %v4724, 7
  %v4726 = vsub.s32 0, %v4725
  %v4727 = vrot.slane %v4607, %v4726
  %v4728 = vadd.f32 %v4716, %v4727
  %v4729 = vadd.f32 %v4717, %v4727
  %v4730 = vadd.f32 %v4718, %v4727
  %v4731 = vadd.f32 %v4719, %v4727
  %v4732 = vadd.f32 %v4720, %v4727
  %v4733 = vadd.f32 %v4721, %v4727
  %v4734 = vadd.f32 %v4722, %v4727
  %v4735 = vadd.f32 %v4723, %v4727
  %v4736 = vld [vmem:[%s2 + $0x3a0] sm:$0xff]
  %v4738 = vsel %vm551, %v4736, 0
  %4740 = vmatprep.subr.mxu0 0.0
  %4741 = vmatpush1.msra.mxu0 %v4728
  %4742 = vmatprep.subr.mxu0 0.0
  %4743 = vmatpush1.msra.mxu0 %v4729
  %4744 = vmatprep.subr.mxu0 0.0
  %4745 = vmatpush1.msra.mxu0 %v4730
  %4746 = vmatprep.subr.mxu0 0.0
  %4747 = vmatpush1.msra.mxu0 %v4731
  %4748 = vmatprep.subr.mxu0 0.0
  %4749 = vmatpush1.msra.mxu0 %v4732
  %4750 = vmatprep.subr.mxu0 0.0
  %4751 = vmatpush1.msra.mxu0 %v4733
  %4752 = vmatprep.subr.mxu0 0.0
  %4753 = vmatpush1.msra.mxu0 %v4734
  %4754 = vmatprep.subr.mxu0 0.0
  %4755 = vmatpush1.msra.mxu0 %v4735
  %4756 = vmatprep.subr.mxu0 0.0
  %4757 = vmatpush1.msra.mxu0 0.0
  %4758 = vmatprep.subr.mxu0 0.0
  %4759 = vmatpush1.msra.mxu0 0.0
  %4760 = vmatprep.subr.mxu0 0.0
  %4761 = vmatpush1.msra.mxu0 0.0
  %4762 = vmatprep.subr.mxu0 0.0
  %4763 = vmatpush1.msra.mxu0 0.0
  %4764 = vmatprep.subr.mxu0 0.0
  %4765 = vmatpush1.msra.mxu0 0.0
  %4766 = vmatprep.subr.mxu0 0.0
  %4767 = vmatpush1.msra.mxu0 0.0
  %4768 = vmatprep.subr.mxu0 0.0
  %4769 = vmatpush1.msra.mxu0 0.0
  %4770 = vmatprep.subr.mxu0 0.0
  %4771 = vmatpush1.msra.mxu0 0.0
  %4772 = vmatprep.subr.mxu0 0.0
  %4773 = vmatpush1.msra.mxu0 0.0
  %4774 = vmatprep.subr.mxu0 0.0
  %4775 = vmatpush1.msra.mxu0 0.0
  %4776 = vmatprep.subr.mxu0 0.0
  %4777 = vmatpush1.msra.mxu0 0.0
  %4778 = vmatprep.subr.mxu0 0.0
  %4779 = vmatpush1.msra.mxu0 0.0
  %4780 = vmatprep.subr.mxu0 0.0
  %4781 = vmatpush1.msra.mxu0 0.0
  %4782 = vmatprep.subr.mxu0 0.0
  %4783 = vmatpush1.msra.mxu0 0.0
  %4784 = vmatprep.subr.mxu0 0.0
  %4785 = vmatpush1.msra.mxu0 0.0
  %4786 = vmatprep.subr.mxu0 0.0
  %4787 = vmatpush1.msra.mxu0 0.0
  %4788 = vmatprep.subr.mxu0 0.0
  %4789 = vmatpush1.msra.mxu0 0.0
  %4790 = vmatprep.subr.mxu0 0.0
  %4791 = vmatpush1.msra.mxu0 0.0
  %4792 = vmatprep.subr.mxu0 0.0
  %4793 = vmatpush1.msra.mxu0 0.0
  %4794 = vmatprep.subr.mxu0 0.0
  %4795 = vmatpush1.msra.mxu0 0.0
  %4796 = vmatprep.subr.mxu0 0.0
  %4797 = vmatpush1.msra.mxu0 0.0
  %4798 = vmatprep.subr.mxu0 0.0
  %4799 = vmatpush1.msra.mxu0 0.0
  %4800 = vmatprep.subr.mxu0 0.0
  %4801 = vmatpush1.msra.mxu0 0.0
  %4802 = vmatprep.subr.mxu0 0.0
  %4803 = vmatpush1.msra.mxu0 0.0
  %4804 = vmatprep.mubr.f32.mxu0 0.0
  %4805 = vmatmul.mubr.f32.gmra.mrb[0].mxu0 %v4738
  %v4806 = vpop.f32.mrb[0].mxu0
  %v4807 = vadd.f32 0.0, %v4806
  %v4808 = vpop.f32.mrb[0].mxu0
  %4809 = vdwg.mxu0
  %v4810 = vld [vmem:[%s2 + $0x350] sm:$0xff]
  %v4811 = vld [vmem:[%s2 + $0x358] sm:$0xff]
  %v4812 = vld [vmem:[%s2 + $0x360] sm:$0xff]
  %v4813 = vld [vmem:[%s2 + $0x368] sm:$0xff]
  %v4814 = vld [vmem:[%s2 + $0x370] sm:$0x1]
  %v4815 = vlaneseq
  %v4816 = vshrl.u32 %v4815, 7
  %v4817 = vsub.s32 0, %v4816
  %v4818 = vrot.slane %v4814, %v4817
  %v4820 = vsel %vm39, %v4807, 0
  %4822 = vmatprep.subr.mxu0 0.0
  %4823 = vmatpush1.msra.mxu0 %v4810
  %4824 = vmatprep.subr.mxu0 0.0
  %4825 = vmatpush1.msra.mxu0 %v4811
  %4826 = vmatprep.subr.mxu0 0.0
  %4827 = vmatpush1.msra.mxu0 %v4812
  %4828 = vmatprep.subr.mxu0 0.0
  %4829 = vmatpush1.msra.mxu0 %v4813
  %4830 = vmatprep.subr.mxu0 0.0
  %4831 = vmatpush1.msra.mxu0 0.0
  %4832 = vmatprep.subr.mxu0 0.0
  %4833 = vmatpush1.msra.mxu0 0.0
  %4834 = vmatprep.subr.mxu0 0.0
  %4835 = vmatpush1.msra.mxu0 0.0
  %4836 = vmatprep.subr.mxu0 0.0
  %4837 = vmatpush1.msra.mxu0 0.0
  %4838 = vmatprep.subr.mxu0 0.0
  %4839 = vmatpush1.msra.mxu0 0.0
  %4840 = vmatprep.subr.mxu0 0.0
  %4841 = vmatpush1.msra.mxu0 0.0
  %4842 = vmatprep.subr.mxu0 0.0
  %4843 = vmatpush1.msra.mxu0 0.0
  %4844 = vmatprep.subr.mxu0 0.0
  %4845 = vmatpush1.msra.mxu0 0.0
  %4846 = vmatprep.subr.mxu0 0.0
  %4847 = vmatpush1.msra.mxu0 0.0
  %4848 = vmatprep.subr.mxu0 0.0
  %4849 = vmatpush1.msra.mxu0 0.0
  %4850 = vmatprep.subr.mxu0 0.0
  %4851 = vmatpush1.msra.mxu0 0.0
  %4852 = vmatprep.subr.mxu0 0.0
  %4853 = vmatpush1.msra.mxu0 0.0
  %4854 = vmatprep.subr.mxu0 0.0
  %4855 = vmatpush1.msra.mxu0 0.0
  %4856 = vmatprep.subr.mxu0 0.0
  %4857 = vmatpush1.msra.mxu0 0.0
  %4858 = vmatprep.subr.mxu0 0.0
  %4859 = vmatpush1.msra.mxu0 0.0
  %4860 = vmatprep.subr.mxu0 0.0
  %4861 = vmatpush1.msra.mxu0 0.0
  %4862 = vmatprep.subr.mxu0 0.0
  %4863 = vmatpush1.msra.mxu0 0.0
  %4864 = vmatprep.subr.mxu0 0.0
  %4865 = vmatpush1.msra.mxu0 0.0
  %4866 = vmatprep.subr.mxu0 0.0
  %4867 = vmatpush1.msra.mxu0 0.0
  %4868 = vmatprep.subr.mxu0 0.0
  %4869 = vmatpush1.msra.mxu0 0.0
  %4870 = vmatprep.subr.mxu0 0.0
  %4871 = vmatpush1.msra.mxu0 0.0
  %4872 = vmatprep.subr.mxu0 0.0
  %4873 = vmatpush1.msra.mxu0 0.0
  %4874 = vmatprep.subr.mxu0 0.0
  %4875 = vmatpush1.msra.mxu0 0.0
  %4876 = vmatprep.subr.mxu0 0.0
  %4877 = vmatpush1.msra.mxu0 0.0
  %4878 = vmatprep.subr.mxu0 0.0
  %4879 = vmatpush1.msra.mxu0 0.0
  %4880 = vmatprep.subr.mxu0 0.0
  %4881 = vmatpush1.msra.mxu0 0.0
  %4882 = vmatprep.subr.mxu0 0.0
  %4883 = vmatpush1.msra.mxu0 0.0
  %4884 = vmatprep.subr.mxu0 0.0
  %4885 = vmatpush1.msra.mxu0 0.0
  %4886 = vmatprep.mubr.f32.mxu0 0.0
  %4887 = vmatmul.mubr.f32.gmra.mrb[0].mxu0 %v4820
  %v4888 = vpop.f32.mrb[0].mxu0
  %v4889 = vadd.f32 %v4818, %v4888
  %v4890 = vpop.f32.mrb[0].mxu0
  %4891 = vdwg.mxu0
  %v4892 = vtanh.pop %v4889
  %v4893 = vld [vmem:[%s2 + $0x378] sm:$0xff]
  %v4894 = vld [vmem:[%s2 + $0x380] sm:$0xff]
  %v4895 = vld [vmem:[%s2 + $0x388] sm:$0xff]
  %v4896 = vld [vmem:[%s2 + $0x390] sm:$0xff]
  %v4897 = vld [vmem:[%s2 + $0x398] sm:$0x1]
  %v4898 = vlaneseq
  %v4899 = vshrl.u32 %v4898, 7
  %v4900 = vsub.s32 0, %v4899
  %v4901 = vrot.slane %v4897, %v4900
  %v4903 = vsel %vm39, %v4892, 0
  %4905 = vmatprep.subr.mxu0 0.0
  %4906 = vmatpush1.msra.mxu0 %v4893
  %4907 = vmatprep.subr.mxu0 0.0
  %4908 = vmatpush1.msra.mxu0 %v4894
  %4909 = vmatprep.subr.mxu0 0.0
  %4910 = vmatpush1.msra.mxu0 %v4895
  %4911 = vmatprep.subr.mxu0 0.0
  %4912 = vmatpush1.msra.mxu0 %v4896
  %4913 = vmatprep.subr.mxu0 0.0
  %4914 = vmatpush1.msra.mxu0 0.0
  %4915 = vmatprep.subr.mxu0 0.0
  %4916 = vmatpush1.msra.mxu0 0.0
  %4917 = vmatprep.subr.mxu0 0.0
  %4918 = vmatpush1.msra.mxu0 0.0
  %4919 = vmatprep.subr.mxu0 0.0
  %4920 = vmatpush1.msra.mxu0 0.0
  %4921 = vmatprep.subr.mxu0 0.0
  %4922 = vmatpush1.msra.mxu0 0.0
  %4923 = vmatprep.subr.mxu0 0.0
  %4924 = vmatpush1.msra.mxu0 0.0
  %4925 = vmatprep.subr.mxu0 0.0
  %4926 = vmatpush1.msra.mxu0 0.0
  %4927 = vmatprep.subr.mxu0 0.0
  %4928 = vmatpush1.msra.mxu0 0.0
  %4929 = vmatprep.subr.mxu0 0.0
  %4930 = vmatpush1.msra.mxu0 0.0
  %4931 = vmatprep.subr.mxu0 0.0
  %4932 = vmatpush1.msra.mxu0 0.0
  %4933 = vmatprep.subr.mxu0 0.0
  %4934 = vmatpush1.msra.mxu0 0.0
  %4935 = vmatprep.subr.mxu0 0.0
  %4936 = vmatpush1.msra.mxu0 0.0
  %4937 = vmatprep.subr.mxu0 0.0
  %4938 = vmatpush1.msra.mxu0 0.0
  %4939 = vmatprep.subr.mxu0 0.0
  %4940 = vmatpush1.msra.mxu0 0.0
  %4941 = vmatprep.subr.mxu0 0.0
  %4942 = vmatpush1.msra.mxu0 0.0
  %4943 = vmatprep.subr.mxu0 0.0
  %4944 = vmatpush1.msra.mxu0 0.0
  %4945 = vmatprep.subr.mxu0 0.0
  %4946 = vmatpush1.msra.mxu0 0.0
  %4947 = vmatprep.subr.mxu0 0.0
  %4948 = vmatpush1.msra.mxu0 0.0
  %4949 = vmatprep.subr.mxu0 0.0
  %4950 = vmatpush1.msra.mxu0 0.0
  %4951 = vmatprep.subr.mxu0 0.0
  %4952 = vmatpush1.msra.mxu0 0.0
  %4953 = vmatprep.subr.mxu0 0.0
  %4954 = vmatpush1.msra.mxu0 0.0
  %4955 = vmatprep.subr.mxu0 0.0
  %4956 = vmatpush1.msra.mxu0 0.0
  %4957 = vmatprep.subr.mxu0 0.0
  %4958 = vmatpush1.msra.mxu0 0.0
  %4959 = vmatprep.subr.mxu0 0.0
  %4960 = vmatpush1.msra.mxu0 0.0
  %4961 = vmatprep.subr.mxu0 0.0
  %4962 = vmatpush1.msra.mxu0 0.0
  %4963 = vmatprep.subr.mxu0 0.0
  %4964 = vmatpush1.msra.mxu0 0.0
  %4965 = vmatprep.subr.mxu0 0.0
  %4966 = vmatpush1.msra.mxu0 0.0
  %4967 = vmatprep.subr.mxu0 0.0
  %4968 = vmatpush1.msra.mxu0 0.0
  %4969 = vmatprep.mubr.f32.mxu0 0.0
  %4970 = vmatmul.mubr.f32.gmra.mrb[0].mxu0 %v4903
  %v4971 = vpop.f32.mrb[0].mxu0
  %v4972 = vadd.f32 %v4901, %v4971
  %v4973 = vpop.f32.mrb[0].mxu0
  %4974 = vdwg.mxu0
  %4975 = vst [vmem:[%s3] sm:$0xff] %v4972
  // Predicated region
  $region14: #{forward.1} parent=0 // pred_check
    _
  $region15: #{forward.1} parent=0 // pred_check_branch
    %4977 = sbr.rel (0) target = $region17
  $region16: #{forward.1} parent=0 // pred_region
    _
  $region17: #{forward.1} parent=0 // pred_fallthru
    _
  // Predicated region
  $region18: #{forward.1} parent=0 // pred_check
    _
  $region19: #{forward.1} parent=0 // pred_check_branch
    %4979 = sbr.rel (0) target = $region21
  $region20: #{forward.1} parent=0 // pred_region
    _
  $region21: #{forward.1} parent=0 // pred_fallthru
    _

</llo_original>
